<compile_context>
chip_gen: v5e
topology: v5e:2x2
jax: 0.10.0
libtpu: 0.0.40
codegen_flags: <defaults>
</compile_context>

<pallas_src>
import jax
import jax.numpy as jnp
from jax.experimental import pallas as pl
from jax.experimental.pallas import tpu as pltpu


def fused_kernel(x440_ref, x407_ref, gamma_ref, beta_ref, w_ref, b_ref, out_ref):
    # dropout (identity at inference) + residual add, in f32
    x = x440_ref[...].astype(jnp.float32) + x407_ref[...].astype(jnp.float32)

    # LayerNorm over last dim (H), eps = 1e-12, elementwise affine.
    # Single-pass moments: var = E[x^2] - mean^2 (the two reductions are
    # independent and can co-issue on the XLUs).
    inv_h = jnp.float32(1.0 / x.shape[-1])
    s1 = jnp.sum(x, axis=-1, keepdims=True)
    s2 = jnp.sum(x * x, axis=-1, keepdims=True)
    mean = s1 * inv_h
    var = s2 * inv_h - mean * mean
    inv_std = jax.lax.rsqrt(var + 1e-12)
    y = (x - mean) * inv_std * gamma_ref[...] + beta_ref[...]

    # Linear: bf16 operands on the MXU, f32 accumulation, then bias add.
    out = jnp.dot(
        y.astype(jnp.bfloat16), w_ref[...], preferred_element_type=jnp.float32
    ) + b_ref[...]
    out_ref[...] = out.astype(out_ref.dtype)


def dropout_add_layernorm_linear(x440, x407, gamma, beta, weight, bias, *, tm=192):
    """x440, x407: (B, S, H). weight: (H, N) (already transposed). bias: (N,)."""
    B, S, H = x440.shape
    N = weight.shape[1]
    rows = B * S
    assert rows % tm == 0, "row count must be divisible by row tile"

    x440_2d = x440.reshape(rows, H)
    x407_2d = x407.reshape(rows, H)
    gamma_2d = gamma.reshape(1, H).astype(jnp.float32)
    beta_2d = beta.reshape(1, H).astype(jnp.float32)
    # bf16 weight: halves the weight DMA and feeds the MXU natively.
    w_bf16 = weight.astype(jnp.bfloat16)
    bias_2d = bias.reshape(1, N).astype(jnp.float32)

    out_2d = pl.pallas_call(
        fused_kernel,
        out_shape=jax.ShapeDtypeStruct((rows, N), x440.dtype),
        grid_spec=pltpu.PrefetchScalarGridSpec(
            num_scalar_prefetch=0,
            grid=(rows // tm,),
            in_specs=[
                pl.BlockSpec((tm, H), lambda i: (i, 0)),   # x440 row tile
                pl.BlockSpec((tm, H), lambda i: (i, 0)),   # x407 row tile
                pl.BlockSpec((1, H), lambda i: (0, 0)),    # gamma (invariant)
                pl.BlockSpec((1, H), lambda i: (0, 0)),    # beta  (invariant)
                pl.BlockSpec((H, N), lambda i: (0, 0)),    # weight (invariant, bf16)
                pl.BlockSpec((1, N), lambda i: (0, 0)),    # bias  (invariant)
            ],
            out_specs=pl.BlockSpec((tm, N), lambda i: (i, 0)),
        ),
        compiler_params=pltpu.CompilerParams(
            dimension_semantics=("parallel",),
        ),
    )(x440_2d, x407_2d, gamma_2d, beta_2d, w_bf16, bias_2d)

    return out_2d.reshape(B, S, N)


if __name__ == "__main__":
    B, S, H, N = 1, 384, 256, 1024

    key = jax.random.PRNGKey(0)
    k1, k2, k3, k4 = jax.random.split(key, 4)

    x440 = jax.random.normal(k1, (B, S, H), dtype=jnp.float32)
    x407 = jax.random.normal(k2, (B, S, H), dtype=jnp.float32)

    # LayerNorm params (PyTorch default init: weight=1, bias=0)
    gamma = jnp.ones((H,), dtype=jnp.float32)
    beta = jnp.zeros((H,), dtype=jnp.float32)

    # Linear params: deterministic uniform init similar to PyTorch's default
    bound = 1.0 / jnp.sqrt(jnp.float32(H))
    weight = jax.random.uniform(k3, (H, N), minval=-bound, maxval=bound,
                                dtype=jnp.float32)  # stored as (in, out)
    bias = jax.random.uniform(k4, (N,), minval=-bound, maxval=bound,
                              dtype=jnp.float32)

    out = dropout_add_layernorm_linear(x440, x407, gamma, beta, weight, bias)
    jax.block_until_ready(out)

    # Pure-JAX f32 reference check. Tolerance relaxed to account for the
    # bf16-operand matmul (f32 accumulation) inside the kernel.
    x = x440 + x407
    mu = jnp.mean(x, axis=-1, keepdims=True)
    var = jnp.mean((x - mu) ** 2, axis=-1, keepdims=True)
    ref = (x - mu) * jax.lax.rsqrt(var + 1e-12) * gamma + beta
    ref = ref @ weight + bias
    assert out.shape == (B, S, N)
    assert jnp.allclose(out, ref, atol=5e-2, rtol=5e-2), (
        float(jnp.max(jnp.abs(out - ref))))

    print("KERNEL_OK")
</pallas_src>

<mosaic_0001>
module attributes {stable_mosaic.version = 11 : i64} {
  func.func @fused_kernel(%arg0: i32, %arg1: memref<192x256xf32, #tpu.memory_space<vmem>>, %arg2: memref<192x256xf32, #tpu.memory_space<vmem>>, %arg3: memref<1x256xf32, #tpu.memory_space<vmem>>, %arg4: memref<1x256xf32, #tpu.memory_space<vmem>>, %arg5: memref<256x1024xbf16, #tpu.memory_space<vmem>>, %arg6: memref<1x1024xf32, #tpu.memory_space<vmem>>, %arg7: memref<192x1024xf32, #tpu.memory_space<vmem>>) attributes {dimension_semantics = [#tpu.dimension_semantics<parallel>], iteration_bounds = array<i64: 2>, scalar_prefetch = 0 : i64, scratch_operands = 0 : i64, tpu.core_type = #tpu.core_type<tc>, window_params = [{transform_indices = @transform_0, window_bounds = array<i64: 192, 256>}, {transform_indices = @transform_1, window_bounds = array<i64: 192, 256>}, {pipeline_mode = #tpu.pipeline_mode<synchronous>, transform_indices = @transform_2, window_bounds = array<i64: 1, 256>}, {pipeline_mode = #tpu.pipeline_mode<synchronous>, transform_indices = @transform_3, window_bounds = array<i64: 1, 256>}, {pipeline_mode = #tpu.pipeline_mode<synchronous>, transform_indices = @transform_4, window_bounds = array<i64: 256, 1024>}, {pipeline_mode = #tpu.pipeline_mode<synchronous>, transform_indices = @transform_5, window_bounds = array<i64: 1, 1024>}, {transform_indices = @transform_6, window_bounds = array<i64: 192, 1024>}]} {
    %c0 = arith.constant 0 : index
    %c0_0 = arith.constant 0 : index
    %0 = vector.load %arg1[%c0, %c0_0] : memref<192x256xf32, #tpu.memory_space<vmem>>, vector<192x256xf32>
    %c0_1 = arith.constant 0 : index
    %c0_2 = arith.constant 0 : index
    %1 = vector.load %arg2[%c0_1, %c0_2] : memref<192x256xf32, #tpu.memory_space<vmem>>, vector<192x256xf32>
    %2 = arith.addf %0, %1 : vector<192x256xf32>
    %cst = arith.constant dense<0.000000e+00> : vector<192xf32>
    %3 = vector.multi_reduction <add>, %2, %cst [1] : vector<192x256xf32> to vector<192xf32>
    %4 = vector.shape_cast %3 : vector<192xf32> to vector<192x1xf32>
    %5 = arith.mulf %2, %2 : vector<192x256xf32>
    %cst_3 = arith.constant dense<0.000000e+00> : vector<192xf32>
    %6 = vector.multi_reduction <add>, %5, %cst_3 [1] : vector<192x256xf32> to vector<192xf32>
    %7 = vector.shape_cast %6 : vector<192xf32> to vector<192x1xf32>
    %cst_4 = arith.constant 3.906250e-03 : f32
    %8 = vector.broadcast %cst_4 : f32 to vector<192x1xf32>
    %9 = arith.mulf %4, %8 : vector<192x1xf32>
    %cst_5 = arith.constant 3.906250e-03 : f32
    %10 = vector.broadcast %cst_5 : f32 to vector<192x1xf32>
    %11 = arith.mulf %7, %10 : vector<192x1xf32>
    %12 = arith.mulf %9, %9 : vector<192x1xf32>
    %13 = arith.subf %11, %12 : vector<192x1xf32>
    %cst_6 = arith.constant 9.99999996E-13 : f32
    %14 = vector.broadcast %cst_6 : f32 to vector<192x1xf32>
    %15 = arith.addf %13, %14 : vector<192x1xf32>
    %16 = math.rsqrt %15 : vector<192x1xf32>
    %17 = vector.broadcast %9 : vector<192x1xf32> to vector<192x256xf32>
    %18 = arith.subf %2, %17 : vector<192x256xf32>
    %19 = vector.broadcast %16 : vector<192x1xf32> to vector<192x256xf32>
    %20 = arith.mulf %18, %19 : vector<192x256xf32>
    %c0_7 = arith.constant 0 : index
    %c0_8 = arith.constant 0 : index
    %21 = vector.load %arg3[%c0_7, %c0_8] : memref<1x256xf32, #tpu.memory_space<vmem>>, vector<1x256xf32>
    %22 = vector.broadcast %21 : vector<1x256xf32> to vector<192x256xf32>
    %23 = arith.mulf %20, %22 : vector<192x256xf32>
    %c0_9 = arith.constant 0 : index
    %c0_10 = arith.constant 0 : index
    %24 = vector.load %arg4[%c0_9, %c0_10] : memref<1x256xf32, #tpu.memory_space<vmem>>, vector<1x256xf32>
    %25 = vector.broadcast %24 : vector<1x256xf32> to vector<192x256xf32>
    %26 = arith.addf %23, %25 : vector<192x256xf32>
    %27 = arith.truncf %26 : vector<192x256xf32> to vector<192x256xbf16>
    %c0_11 = arith.constant 0 : index
    %c0_12 = arith.constant 0 : index
    %28 = vector.load %arg5[%c0_11, %c0_12] : memref<256x1024xbf16, #tpu.memory_space<vmem>>, vector<256x1024xbf16>
    %cst_13 = arith.constant dense<0.000000e+00> : vector<192x1024xf32>
    %29 = tpu.matmul %27, %28, %cst_13 {dimension_numbers = #tpu.dot_dimension_numbers<[1], [0], [0], [1], [0, 0, 1, 1], [], []>} : vector<192x256xbf16>, vector<256x1024xbf16>, vector<192x1024xf32> -> vector<192x1024xf32>
    %c0_14 = arith.constant 0 : index
    %c0_15 = arith.constant 0 : index
    %30 = vector.load %arg6[%c0_14, %c0_15] : memref<1x1024xf32, #tpu.memory_space<vmem>>, vector<1x1024xf32>
    %31 = vector.broadcast %30 : vector<1x1024xf32> to vector<192x1024xf32>
    %32 = arith.addf %29, %31 : vector<192x1024xf32>
    %c0_16 = arith.constant 0 : index
    %c0_17 = arith.constant 0 : index
    %33 = vector.load %arg7[%c0_16, %c0_17] : memref<192x1024xf32, #tpu.memory_space<vmem>>, vector<192x1024xf32>
    tpu.vector_store %arg7[%c0_16, %c0_17], %32 {strides = array<i32>} : memref<192x1024xf32, #tpu.memory_space<vmem>>, vector<192x1024xf32>,
    return
  }
  func.func @transform_0(%arg0: i32) -> (i32, i32) {
    %c0_i32 = arith.constant 0 : i32
    %c0_i32_0 = arith.constant 0 : i32
    return %arg0, %c0_i32 : i32, i32
  }
  func.func @transform_1(%arg0: i32) -> (i32, i32) {
    %c0_i32 = arith.constant 0 : i32
    %c0_i32_0 = arith.constant 0 : i32
    return %arg0, %c0_i32 : i32, i32
  }
  func.func @transform_2(%arg0: i32) -> (i32, i32) {
    %c0_i32 = arith.constant 0 : i32
    %c0_i32_0 = arith.constant 0 : i32
    %c0_i32_1 = arith.constant 0 : i32
    return %c0_i32, %c0_i32_0 : i32, i32
  }
  func.func @transform_3(%arg0: i32) -> (i32, i32) {
    %c0_i32 = arith.constant 0 : i32
    %c0_i32_0 = arith.constant 0 : i32
    %c0_i32_1 = arith.constant 0 : i32
    return %c0_i32, %c0_i32_0 : i32, i32
  }
  func.func @transform_4(%arg0: i32) -> (i32, i32) {
    %c0_i32 = arith.constant 0 : i32
    %c0_i32_0 = arith.constant 0 : i32
    %c0_i32_1 = arith.constant 0 : i32
    return %c0_i32, %c0_i32_0 : i32, i32
  }
  func.func @transform_5(%arg0: i32) -> (i32, i32) {
    %c0_i32 = arith.constant 0 : i32
    %c0_i32_0 = arith.constant 0 : i32
    %c0_i32_1 = arith.constant 0 : i32
    return %c0_i32, %c0_i32_0 : i32, i32
  }
  func.func @transform_6(%arg0: i32) -> (i32, i32) {
    %c0_i32 = arith.constant 0 : i32
    %c0_i32_0 = arith.constant 0 : i32
    return %arg0, %c0_i32 : i32, i32
  }
}

</mosaic_0001>

<llo_original>
// kernel: tpu_custom_call.1
$region0: #{tpu_custom_call.1}
  #allocation0 [shape = 'u32[]', space=smem, size = 0x4, offset = 0x4, fixed_abs, tag = 'smem constant byte address 0x4 - core index']
  #allocation1 [shape = 'u32[72,128]{1,0:T(1,128)}', space=vmem, size = 0x9000, scoped, tag = 'internal scratch']
  %s0 = inlined_call_operand.hbm [shape: f32[384,256], index: 0, kind: input, shape index: {}]
  %s1 = inlined_call_operand.hbm [shape: f32[384,256], index: 1, kind: input, shape index: {}]
  %s2 = inlined_call_operand.hbm [shape: f32[1,256], index: 2, kind: input, shape index: {}]
  %s3 = inlined_call_operand.hbm [shape: f32[1,256], index: 3, kind: input, shape index: {}]
  %s4 = inlined_call_operand.hbm [shape: bf16[256,1024], index: 4, kind: input, shape index: {}]
  %s5 = inlined_call_operand.hbm [shape: f32[1,1024], index: 5, kind: input, shape index: {}]
  %s6 = inlined_call_operand.hbm [shape: f32[384,1024], index: 6, kind: output, shape index: {}]
  %s7 = sld [smem:[#allocation0]]
  $region81: #{tpu_custom_call.1} parent=0
    _
  %s9 = ssub.s32 1, %s7
  %s10 = scalar_select 0, %s9, %s7
  $region1: #{tpu_custom_call.1} parent=0
    #allocation2 [shape = 'u8[393216]{0}', space=vmem, size = 0x60000, scoped, tag = 'input window, operand 0']
    #allocation3 [shape = 's32[2]{0}', space=sflag, size = 0x8, scoped, tag = 'scoped memory for tpu_custom_call.1']
    #allocation4 [shape = 's32[2]{0}', space=sflag, size = 0x8, scoped, tag = 'scoped memory for tpu_custom_call.1']
    #allocation5 [shape = 'u8[393216]{0}', space=vmem, size = 0x60000, scoped, tag = 'input window, operand 1']
    #allocation6 [shape = 's32[2]{0}', space=sflag, size = 0x8, scoped, tag = 'scoped memory for tpu_custom_call.1']
    #allocation7 [shape = 'u8[1024]{0}', space=vmem, size = 0x400, scoped, tag = 'input window, operand 2, single buffered']
    #allocation8 [shape = 'u8[1024]{0}', space=vmem, size = 0x400, scoped, tag = 'input window, operand 3, single buffered']
    #allocation9 [shape = 's32[1]{0}', space=sflag, size = 0x4, scoped, tag = 'scoped memory for tpu_custom_call.1']
    #allocation10 [shape = 'u8[524288]{0}', space=vmem, size = 0x80000, scoped, tag = 'input window, operand 4, single buffered']
    #allocation11 [shape = 'u8[4096]{0}', space=vmem, size = 0x1000, scoped, tag = 'input window, operand 5, single buffered']
    #allocation12 [shape = 's32[1]{0}', space=sflag, size = 0x4, scoped, tag = 'scoped memory for tpu_custom_call.1']
    #allocation13 [shape = 'u8[1572864]{0}', space=vmem, size = 0x180000, scoped, tag = 'output window, operand 0']
    %11 = vsyncpa [#allocation3], 0
    %s12 = scalar_lea.sflag [#allocation3], 1
    %13 = vsyncpa %s12, 0
    %14 = vsyncpa [#allocation6], 0
    %s15 = scalar_lea.sflag [#allocation6], 1
    %16 = vsyncpa %s15, 0
    %17 = vsyncpa [#allocation9], 0
    %18 = vsyncpa [#allocation12], 0
    %19 = vsyncpa [#allocation4], 0
    %s20 = scalar_lea.sflag [#allocation4], 1
    %21 = vsyncpa %s20, 0
    loop: start=0, step=1, limit=4
    $region2: #{tpu_custom_call.1} parent=1 // loop_pre_header
      _
    $region3: #{tpu_custom_call.1} parent=1 // loop_header
      %s23 = sphi 0, %s27
      %p24 = scmp.ge.s32.totalorder %s23, 4
      %s33 = sphi 0, %s35
      %s36 = sphi 0, %s33
      %s37 = sphi 0, %s36
      %s53 = sphi 0, %s37
      %s59 = sphi 0, %s61
      %s62 = sphi 0, %s59
      %s63 = sphi 0, %s62
      %s79 = sphi 0, %s63
      %s83 = sphi 0, %s83
      %s85 = sphi 0, %s83
      %s86 = sphi 0, %s85
      %s100 = sphi 0, %s86
      %s104 = sphi 0, %s104
      %s106 = sphi 0, %s104
      %s107 = sphi 0, %s106
      %s121 = sphi 0, %s107
      %s125 = sphi 0, %s125
      %s127 = sphi 0, %s125
      %s128 = sphi 0, %s127
      %s142 = sphi 0, %s128
      %s146 = sphi 0, %s146
      %s148 = sphi 0, %s146
      %s149 = sphi 0, %s148
      %s163 = sphi 0, %s149
      %s169 = sphi 0, %s171
      %s172 = sphi 0, %s169
      %s173 = sphi 0, %s172
      %s189 = sphi 0, %s173
    $region4: #{tpu_custom_call.1} parent=1 // loop_header_branch
      %26 = sbr.rel (%p24) target = $region8
    $region5: #{tpu_custom_call.1} parent=1 // loop_body
      %s28 = ssub.s32 %s23, 1
      %s29 = ssub.s32 %s23, 2
      %s30 = sadd.s32 %s23, 1
      %s31 = ssub.s32 %s23, %s30
      %p32 = scmp.eq.s32.totalorder %s31, 0
      %s34 = sadd.s32 %s33, 1
      %s35 = scalar_select %p32, %s33, %s34
      %p38 = pneg %p32
      %p39 = scmp.eq.s32.totalorder %s23, 1
      %p40 = por %p38, %p39
      %p41 = scmp.ne.s32.totalorder %s33, %s36
      %p42 = scmp.eq.s32.totalorder %s23, 0
      %p43 = por %p41, %p42
      %p44 = scmp.ne.s32.totalorder %s33, %s36
      %p45 = scmp.eq.s32.totalorder %s28, 1
      %p46 = por %p44, %p45
      %p47 = scmp.ne.s32.totalorder %s36, %s37
      %p48 = scmp.eq.s32.totalorder %s28, 0
      %p49 = por %p47, %p48
      %p50 = scmp.ne.s32.totalorder %s36, %s37
      %p51 = scmp.eq.s32.totalorder %s29, 1
      %p52 = por %p50, %p51
      %p54 = scmp.ne.s32.totalorder %s37, %s53
      %p55 = scmp.eq.s32.totalorder %s29, 0
      %p56 = por %p54, %p55
      %s57 = ssub.s32 %s23, %s30
      %p58 = scmp.eq.s32.totalorder %s57, 0
      %s60 = sadd.s32 %s59, 1
      %s61 = scalar_select %p58, %s59, %s60
      %p64 = pneg %p58
      %p65 = scmp.eq.s32.totalorder %s23, 1
      %p66 = por %p64, %p65
      %p67 = scmp.ne.s32.totalorder %s59, %s62
      %p68 = scmp.eq.s32.totalorder %s23, 0
      %p69 = por %p67, %p68
      %p70 = scmp.ne.s32.totalorder %s59, %s62
      %p71 = scmp.eq.s32.totalorder %s28, 1
      %p72 = por %p70, %p71
      %p73 = scmp.ne.s32.totalorder %s62, %s63
      %p74 = scmp.eq.s32.totalorder %s28, 0
      %p75 = por %p73, %p74
      %p76 = scmp.ne.s32.totalorder %s62, %s63
      %p77 = scmp.eq.s32.totalorder %s29, 1
      %p78 = por %p76, %p77
      %p80 = scmp.ne.s32.totalorder %s63, %s79
      %p81 = scmp.eq.s32.totalorder %s29, 0
      %p82 = por %p80, %p81
      %s84 = sadd.s32 %s83, 1
      %p87 = scmp.eq.s32.totalorder %s23, 1
      %p88 = scmp.ne.s32.totalorder %s83, %s85
      %p89 = scmp.eq.s32.totalorder %s23, 0
      %p90 = por %p88, %p89
      %p91 = scmp.ne.s32.totalorder %s83, %s85
      %p92 = scmp.eq.s32.totalorder %s28, 1
      %p93 = por %p91, %p92
      %p94 = scmp.ne.s32.totalorder %s85, %s86
      %p95 = scmp.eq.s32.totalorder %s28, 0
      %p96 = por %p94, %p95
      %p97 = scmp.ne.s32.totalorder %s85, %s86
      %p98 = scmp.eq.s32.totalorder %s29, 1
      %p99 = por %p97, %p98
      %p101 = scmp.ne.s32.totalorder %s86, %s100
      %p102 = scmp.eq.s32.totalorder %s29, 0
      %p103 = por %p101, %p102
      %s105 = sadd.s32 %s104, 1
      %p108 = scmp.eq.s32.totalorder %s23, 1
      %p109 = scmp.ne.s32.totalorder %s104, %s106
      %p110 = scmp.eq.s32.totalorder %s23, 0
      %p111 = por %p109, %p110
      %p112 = scmp.ne.s32.totalorder %s104, %s106
      %p113 = scmp.eq.s32.totalorder %s28, 1
      %p114 = por %p112, %p113
      %p115 = scmp.ne.s32.totalorder %s106, %s107
      %p116 = scmp.eq.s32.totalorder %s28, 0
      %p117 = por %p115, %p116
      %p118 = scmp.ne.s32.totalorder %s106, %s107
      %p119 = scmp.eq.s32.totalorder %s29, 1
      %p120 = por %p118, %p119
      %p122 = scmp.ne.s32.totalorder %s107, %s121
      %p123 = scmp.eq.s32.totalorder %s29, 0
      %p124 = por %p122, %p123
      %s126 = sadd.s32 %s125, 1
      %p129 = scmp.eq.s32.totalorder %s23, 1
      %p130 = scmp.ne.s32.totalorder %s125, %s127
      %p131 = scmp.eq.s32.totalorder %s23, 0
      %p132 = por %p130, %p131
      %p133 = scmp.ne.s32.totalorder %s125, %s127
      %p134 = scmp.eq.s32.totalorder %s28, 1
      %p135 = por %p133, %p134
      %p136 = scmp.ne.s32.totalorder %s127, %s128
      %p137 = scmp.eq.s32.totalorder %s28, 0
      %p138 = por %p136, %p137
      %p139 = scmp.ne.s32.totalorder %s127, %s128
      %p140 = scmp.eq.s32.totalorder %s29, 1
      %p141 = por %p139, %p140
      %p143 = scmp.ne.s32.totalorder %s128, %s142
      %p144 = scmp.eq.s32.totalorder %s29, 0
      %p145 = por %p143, %p144
      %s147 = sadd.s32 %s146, 1
      %p150 = scmp.eq.s32.totalorder %s23, 1
      %p151 = scmp.ne.s32.totalorder %s146, %s148
      %p152 = scmp.eq.s32.totalorder %s23, 0
      %p153 = por %p151, %p152
      %p154 = scmp.ne.s32.totalorder %s146, %s148
      %p155 = scmp.eq.s32.totalorder %s28, 1
      %p156 = por %p154, %p155
      %p157 = scmp.ne.s32.totalorder %s148, %s149
      %p158 = scmp.eq.s32.totalorder %s28, 0
      %p159 = por %p157, %p158
      %p160 = scmp.ne.s32.totalorder %s148, %s149
      %p161 = scmp.eq.s32.totalorder %s29, 1
      %p162 = por %p160, %p161
      %p164 = scmp.ne.s32.totalorder %s149, %s163
      %p165 = scmp.eq.s32.totalorder %s29, 0
      %p166 = por %p164, %p165
      %s167 = ssub.s32 %s23, %s30
      %p168 = scmp.eq.s32.totalorder %s167, 0
      %s170 = sadd.s32 %s169, 1
      %s171 = scalar_select %p168, %s169, %s170
      %p174 = pneg %p168
      %p175 = scmp.eq.s32.totalorder %s23, 1
      %p176 = por %p174, %p175
      %p177 = scmp.ne.s32.totalorder %s169, %s172
      %p178 = scmp.eq.s32.totalorder %s23, 0
      %p179 = por %p177, %p178
      %p180 = scmp.ne.s32.totalorder %s169, %s172
      %p181 = scmp.eq.s32.totalorder %s28, 1
      %p182 = por %p180, %p181
      %p183 = scmp.ne.s32.totalorder %s172, %s173
      %p184 = scmp.eq.s32.totalorder %s28, 0
      %p185 = por %p183, %p184
      %p186 = scmp.ne.s32.totalorder %s172, %s173
      %p187 = scmp.eq.s32.totalorder %s29, 1
      %p188 = por %p186, %p187
      %p190 = scmp.ne.s32.totalorder %s173, %s189
      %p191 = scmp.eq.s32.totalorder %s29, 0
      %p192 = por %p190, %p191
      %p193 = scmp.le.s32.totalorder 1, %s23
      %p194 = scmp.lt.s32.totalorder %s23, 3
      %p195 = pnand %p193, %p194
      %p196 = pneg %p195
      // Predicated region
      $region9: #{tpu_custom_call.1} parent=5 // pred_check
        _
      $region10: #{tpu_custom_call.1} parent=5 // pred_check_branch
        %198 = sbr.rel (%p195) target = $region12
      $region11: #{tpu_custom_call.1} parent=5 // pred_region
        %s199 = ssub.s32 %s23, 1
        // Predicated region
        $region13: #{tpu_custom_call.1} parent=11 // pred_check
          %p200 = pneg %p96
        $region14: #{tpu_custom_call.1} parent=11 // pred_check_branch
          %202 = sbr.rel (%p200) target = $region16
        $region15: #{tpu_custom_call.1} parent=11 // pred_region
          %204 = vsyncadd [#allocation6], 0
          %s206 = sshll.u32 %s2, 4
          %s207 = int_to_ptr.hbm [resolvable:$true] %s206
          %s208 = sshll.u32 [#allocation7], 4
          %s209 = int_to_ptr.vmem [resolvable:$true] %s208
          %211 = dma.hbm_to_vmem [thread:$0]  %s207, 32, %s209, [#allocation6]
        $region16: #{tpu_custom_call.1} parent=11 // pred_fallthru
          _
        // Predicated region
        $region17: #{tpu_custom_call.1} parent=11 // pred_check
          %p212 = pneg %p117
        $region18: #{tpu_custom_call.1} parent=11 // pred_check_branch
          %214 = sbr.rel (%p212) target = $region20
        $region19: #{tpu_custom_call.1} parent=11 // pred_region
          %216 = vsyncadd [#allocation9], 0
          %s218 = sshll.u32 %s3, 4
          %s219 = int_to_ptr.hbm [resolvable:$true] %s218
          %s220 = sshll.u32 [#allocation8], 4
          %s221 = int_to_ptr.vmem [resolvable:$true] %s220
          %223 = dma.hbm_to_vmem [thread:$0]  %s219, 32, %s221, [#allocation9]
        $region20: #{tpu_custom_call.1} parent=11 // pred_fallthru
          _
        // Predicated region
        $region21: #{tpu_custom_call.1} parent=11 // pred_check
          %p224 = pneg %p138
        $region22: #{tpu_custom_call.1} parent=11 // pred_check_branch
          %226 = sbr.rel (%p224) target = $region24
        $region23: #{tpu_custom_call.1} parent=11 // pred_region
          %228 = vsyncadd [#allocation9], 0
          %s229 = sshll.u32 %s4, 4
          %s230 = int_to_ptr.hbm [resolvable:$true] %s229
          %s231 = sshll.u32 [#allocation10], 4
          %s232 = int_to_ptr.vmem [resolvable:$true] %s231
          %237 = dma.hbm_to_vmem [thread:$0]  %s230, 16384, %s232, [#allocation9], 512, 512, 32
        $region24: #{tpu_custom_call.1} parent=11 // pred_fallthru
          _
        // Predicated region
        $region25: #{tpu_custom_call.1} parent=11 // pred_check
          %p238 = pneg %p159
        $region26: #{tpu_custom_call.1} parent=11 // pred_check_branch
          %240 = sbr.rel (%p238) target = $region28
        $region27: #{tpu_custom_call.1} parent=11 // pred_region
          %242 = vsyncadd [#allocation12], 0
          %s244 = sshll.u32 %s5, 4
          %s245 = int_to_ptr.hbm [resolvable:$true] %s244
          %s246 = sshll.u32 [#allocation11], 4
          %s247 = int_to_ptr.vmem [resolvable:$true] %s246
          %249 = dma.hbm_to_vmem [thread:$0]  %s245, 128, %s247, [#allocation12]
        $region28: #{tpu_custom_call.1} parent=11 // pred_fallthru
          _
      $region12: #{tpu_custom_call.1} parent=5 // pred_fallthru
        _
      %p250 = scmp.lt.s32.totalorder %s23, 2
      // Predicated region
      $region29: #{tpu_custom_call.1} parent=5 // pred_check
        %p251 = pneg %p250
      $region30: #{tpu_custom_call.1} parent=5 // pred_check_branch
        %253 = sbr.rel (%p251) target = $region32
      $region31: #{tpu_custom_call.1} parent=5 // pred_region
        // Predicated region
        $region33: #{tpu_custom_call.1} parent=31 // pred_check
          %p254 = pneg %p43
        $region34: #{tpu_custom_call.1} parent=31 // pred_check_branch
          %256 = sbr.rel (%p254) target = $region36
        $region35: #{tpu_custom_call.1} parent=31 // pred_region
          %s257 = sand.u32 %s33, 1
          %s258 = scalar_lea.sflag [#allocation3], %s257
          %s259 = sand.u32 %s33, 1
          %s260 = smul.addr %s259, 384
          %s261 = scalar_lea.vmem [#allocation2], %s260
          %s262 = smul.u32 24, %s23
          %264 = vsyncadd %s258, 0
          %s265 = smul.addr %s262, 2
          %s266 = smul.addr %s265, 8
          %s267 = scalar_lea.hbm %s0, %s266
          %s268 = sshll.u32 %s267, 4
          %s269 = int_to_ptr.hbm [resolvable:$true] %s268
          %s270 = sshll.u32 %s261, 4
          %s271 = int_to_ptr.vmem [resolvable:$true] %s270
          %276 = dma.hbm_to_vmem [thread:$0]  %s269, 6144, %s271, %s258, 256, 256, 16
        $region36: #{tpu_custom_call.1} parent=31 // pred_fallthru
          _
        // Predicated region
        $region37: #{tpu_custom_call.1} parent=31 // pred_check
          %p277 = pneg %p69
        $region38: #{tpu_custom_call.1} parent=31 // pred_check_branch
          %279 = sbr.rel (%p277) target = $region40
        $region39: #{tpu_custom_call.1} parent=31 // pred_region
          %s280 = sand.u32 %s23, 1
          %s281 = scalar_lea.sflag [#allocation6], %s280
          %s282 = sand.u32 %s59, 1
          %s283 = smul.addr %s282, 384
          %s284 = scalar_lea.vmem [#allocation5], %s283
          %s285 = smul.u32 24, %s23
          %287 = vsyncadd %s281, 0
          %s288 = smul.addr %s285, 2
          %s289 = smul.addr %s288, 8
          %s290 = scalar_lea.hbm %s1, %s289
          %s291 = sshll.u32 %s290, 4
          %s292 = int_to_ptr.hbm [resolvable:$true] %s291
          %s293 = sshll.u32 %s284, 4
          %s294 = int_to_ptr.vmem [resolvable:$true] %s293
          %299 = dma.hbm_to_vmem [thread:$0]  %s292, 6144, %s294, %s281, 256, 256, 16
        $region40: #{tpu_custom_call.1} parent=31 // pred_fallthru
          _
      $region32: #{tpu_custom_call.1} parent=5 // pred_fallthru
        _
      %p300 = scmp.le.s32.totalorder 1, %s23
      %p301 = scmp.lt.s32.totalorder %s23, 3
      %p302 = pnand %p300, %p301
      %p303 = pneg %p302
      // Predicated region
      $region41: #{tpu_custom_call.1} parent=5 // pred_check
        _
      $region42: #{tpu_custom_call.1} parent=5 // pred_check_branch
        %305 = sbr.rel (%p302) target = $region44
      $region43: #{tpu_custom_call.1} parent=5 // pred_region
        %s306 = ssub.s32 %s23, 1
        %s307 = sand.u32 %s36, 1
        %s308 = scalar_lea.sflag [#allocation3], %s307
        %s309 = sand.u32 %s36, 1
        %s310 = smul.addr %s309, 384
        %s311 = scalar_lea.vmem [#allocation2], %s310
        // Predicated region
        $region45: #{tpu_custom_call.1} parent=43 // pred_check
          %p312 = pneg %p49
        $region46: #{tpu_custom_call.1} parent=43 // pred_check_branch
          %314 = sbr.rel (%p312) target = $region48
        $region47: #{tpu_custom_call.1} parent=43 // pred_region
          %316 = dma.done %s308, 6144
        $region48: #{tpu_custom_call.1} parent=43 // pred_fallthru
          _
        %s317 = sand.u32 %s28, 1
        %s318 = scalar_lea.sflag [#allocation6], %s317
        %s319 = sand.u32 %s62, 1
        %s320 = smul.addr %s319, 384
        %s321 = scalar_lea.vmem [#allocation5], %s320
        // Predicated region
        $region49: #{tpu_custom_call.1} parent=43 // pred_check
          %p322 = pneg %p75
        $region50: #{tpu_custom_call.1} parent=43 // pred_check_branch
          %324 = sbr.rel (%p322) target = $region52
        $region51: #{tpu_custom_call.1} parent=43 // pred_region
          %326 = dma.done %s318, 6144
        $region52: #{tpu_custom_call.1} parent=43 // pred_fallthru
          _
        // Predicated region
        $region53: #{tpu_custom_call.1} parent=43 // pred_check
          %p327 = pneg %p96
        $region54: #{tpu_custom_call.1} parent=43 // pred_check_branch
          %329 = sbr.rel (%p327) target = $region56
        $region55: #{tpu_custom_call.1} parent=43 // pred_region
          %331 = dma.done [#allocation6], 32
        $region56: #{tpu_custom_call.1} parent=43 // pred_fallthru
          _
        // Predicated region
        $region57: #{tpu_custom_call.1} parent=43 // pred_check
          %p332 = pneg %p117
        $region58: #{tpu_custom_call.1} parent=43 // pred_check_branch
          %334 = sbr.rel (%p332) target = $region60
        $region59: #{tpu_custom_call.1} parent=43 // pred_region
          %336 = dma.done [#allocation9], 32
        $region60: #{tpu_custom_call.1} parent=43 // pred_fallthru
          _
        // Predicated region
        $region61: #{tpu_custom_call.1} parent=43 // pred_check
          %p337 = pneg %p138
        $region62: #{tpu_custom_call.1} parent=43 // pred_check_branch
          %339 = sbr.rel (%p337) target = $region64
        $region63: #{tpu_custom_call.1} parent=43 // pred_region
          %341 = dma.done [#allocation9], 16384
        $region64: #{tpu_custom_call.1} parent=43 // pred_fallthru
          _
        // Predicated region
        $region65: #{tpu_custom_call.1} parent=43 // pred_check
          %p342 = pneg %p159
        $region66: #{tpu_custom_call.1} parent=43 // pred_check_branch
          %344 = sbr.rel (%p342) target = $region68
        $region67: #{tpu_custom_call.1} parent=43 // pred_region
          %346 = dma.done [#allocation12], 128
        $region68: #{tpu_custom_call.1} parent=43 // pred_fallthru
          _
        %s347 = sand.u32 %s36, 1
        %s348 = scalar_lea.sflag [#allocation3], %s347
        %s349 = sand.u32 %s36, 1
        %s350 = smul.addr %s349, 384
        %s351 = scalar_lea.vmem [#allocation2], %s350
        %p352 = pneg %p49
        %p353 = pneg %p46
        %s354 = sand.u32 %s28, 1
        %s355 = scalar_lea.sflag [#allocation6], %s354
        %s356 = sand.u32 %s62, 1
        %s357 = smul.addr %s356, 384
        %s358 = scalar_lea.vmem [#allocation5], %s357
        %p359 = pneg %p75
        %p360 = pneg %p72
        %p361 = pneg %p96
        %p362 = pneg %p93
        %p363 = pneg %p117
        %p364 = pneg %p114
        %p365 = pneg %p138
        %p366 = pneg %p135
        %p367 = pneg %p159
        %p368 = pneg %p156
        %p369 = pneg %p185
        %p370 = pneg %p182
        %s371 = sand.u32 %s172, 1
        %s372 = scalar_lea.sflag [#allocation4], %s371
        %s373 = sand.u32 %s172, 1
        %s374 = smul.addr %s373, 1536
        %s375 = scalar_lea.vmem [#allocation13], %s374
        %s376 = smul.u32 24, %s28
        %s377 = smul.u32 24, %s28
        %s378 = smul.u32 24, %s28
        %v379 = vld [vmem:[%s311] sm:$0xff]
        %v380 = vld [vmem:[%s311 + $0x8] sm:$0xff]
        %v381 = vld [vmem:[%s311 + $0x10] sm:$0xff]
        %v382 = vld [vmem:[%s311 + $0x18] sm:$0xff]
        %v383 = vld [vmem:[%s311 + $0x20] sm:$0xff]
        %v384 = vld [vmem:[%s311 + $0x28] sm:$0xff]
        %v385 = vld [vmem:[%s311 + $0x30] sm:$0xff]
        %v386 = vld [vmem:[%s311 + $0x38] sm:$0xff]
        %v387 = vld [vmem:[%s311 + $0x40] sm:$0xff]
        %v388 = vld [vmem:[%s311 + $0x48] sm:$0xff]
        %v389 = vld [vmem:[%s311 + $0x50] sm:$0xff]
        %v390 = vld [vmem:[%s311 + $0x58] sm:$0xff]
        %v391 = vld [vmem:[%s311 + $0x60] sm:$0xff]
        %v392 = vld [vmem:[%s311 + $0x68] sm:$0xff]
        %v393 = vld [vmem:[%s311 + $0x70] sm:$0xff]
        %v394 = vld [vmem:[%s311 + $0x78] sm:$0xff]
        %v395 = vld [vmem:[%s311 + $0x80] sm:$0xff]
        %v396 = vld [vmem:[%s311 + $0x88] sm:$0xff]
        %v397 = vld [vmem:[%s311 + $0x90] sm:$0xff]
        %v398 = vld [vmem:[%s311 + $0x98] sm:$0xff]
        %v399 = vld [vmem:[%s311 + $0xa0] sm:$0xff]
        %v400 = vld [vmem:[%s311 + $0xa8] sm:$0xff]
        %v401 = vld [vmem:[%s311 + $0xb0] sm:$0xff]
        %v402 = vld [vmem:[%s311 + $0xb8] sm:$0xff]
        %v403 = vld [vmem:[%s311 + $0xc0] sm:$0xff]
        %v404 = vld [vmem:[%s311 + $0xc8] sm:$0xff]
        %v405 = vld [vmem:[%s311 + $0xd0] sm:$0xff]
        %v406 = vld [vmem:[%s311 + $0xd8] sm:$0xff]
        %v407 = vld [vmem:[%s311 + $0xe0] sm:$0xff]
        %v408 = vld [vmem:[%s311 + $0xe8] sm:$0xff]
        %v409 = vld [vmem:[%s311 + $0xf0] sm:$0xff]
        %v410 = vld [vmem:[%s311 + $0xf8] sm:$0xff]
        %v411 = vld [vmem:[%s311 + $0x100] sm:$0xff]
        %v412 = vld [vmem:[%s311 + $0x108] sm:$0xff]
        %v413 = vld [vmem:[%s311 + $0x110] sm:$0xff]
        %v414 = vld [vmem:[%s311 + $0x118] sm:$0xff]
        %v415 = vld [vmem:[%s311 + $0x120] sm:$0xff]
        %v416 = vld [vmem:[%s311 + $0x128] sm:$0xff]
        %v417 = vld [vmem:[%s311 + $0x130] sm:$0xff]
        %v418 = vld [vmem:[%s311 + $0x138] sm:$0xff]
        %v419 = vld [vmem:[%s311 + $0x140] sm:$0xff]
        %v420 = vld [vmem:[%s311 + $0x148] sm:$0xff]
        %v421 = vld [vmem:[%s311 + $0x150] sm:$0xff]
        %v422 = vld [vmem:[%s311 + $0x158] sm:$0xff]
        %v423 = vld [vmem:[%s311 + $0x160] sm:$0xff]
        %v424 = vld [vmem:[%s311 + $0x168] sm:$0xff]
        %v425 = vld [vmem:[%s311 + $0x170] sm:$0xff]
        %v426 = vld [vmem:[%s311 + $0x178] sm:$0xff]
        %v427 = vld [vmem:[%s321] sm:$0xff]
        %v428 = vld [vmem:[%s321 + $0x8] sm:$0xff]
        %v429 = vld [vmem:[%s321 + $0x10] sm:$0xff]
        %v430 = vld [vmem:[%s321 + $0x18] sm:$0xff]
        %v431 = vld [vmem:[%s321 + $0x20] sm:$0xff]
        %v432 = vld [vmem:[%s321 + $0x28] sm:$0xff]
        %v433 = vld [vmem:[%s321 + $0x30] sm:$0xff]
        %v434 = vld [vmem:[%s321 + $0x38] sm:$0xff]
        %v435 = vld [vmem:[%s321 + $0x40] sm:$0xff]
        %v436 = vld [vmem:[%s321 + $0x48] sm:$0xff]
        %v437 = vld [vmem:[%s321 + $0x50] sm:$0xff]
        %v438 = vld [vmem:[%s321 + $0x58] sm:$0xff]
        %v439 = vld [vmem:[%s321 + $0x60] sm:$0xff]
        %v440 = vld [vmem:[%s321 + $0x68] sm:$0xff]
        %v441 = vld [vmem:[%s321 + $0x70] sm:$0xff]
        %v442 = vld [vmem:[%s321 + $0x78] sm:$0xff]
        %v443 = vld [vmem:[%s321 + $0x80] sm:$0xff]
        %v444 = vld [vmem:[%s321 + $0x88] sm:$0xff]
        %v445 = vld [vmem:[%s321 + $0x90] sm:$0xff]
        %v446 = vld [vmem:[%s321 + $0x98] sm:$0xff]
        %v447 = vld [vmem:[%s321 + $0xa0] sm:$0xff]
        %v448 = vld [vmem:[%s321 + $0xa8] sm:$0xff]
        %v449 = vld [vmem:[%s321 + $0xb0] sm:$0xff]
        %v450 = vld [vmem:[%s321 + $0xb8] sm:$0xff]
        %v451 = vld [vmem:[%s321 + $0xc0] sm:$0xff]
        %v452 = vld [vmem:[%s321 + $0xc8] sm:$0xff]
        %v453 = vld [vmem:[%s321 + $0xd0] sm:$0xff]
        %v454 = vld [vmem:[%s321 + $0xd8] sm:$0xff]
        %v455 = vld [vmem:[%s321 + $0xe0] sm:$0xff]
        %v456 = vld [vmem:[%s321 + $0xe8] sm:$0xff]
        %v457 = vld [vmem:[%s321 + $0xf0] sm:$0xff]
        %v458 = vld [vmem:[%s321 + $0xf8] sm:$0xff]
        %v459 = vld [vmem:[%s321 + $0x100] sm:$0xff]
        %v460 = vld [vmem:[%s321 + $0x108] sm:$0xff]
        %v461 = vld [vmem:[%s321 + $0x110] sm:$0xff]
        %v462 = vld [vmem:[%s321 + $0x118] sm:$0xff]
        %v463 = vld [vmem:[%s321 + $0x120] sm:$0xff]
        %v464 = vld [vmem:[%s321 + $0x128] sm:$0xff]
        %v465 = vld [vmem:[%s321 + $0x130] sm:$0xff]
        %v466 = vld [vmem:[%s321 + $0x138] sm:$0xff]
        %v467 = vld [vmem:[%s321 + $0x140] sm:$0xff]
        %v468 = vld [vmem:[%s321 + $0x148] sm:$0xff]
        %v469 = vld [vmem:[%s321 + $0x150] sm:$0xff]
        %v470 = vld [vmem:[%s321 + $0x158] sm:$0xff]
        %v471 = vld [vmem:[%s321 + $0x160] sm:$0xff]
        %v472 = vld [vmem:[%s321 + $0x168] sm:$0xff]
        %v473 = vld [vmem:[%s321 + $0x170] sm:$0xff]
        %v474 = vld [vmem:[%s321 + $0x178] sm:$0xff]
        %v475 = vadd.f32 %v379, %v427
        %v476 = vadd.f32 %v380, %v428
        %v477 = vadd.f32 %v381, %v429
        %v478 = vadd.f32 %v382, %v430
        %v479 = vadd.f32 %v383, %v431
        %v480 = vadd.f32 %v384, %v432
        %v481 = vadd.f32 %v385, %v433
        %v482 = vadd.f32 %v386, %v434
        %v483 = vadd.f32 %v387, %v435
        %v484 = vadd.f32 %v388, %v436
        %v485 = vadd.f32 %v389, %v437
        %v486 = vadd.f32 %v390, %v438
        %v487 = vadd.f32 %v391, %v439
        %v488 = vadd.f32 %v392, %v440
        %v489 = vadd.f32 %v393, %v441
        %v490 = vadd.f32 %v394, %v442
        %v491 = vadd.f32 %v395, %v443
        %v492 = vadd.f32 %v396, %v444
        %v493 = vadd.f32 %v397, %v445
        %v494 = vadd.f32 %v398, %v446
        %v495 = vadd.f32 %v399, %v447
        %v496 = vadd.f32 %v400, %v448
        %v497 = vadd.f32 %v401, %v449
        %v498 = vadd.f32 %v402, %v450
        %v499 = vadd.f32 %v403, %v451
        %v500 = vadd.f32 %v404, %v452
        %v501 = vadd.f32 %v405, %v453
        %v502 = vadd.f32 %v406, %v454
        %v503 = vadd.f32 %v407, %v455
        %v504 = vadd.f32 %v408, %v456
        %v505 = vadd.f32 %v409, %v457
        %v506 = vadd.f32 %v410, %v458
        %v507 = vadd.f32 %v411, %v459
        %v508 = vadd.f32 %v412, %v460
        %v509 = vadd.f32 %v413, %v461
        %v510 = vadd.f32 %v414, %v462
        %v511 = vadd.f32 %v415, %v463
        %v512 = vadd.f32 %v416, %v464
        %v513 = vadd.f32 %v417, %v465
        %v514 = vadd.f32 %v418, %v466
        %v515 = vadd.f32 %v419, %v467
        %v516 = vadd.f32 %v420, %v468
        %v517 = vadd.f32 %v421, %v469
        %v518 = vadd.f32 %v422, %v470
        %v519 = vadd.f32 %v423, %v471
        %v520 = vadd.f32 %v424, %v472
        %v521 = vadd.f32 %v425, %v473
        %v522 = vadd.f32 %v426, %v474
        %v523 = vadd.f32 %v475, %v476
        %524 = vadd.xlane.f32.xlu0 %v523
        %v525 = vpop.xlane.xlu0 %524
        %v526 = vadd.f32 %v477, %v478
        %527 = vadd.xlane.f32.xlu0 %v526
        %v528 = vpop.xlane.xlu0 %527
        %v529 = vadd.f32 %v479, %v480
        %530 = vadd.xlane.f32.xlu0 %v529
        %v531 = vpop.xlane.xlu0 %530
        %v532 = vadd.f32 %v481, %v482
        %533 = vadd.xlane.f32.xlu0 %v532
        %v534 = vpop.xlane.xlu0 %533
        %v535 = vadd.f32 %v483, %v484
        %536 = vadd.xlane.f32.xlu0 %v535
        %v537 = vpop.xlane.xlu0 %536
        %v538 = vadd.f32 %v485, %v486
        %539 = vadd.xlane.f32.xlu0 %v538
        %v540 = vpop.xlane.xlu0 %539
        %v541 = vadd.f32 %v487, %v488
        %542 = vadd.xlane.f32.xlu0 %v541
        %v543 = vpop.xlane.xlu0 %542
        %v544 = vadd.f32 %v489, %v490
        %545 = vadd.xlane.f32.xlu0 %v544
        %v546 = vpop.xlane.xlu0 %545
        %v547 = vadd.f32 %v491, %v492
        %548 = vadd.xlane.f32.xlu0 %v547
        %v549 = vpop.xlane.xlu0 %548
        %v550 = vadd.f32 %v493, %v494
        %551 = vadd.xlane.f32.xlu0 %v550
        %v552 = vpop.xlane.xlu0 %551
        %v553 = vadd.f32 %v495, %v496
        %554 = vadd.xlane.f32.xlu0 %v553
        %v555 = vpop.xlane.xlu0 %554
        %v556 = vadd.f32 %v497, %v498
        %557 = vadd.xlane.f32.xlu0 %v556
        %v558 = vpop.xlane.xlu0 %557
        %v559 = vadd.f32 %v499, %v500
        %560 = vadd.xlane.f32.xlu0 %v559
        %v561 = vpop.xlane.xlu0 %560
        %v562 = vadd.f32 %v501, %v502
        %563 = vadd.xlane.f32.xlu0 %v562
        %v564 = vpop.xlane.xlu0 %563
        %v565 = vadd.f32 %v503, %v504
        %566 = vadd.xlane.f32.xlu0 %v565
        %v567 = vpop.xlane.xlu0 %566
        %v568 = vadd.f32 %v505, %v506
        %569 = vadd.xlane.f32.xlu0 %v568
        %v570 = vpop.xlane.xlu0 %569
        %v571 = vadd.f32 %v507, %v508
        %572 = vadd.xlane.f32.xlu0 %v571
        %v573 = vpop.xlane.xlu0 %572
        %v574 = vadd.f32 %v509, %v510
        %575 = vadd.xlane.f32.xlu0 %v574
        %v576 = vpop.xlane.xlu0 %575
        %v577 = vadd.f32 %v511, %v512
        %578 = vadd.xlane.f32.xlu0 %v577
        %v579 = vpop.xlane.xlu0 %578
        %v580 = vadd.f32 %v513, %v514
        %581 = vadd.xlane.f32.xlu0 %v580
        %v582 = vpop.xlane.xlu0 %581
        %v583 = vadd.f32 %v515, %v516
        %584 = vadd.xlane.f32.xlu0 %v583
        %v585 = vpop.xlane.xlu0 %584
        %v586 = vadd.f32 %v517, %v518
        %587 = vadd.xlane.f32.xlu0 %v586
        %v588 = vpop.xlane.xlu0 %587
        %v589 = vadd.f32 %v519, %v520
        %590 = vadd.xlane.f32.xlu0 %v589
        %v591 = vpop.xlane.xlu0 %590
        %v592 = vadd.f32 %v521, %v522
        %593 = vadd.xlane.f32.xlu0 %v592
        %v594 = vpop.xlane.xlu0 %593
        %v595 = vmul.f32 %v475, %v475
        %v596 = vmul.f32 %v476, %v476
        %v597 = vmul.f32 %v477, %v477
        %v598 = vmul.f32 %v478, %v478
        %v599 = vmul.f32 %v479, %v479
        %v600 = vmul.f32 %v480, %v480
        %v601 = vmul.f32 %v481, %v481
        %v602 = vmul.f32 %v482, %v482
        %v603 = vmul.f32 %v483, %v483
        %v604 = vmul.f32 %v484, %v484
        %v605 = vmul.f32 %v485, %v485
        %v606 = vmul.f32 %v486, %v486
        %v607 = vmul.f32 %v487, %v487
        %v608 = vmul.f32 %v488, %v488
        %v609 = vmul.f32 %v489, %v489
        %v610 = vmul.f32 %v490, %v490
        %v611 = vmul.f32 %v491, %v491
        %v612 = vmul.f32 %v492, %v492
        %v613 = vmul.f32 %v493, %v493
        %v614 = vmul.f32 %v494, %v494
        %v615 = vmul.f32 %v495, %v495
        %v616 = vmul.f32 %v496, %v496
        %v617 = vmul.f32 %v497, %v497
        %v618 = vmul.f32 %v498, %v498
        %v619 = vmul.f32 %v499, %v499
        %v620 = vmul.f32 %v500, %v500
        %v621 = vmul.f32 %v501, %v501
        %v622 = vmul.f32 %v502, %v502
        %v623 = vmul.f32 %v503, %v503
        %v624 = vmul.f32 %v504, %v504
        %v625 = vmul.f32 %v505, %v505
        %v626 = vmul.f32 %v506, %v506
        %v627 = vmul.f32 %v507, %v507
        %v628 = vmul.f32 %v508, %v508
        %v629 = vmul.f32 %v509, %v509
        %v630 = vmul.f32 %v510, %v510
        %v631 = vmul.f32 %v511, %v511
        %v632 = vmul.f32 %v512, %v512
        %v633 = vmul.f32 %v513, %v513
        %v634 = vmul.f32 %v514, %v514
        %v635 = vmul.f32 %v515, %v515
        %v636 = vmul.f32 %v516, %v516
        %v637 = vmul.f32 %v517, %v517
        %v638 = vmul.f32 %v518, %v518
        %v639 = vmul.f32 %v519, %v519
        %v640 = vmul.f32 %v520, %v520
        %v641 = vmul.f32 %v521, %v521
        %v642 = vmul.f32 %v522, %v522
        %v643 = vadd.f32 %v595, %v596
        %644 = vadd.xlane.f32.xlu0 %v643
        %v645 = vpop.xlane.xlu0 %644
        %v646 = vadd.f32 %v597, %v598
        %647 = vadd.xlane.f32.xlu0 %v646
        %v648 = vpop.xlane.xlu0 %647
        %v649 = vadd.f32 %v599, %v600
        %650 = vadd.xlane.f32.xlu0 %v649
        %v651 = vpop.xlane.xlu0 %650
        %v652 = vadd.f32 %v601, %v602
        %653 = vadd.xlane.f32.xlu0 %v652
        %v654 = vpop.xlane.xlu0 %653
        %v655 = vadd.f32 %v603, %v604
        %656 = vadd.xlane.f32.xlu0 %v655
        %v657 = vpop.xlane.xlu0 %656
        %v658 = vadd.f32 %v605, %v606
        %659 = vadd.xlane.f32.xlu0 %v658
        %v660 = vpop.xlane.xlu0 %659
        %v661 = vadd.f32 %v607, %v608
        %662 = vadd.xlane.f32.xlu0 %v661
        %v663 = vpop.xlane.xlu0 %662
        %v664 = vadd.f32 %v609, %v610
        %665 = vadd.xlane.f32.xlu0 %v664
        %v666 = vpop.xlane.xlu0 %665
        %v667 = vadd.f32 %v611, %v612
        %668 = vadd.xlane.f32.xlu0 %v667
        %v669 = vpop.xlane.xlu0 %668
        %v670 = vadd.f32 %v613, %v614
        %671 = vadd.xlane.f32.xlu0 %v670
        %v672 = vpop.xlane.xlu0 %671
        %v673 = vadd.f32 %v615, %v616
        %674 = vadd.xlane.f32.xlu0 %v673
        %v675 = vpop.xlane.xlu0 %674
        %v676 = vadd.f32 %v617, %v618
        %677 = vadd.xlane.f32.xlu0 %v676
        %v678 = vpop.xlane.xlu0 %677
        %v679 = vadd.f32 %v619, %v620
        %680 = vadd.xlane.f32.xlu0 %v679
        %v681 = vpop.xlane.xlu0 %680
        %v682 = vadd.f32 %v621, %v622
        %683 = vadd.xlane.f32.xlu0 %v682
        %v684 = vpop.xlane.xlu0 %683
        %v685 = vadd.f32 %v623, %v624
        %686 = vadd.xlane.f32.xlu0 %v685
        %v687 = vpop.xlane.xlu0 %686
        %v688 = vadd.f32 %v625, %v626
        %689 = vadd.xlane.f32.xlu0 %v688
        %v690 = vpop.xlane.xlu0 %689
        %v691 = vadd.f32 %v627, %v628
        %692 = vadd.xlane.f32.xlu0 %v691
        %v693 = vpop.xlane.xlu0 %692
        %v694 = vadd.f32 %v629, %v630
        %695 = vadd.xlane.f32.xlu0 %v694
        %v696 = vpop.xlane.xlu0 %695
        %v697 = vadd.f32 %v631, %v632
        %698 = vadd.xlane.f32.xlu0 %v697
        %v699 = vpop.xlane.xlu0 %698
        %v700 = vadd.f32 %v633, %v634
        %701 = vadd.xlane.f32.xlu0 %v700
        %v702 = vpop.xlane.xlu0 %701
        %v703 = vadd.f32 %v635, %v636
        %704 = vadd.xlane.f32.xlu0 %v703
        %v705 = vpop.xlane.xlu0 %704
        %v706 = vadd.f32 %v637, %v638
        %707 = vadd.xlane.f32.xlu0 %v706
        %v708 = vpop.xlane.xlu0 %707
        %v709 = vadd.f32 %v639, %v640
        %710 = vadd.xlane.f32.xlu0 %v709
        %v711 = vpop.xlane.xlu0 %710
        %v712 = vadd.f32 %v641, %v642
        %713 = vadd.xlane.f32.xlu0 %v712
        %v714 = vpop.xlane.xlu0 %713
        %v715 = vmul.f32 %v525, 0.00390625
        %v716 = vmul.f32 %v528, 0.00390625
        %v717 = vmul.f32 %v531, 0.00390625
        %v718 = vmul.f32 %v534, 0.00390625
        %v719 = vmul.f32 %v537, 0.00390625
        %v720 = vmul.f32 %v540, 0.00390625
        %v721 = vmul.f32 %v543, 0.00390625
        %v722 = vmul.f32 %v546, 0.00390625
        %v723 = vmul.f32 %v549, 0.00390625
        %v724 = vmul.f32 %v552, 0.00390625
        %v725 = vmul.f32 %v555, 0.00390625
        %v726 = vmul.f32 %v558, 0.00390625
        %v727 = vmul.f32 %v561, 0.00390625
        %v728 = vmul.f32 %v564, 0.00390625
        %v729 = vmul.f32 %v567, 0.00390625
        %v730 = vmul.f32 %v570, 0.00390625
        %v731 = vmul.f32 %v573, 0.00390625
        %v732 = vmul.f32 %v576, 0.00390625
        %v733 = vmul.f32 %v579, 0.00390625
        %v734 = vmul.f32 %v582, 0.00390625
        %v735 = vmul.f32 %v585, 0.00390625
        %v736 = vmul.f32 %v588, 0.00390625
        %v737 = vmul.f32 %v591, 0.00390625
        %v738 = vmul.f32 %v594, 0.00390625
        %v739 = vmul.f32 %v645, 0.00390625
        %v740 = vmul.f32 %v648, 0.00390625
        %v741 = vmul.f32 %v651, 0.00390625
        %v742 = vmul.f32 %v654, 0.00390625
        %v743 = vmul.f32 %v657, 0.00390625
        %v744 = vmul.f32 %v660, 0.00390625
        %v745 = vmul.f32 %v663, 0.00390625
        %v746 = vmul.f32 %v666, 0.00390625
        %v747 = vmul.f32 %v669, 0.00390625
        %v748 = vmul.f32 %v672, 0.00390625
        %v749 = vmul.f32 %v675, 0.00390625
        %v750 = vmul.f32 %v678, 0.00390625
        %v751 = vmul.f32 %v681, 0.00390625
        %v752 = vmul.f32 %v684, 0.00390625
        %v753 = vmul.f32 %v687, 0.00390625
        %v754 = vmul.f32 %v690, 0.00390625
        %v755 = vmul.f32 %v693, 0.00390625
        %v756 = vmul.f32 %v696, 0.00390625
        %v757 = vmul.f32 %v699, 0.00390625
        %v758 = vmul.f32 %v702, 0.00390625
        %v759 = vmul.f32 %v705, 0.00390625
        %v760 = vmul.f32 %v708, 0.00390625
        %v761 = vmul.f32 %v711, 0.00390625
        %v762 = vmul.f32 %v714, 0.00390625
        %v763 = vmul.f32 %v715, %v715
        %v764 = vmul.f32 %v716, %v716
        %v765 = vmul.f32 %v717, %v717
        %v766 = vmul.f32 %v718, %v718
        %v767 = vmul.f32 %v719, %v719
        %v768 = vmul.f32 %v720, %v720
        %v769 = vmul.f32 %v721, %v721
        %v770 = vmul.f32 %v722, %v722
        %v771 = vmul.f32 %v723, %v723
        %v772 = vmul.f32 %v724, %v724
        %v773 = vmul.f32 %v725, %v725
        %v774 = vmul.f32 %v726, %v726
        %v775 = vmul.f32 %v727, %v727
        %v776 = vmul.f32 %v728, %v728
        %v777 = vmul.f32 %v729, %v729
        %v778 = vmul.f32 %v730, %v730
        %v779 = vmul.f32 %v731, %v731
        %v780 = vmul.f32 %v732, %v732
        %v781 = vmul.f32 %v733, %v733
        %v782 = vmul.f32 %v734, %v734
        %v783 = vmul.f32 %v735, %v735
        %v784 = vmul.f32 %v736, %v736
        %v785 = vmul.f32 %v737, %v737
        %v786 = vmul.f32 %v738, %v738
        %v787 = vsub.f32 %v739, %v763
        %v788 = vsub.f32 %v740, %v764
        %v789 = vsub.f32 %v741, %v765
        %v790 = vsub.f32 %v742, %v766
        %v791 = vsub.f32 %v743, %v767
        %v792 = vsub.f32 %v744, %v768
        %v793 = vsub.f32 %v745, %v769
        %v794 = vsub.f32 %v746, %v770
        %v795 = vsub.f32 %v747, %v771
        %v796 = vsub.f32 %v748, %v772
        %v797 = vsub.f32 %v749, %v773
        %v798 = vsub.f32 %v750, %v774
        %v799 = vsub.f32 %v751, %v775
        %v800 = vsub.f32 %v752, %v776
        %v801 = vsub.f32 %v753, %v777
        %v802 = vsub.f32 %v754, %v778
        %v803 = vsub.f32 %v755, %v779
        %v804 = vsub.f32 %v756, %v780
        %v805 = vsub.f32 %v757, %v781
        %v806 = vsub.f32 %v758, %v782
        %v807 = vsub.f32 %v759, %v783
        %v808 = vsub.f32 %v760, %v784
        %v809 = vsub.f32 %v761, %v785
        %v810 = vsub.f32 %v762, %v786
        %v811 = vadd.f32 %v787, 1e-12
        %v812 = vadd.f32 %v788, 1e-12
        %v813 = vadd.f32 %v789, 1e-12
        %v814 = vadd.f32 %v790, 1e-12
        %v815 = vadd.f32 %v791, 1e-12
        %v816 = vadd.f32 %v792, 1e-12
        %v817 = vadd.f32 %v793, 1e-12
        %v818 = vadd.f32 %v794, 1e-12
        %v819 = vadd.f32 %v795, 1e-12
        %v820 = vadd.f32 %v796, 1e-12
        %v821 = vadd.f32 %v797, 1e-12
        %v822 = vadd.f32 %v798, 1e-12
        %v823 = vadd.f32 %v799, 1e-12
        %v824 = vadd.f32 %v800, 1e-12
        %v825 = vadd.f32 %v801, 1e-12
        %v826 = vadd.f32 %v802, 1e-12
        %v827 = vadd.f32 %v803, 1e-12
        %v828 = vadd.f32 %v804, 1e-12
        %v829 = vadd.f32 %v805, 1e-12
        %v830 = vadd.f32 %v806, 1e-12
        %v831 = vadd.f32 %v807, 1e-12
        %v832 = vadd.f32 %v808, 1e-12
        %v833 = vadd.f32 %v809, 1e-12
        %v834 = vadd.f32 %v810, 1e-12
        %v835 = vrsqrt.pop %v811
        %v836 = vmul.f32 %v835, %v811
        %v837 = vmul.f32 %v836, %v835
        %v838 = vmul.f32 0.5, %v837
        %v839 = vsub.f32 1.5, %v838
        %v840 = vmul.f32 %v835, %v839
        %vm841 = vweird.f32 %v811
        %vm842 = vweird.f32 %v835
        %vm843 = vmor %vm841, %vm842
        %v844 = vsel %vm843, %v835, %v840
        %v845 = vrsqrt.pop %v812
        %v846 = vmul.f32 %v845, %v812
        %v847 = vmul.f32 %v846, %v845
        %v848 = vmul.f32 0.5, %v847
        %v849 = vsub.f32 1.5, %v848
        %v850 = vmul.f32 %v845, %v849
        %vm851 = vweird.f32 %v812
        %vm852 = vweird.f32 %v845
        %vm853 = vmor %vm851, %vm852
        %v854 = vsel %vm853, %v845, %v850
        %v855 = vrsqrt.pop %v813
        %v856 = vmul.f32 %v855, %v813
        %v857 = vmul.f32 %v856, %v855
        %v858 = vmul.f32 0.5, %v857
        %v859 = vsub.f32 1.5, %v858
        %v860 = vmul.f32 %v855, %v859
        %vm861 = vweird.f32 %v813
        %vm862 = vweird.f32 %v855
        %vm863 = vmor %vm861, %vm862
        %v864 = vsel %vm863, %v855, %v860
        %v865 = vrsqrt.pop %v814
        %v866 = vmul.f32 %v865, %v814
        %v867 = vmul.f32 %v866, %v865
        %v868 = vmul.f32 0.5, %v867
        %v869 = vsub.f32 1.5, %v868
        %v870 = vmul.f32 %v865, %v869
        %vm871 = vweird.f32 %v814
        %vm872 = vweird.f32 %v865
        %vm873 = vmor %vm871, %vm872
        %v874 = vsel %vm873, %v865, %v870
        %v875 = vrsqrt.pop %v815
        %v876 = vmul.f32 %v875, %v815
        %v877 = vmul.f32 %v876, %v875
        %v878 = vmul.f32 0.5, %v877
        %v879 = vsub.f32 1.5, %v878
        %v880 = vmul.f32 %v875, %v879
        %vm881 = vweird.f32 %v815
        %vm882 = vweird.f32 %v875
        %vm883 = vmor %vm881, %vm882
        %v884 = vsel %vm883, %v875, %v880
        %v885 = vrsqrt.pop %v816
        %v886 = vmul.f32 %v885, %v816
        %v887 = vmul.f32 %v886, %v885
        %v888 = vmul.f32 0.5, %v887
        %v889 = vsub.f32 1.5, %v888
        %v890 = vmul.f32 %v885, %v889
        %vm891 = vweird.f32 %v816
        %vm892 = vweird.f32 %v885
        %vm893 = vmor %vm891, %vm892
        %v894 = vsel %vm893, %v885, %v890
        %v895 = vrsqrt.pop %v817
        %v896 = vmul.f32 %v895, %v817
        %v897 = vmul.f32 %v896, %v895
        %v898 = vmul.f32 0.5, %v897
        %v899 = vsub.f32 1.5, %v898
        %v900 = vmul.f32 %v895, %v899
        %vm901 = vweird.f32 %v817
        %vm902 = vweird.f32 %v895
        %vm903 = vmor %vm901, %vm902
        %v904 = vsel %vm903, %v895, %v900
        %v905 = vrsqrt.pop %v818
        %v906 = vmul.f32 %v905, %v818
        %v907 = vmul.f32 %v906, %v905
        %v908 = vmul.f32 0.5, %v907
        %v909 = vsub.f32 1.5, %v908
        %v910 = vmul.f32 %v905, %v909
        %vm911 = vweird.f32 %v818
        %vm912 = vweird.f32 %v905
        %vm913 = vmor %vm911, %vm912
        %v914 = vsel %vm913, %v905, %v910
        %v915 = vrsqrt.pop %v819
        %v916 = vmul.f32 %v915, %v819
        %v917 = vmul.f32 %v916, %v915
        %v918 = vmul.f32 0.5, %v917
        %v919 = vsub.f32 1.5, %v918
        %v920 = vmul.f32 %v915, %v919
        %vm921 = vweird.f32 %v819
        %vm922 = vweird.f32 %v915
        %vm923 = vmor %vm921, %vm922
        %v924 = vsel %vm923, %v915, %v920
        %v925 = vrsqrt.pop %v820
        %v926 = vmul.f32 %v925, %v820
        %v927 = vmul.f32 %v926, %v925
        %v928 = vmul.f32 0.5, %v927
        %v929 = vsub.f32 1.5, %v928
        %v930 = vmul.f32 %v925, %v929
        %vm931 = vweird.f32 %v820
        %vm932 = vweird.f32 %v925
        %vm933 = vmor %vm931, %vm932
        %v934 = vsel %vm933, %v925, %v930
        %v935 = vrsqrt.pop %v821
        %v936 = vmul.f32 %v935, %v821
        %v937 = vmul.f32 %v936, %v935
        %v938 = vmul.f32 0.5, %v937
        %v939 = vsub.f32 1.5, %v938
        %v940 = vmul.f32 %v935, %v939
        %vm941 = vweird.f32 %v821
        %vm942 = vweird.f32 %v935
        %vm943 = vmor %vm941, %vm942
        %v944 = vsel %vm943, %v935, %v940
        %v945 = vrsqrt.pop %v822
        %v946 = vmul.f32 %v945, %v822
        %v947 = vmul.f32 %v946, %v945
        %v948 = vmul.f32 0.5, %v947
        %v949 = vsub.f32 1.5, %v948
        %v950 = vmul.f32 %v945, %v949
        %vm951 = vweird.f32 %v822
        %vm952 = vweird.f32 %v945
        %vm953 = vmor %vm951, %vm952
        %v954 = vsel %vm953, %v945, %v950
        %v955 = vrsqrt.pop %v823
        %v956 = vmul.f32 %v955, %v823
        %v957 = vmul.f32 %v956, %v955
        %v958 = vmul.f32 0.5, %v957
        %v959 = vsub.f32 1.5, %v958
        %v960 = vmul.f32 %v955, %v959
        %vm961 = vweird.f32 %v823
        %vm962 = vweird.f32 %v955
        %vm963 = vmor %vm961, %vm962
        %v964 = vsel %vm963, %v955, %v960
        %v965 = vrsqrt.pop %v824
        %v966 = vmul.f32 %v965, %v824
        %v967 = vmul.f32 %v966, %v965
        %v968 = vmul.f32 0.5, %v967
        %v969 = vsub.f32 1.5, %v968
        %v970 = vmul.f32 %v965, %v969
        %vm971 = vweird.f32 %v824
        %vm972 = vweird.f32 %v965
        %vm973 = vmor %vm971, %vm972
        %v974 = vsel %vm973, %v965, %v970
        %v975 = vrsqrt.pop %v825
        %v976 = vmul.f32 %v975, %v825
        %v977 = vmul.f32 %v976, %v975
        %v978 = vmul.f32 0.5, %v977
        %v979 = vsub.f32 1.5, %v978
        %v980 = vmul.f32 %v975, %v979
        %vm981 = vweird.f32 %v825
        %vm982 = vweird.f32 %v975
        %vm983 = vmor %vm981, %vm982
        %v984 = vsel %vm983, %v975, %v980
        %v985 = vrsqrt.pop %v826
        %v986 = vmul.f32 %v985, %v826
        %v987 = vmul.f32 %v986, %v985
        %v988 = vmul.f32 0.5, %v987
        %v989 = vsub.f32 1.5, %v988
        %v990 = vmul.f32 %v985, %v989
        %vm991 = vweird.f32 %v826
        %vm992 = vweird.f32 %v985
        %vm993 = vmor %vm991, %vm992
        %v994 = vsel %vm993, %v985, %v990
        %v995 = vrsqrt.pop %v827
        %v996 = vmul.f32 %v995, %v827
        %v997 = vmul.f32 %v996, %v995
        %v998 = vmul.f32 0.5, %v997
        %v999 = vsub.f32 1.5, %v998
        %v1000 = vmul.f32 %v995, %v999
        %vm1001 = vweird.f32 %v827
        %vm1002 = vweird.f32 %v995
        %vm1003 = vmor %vm1001, %vm1002
        %v1004 = vsel %vm1003, %v995, %v1000
        %v1005 = vrsqrt.pop %v828
        %v1006 = vmul.f32 %v1005, %v828
        %v1007 = vmul.f32 %v1006, %v1005
        %v1008 = vmul.f32 0.5, %v1007
        %v1009 = vsub.f32 1.5, %v1008
        %v1010 = vmul.f32 %v1005, %v1009
        %vm1011 = vweird.f32 %v828
        %vm1012 = vweird.f32 %v1005
        %vm1013 = vmor %vm1011, %vm1012
        %v1014 = vsel %vm1013, %v1005, %v1010
        %v1015 = vrsqrt.pop %v829
        %v1016 = vmul.f32 %v1015, %v829
        %v1017 = vmul.f32 %v1016, %v1015
        %v1018 = vmul.f32 0.5, %v1017
        %v1019 = vsub.f32 1.5, %v1018
        %v1020 = vmul.f32 %v1015, %v1019
        %vm1021 = vweird.f32 %v829
        %vm1022 = vweird.f32 %v1015
        %vm1023 = vmor %vm1021, %vm1022
        %v1024 = vsel %vm1023, %v1015, %v1020
        %v1025 = vrsqrt.pop %v830
        %v1026 = vmul.f32 %v1025, %v830
        %v1027 = vmul.f32 %v1026, %v1025
        %v1028 = vmul.f32 0.5, %v1027
        %v1029 = vsub.f32 1.5, %v1028
        %v1030 = vmul.f32 %v1025, %v1029
        %vm1031 = vweird.f32 %v830
        %vm1032 = vweird.f32 %v1025
        %vm1033 = vmor %vm1031, %vm1032
        %v1034 = vsel %vm1033, %v1025, %v1030
        %v1035 = vrsqrt.pop %v831
        %v1036 = vmul.f32 %v1035, %v831
        %v1037 = vmul.f32 %v1036, %v1035
        %v1038 = vmul.f32 0.5, %v1037
        %v1039 = vsub.f32 1.5, %v1038
        %v1040 = vmul.f32 %v1035, %v1039
        %vm1041 = vweird.f32 %v831
        %vm1042 = vweird.f32 %v1035
        %vm1043 = vmor %vm1041, %vm1042
        %v1044 = vsel %vm1043, %v1035, %v1040
        %v1045 = vrsqrt.pop %v832
        %v1046 = vmul.f32 %v1045, %v832
        %v1047 = vmul.f32 %v1046, %v1045
        %v1048 = vmul.f32 0.5, %v1047
        %v1049 = vsub.f32 1.5, %v1048
        %v1050 = vmul.f32 %v1045, %v1049
        %vm1051 = vweird.f32 %v832
        %vm1052 = vweird.f32 %v1045
        %vm1053 = vmor %vm1051, %vm1052
        %v1054 = vsel %vm1053, %v1045, %v1050
        %v1055 = vrsqrt.pop %v833
        %v1056 = vmul.f32 %v1055, %v833
        %v1057 = vmul.f32 %v1056, %v1055
        %v1058 = vmul.f32 0.5, %v1057
        %v1059 = vsub.f32 1.5, %v1058
        %v1060 = vmul.f32 %v1055, %v1059
        %vm1061 = vweird.f32 %v833
        %vm1062 = vweird.f32 %v1055
        %vm1063 = vmor %vm1061, %vm1062
        %v1064 = vsel %vm1063, %v1055, %v1060
        %v1065 = vrsqrt.pop %v834
        %v1066 = vmul.f32 %v1065, %v834
        %v1067 = vmul.f32 %v1066, %v1065
        %v1068 = vmul.f32 0.5, %v1067
        %v1069 = vsub.f32 1.5, %v1068
        %v1070 = vmul.f32 %v1065, %v1069
        %vm1071 = vweird.f32 %v834
        %vm1072 = vweird.f32 %v1065
        %vm1073 = vmor %vm1071, %vm1072
        %v1074 = vsel %vm1073, %v1065, %v1070
        %v1075 = vsub.f32 %v475, %v715
        %v1076 = vsub.f32 %v476, %v715
        %v1077 = vsub.f32 %v477, %v716
        %v1078 = vsub.f32 %v478, %v716
        %v1079 = vsub.f32 %v479, %v717
        %v1080 = vsub.f32 %v480, %v717
        %v1081 = vsub.f32 %v481, %v718
        %v1082 = vsub.f32 %v482, %v718
        %v1083 = vsub.f32 %v483, %v719
        %v1084 = vsub.f32 %v484, %v719
        %v1085 = vsub.f32 %v485, %v720
        %v1086 = vsub.f32 %v486, %v720
        %v1087 = vsub.f32 %v487, %v721
        %v1088 = vsub.f32 %v488, %v721
        %v1089 = vsub.f32 %v489, %v722
        %v1090 = vsub.f32 %v490, %v722
        %v1091 = vsub.f32 %v491, %v723
        %v1092 = vsub.f32 %v492, %v723
        %v1093 = vsub.f32 %v493, %v724
        %v1094 = vsub.f32 %v494, %v724
        %v1095 = vsub.f32 %v495, %v725
        %v1096 = vsub.f32 %v496, %v725
        %v1097 = vsub.f32 %v497, %v726
        %v1098 = vsub.f32 %v498, %v726
        %v1099 = vsub.f32 %v499, %v727
        %v1100 = vsub.f32 %v500, %v727
        %v1101 = vsub.f32 %v501, %v728
        %v1102 = vsub.f32 %v502, %v728
        %v1103 = vsub.f32 %v503, %v729
        %v1104 = vsub.f32 %v504, %v729
        %v1105 = vsub.f32 %v505, %v730
        %v1106 = vsub.f32 %v506, %v730
        %v1107 = vsub.f32 %v507, %v731
        %v1108 = vsub.f32 %v508, %v731
        %v1109 = vsub.f32 %v509, %v732
        %v1110 = vsub.f32 %v510, %v732
        %v1111 = vsub.f32 %v511, %v733
        %v1112 = vsub.f32 %v512, %v733
        %v1113 = vsub.f32 %v513, %v734
        %v1114 = vsub.f32 %v514, %v734
        %v1115 = vsub.f32 %v515, %v735
        %v1116 = vsub.f32 %v516, %v735
        %v1117 = vsub.f32 %v517, %v736
        %v1118 = vsub.f32 %v518, %v736
        %v1119 = vsub.f32 %v519, %v737
        %v1120 = vsub.f32 %v520, %v737
        %v1121 = vsub.f32 %v521, %v738
        %v1122 = vsub.f32 %v522, %v738
        %v1123 = vmul.f32 %v1075, %v844
        %v1124 = vmul.f32 %v1076, %v844
        %v1125 = vmul.f32 %v1077, %v854
        %v1126 = vmul.f32 %v1078, %v854
        %v1127 = vmul.f32 %v1079, %v864
        %v1128 = vmul.f32 %v1080, %v864
        %v1129 = vmul.f32 %v1081, %v874
        %v1130 = vmul.f32 %v1082, %v874
        %v1131 = vmul.f32 %v1083, %v884
        %v1132 = vmul.f32 %v1084, %v884
        %v1133 = vmul.f32 %v1085, %v894
        %v1134 = vmul.f32 %v1086, %v894
        %v1135 = vmul.f32 %v1087, %v904
        %v1136 = vmul.f32 %v1088, %v904
        %v1137 = vmul.f32 %v1089, %v914
        %v1138 = vmul.f32 %v1090, %v914
        %v1139 = vmul.f32 %v1091, %v924
        %v1140 = vmul.f32 %v1092, %v924
        %v1141 = vmul.f32 %v1093, %v934
        %v1142 = vmul.f32 %v1094, %v934
        %v1143 = vmul.f32 %v1095, %v944
        %v1144 = vmul.f32 %v1096, %v944
        %v1145 = vmul.f32 %v1097, %v954
        %v1146 = vmul.f32 %v1098, %v954
        %v1147 = vmul.f32 %v1099, %v964
        %v1148 = vmul.f32 %v1100, %v964
        %v1149 = vmul.f32 %v1101, %v974
        %v1150 = vmul.f32 %v1102, %v974
        %v1151 = vmul.f32 %v1103, %v984
        %v1152 = vmul.f32 %v1104, %v984
        %v1153 = vmul.f32 %v1105, %v994
        %v1154 = vmul.f32 %v1106, %v994
        %v1155 = vmul.f32 %v1107, %v1004
        %v1156 = vmul.f32 %v1108, %v1004
        %v1157 = vmul.f32 %v1109, %v1014
        %v1158 = vmul.f32 %v1110, %v1014
        %v1159 = vmul.f32 %v1111, %v1024
        %v1160 = vmul.f32 %v1112, %v1024
        %v1161 = vmul.f32 %v1113, %v1034
        %v1162 = vmul.f32 %v1114, %v1034
        %v1163 = vmul.f32 %v1115, %v1044
        %v1164 = vmul.f32 %v1116, %v1044
        %v1165 = vmul.f32 %v1117, %v1054
        %v1166 = vmul.f32 %v1118, %v1054
        %v1167 = vmul.f32 %v1119, %v1064
        %v1168 = vmul.f32 %v1120, %v1064
        %v1169 = vmul.f32 %v1121, %v1074
        %v1170 = vmul.f32 %v1122, %v1074
        %v1171 = vld [vmem:[#allocation7] sm:$0x3]
        %v1173 = vperm.slane %v1171, 0
        %v1174 = vperm.slane %v1171, 1
        %v1177 = vmul.f32 %v1123, %v1173
        %v1178 = vmul.f32 %v1124, %v1174
        %v1179 = vmul.f32 %v1125, %v1173
        %v1180 = vmul.f32 %v1126, %v1174
        %v1181 = vmul.f32 %v1127, %v1173
        %v1182 = vmul.f32 %v1128, %v1174
        %v1183 = vmul.f32 %v1129, %v1173
        %v1184 = vmul.f32 %v1130, %v1174
        %v1185 = vmul.f32 %v1131, %v1173
        %v1186 = vmul.f32 %v1132, %v1174
        %v1187 = vmul.f32 %v1133, %v1173
        %v1188 = vmul.f32 %v1134, %v1174
        %v1189 = vmul.f32 %v1135, %v1173
        %v1190 = vmul.f32 %v1136, %v1174
        %v1191 = vmul.f32 %v1137, %v1173
        %v1192 = vmul.f32 %v1138, %v1174
        %v1193 = vmul.f32 %v1139, %v1173
        %v1194 = vmul.f32 %v1140, %v1174
        %v1195 = vmul.f32 %v1141, %v1173
        %v1196 = vmul.f32 %v1142, %v1174
        %v1197 = vmul.f32 %v1143, %v1173
        %v1198 = vmul.f32 %v1144, %v1174
        %v1199 = vmul.f32 %v1145, %v1173
        %v1200 = vmul.f32 %v1146, %v1174
        %v1201 = vmul.f32 %v1147, %v1173
        %v1202 = vmul.f32 %v1148, %v1174
        %v1203 = vmul.f32 %v1149, %v1173
        %v1204 = vmul.f32 %v1150, %v1174
        %v1205 = vmul.f32 %v1151, %v1173
        %v1206 = vmul.f32 %v1152, %v1174
        %v1207 = vmul.f32 %v1153, %v1173
        %v1208 = vmul.f32 %v1154, %v1174
        %v1209 = vmul.f32 %v1155, %v1173
        %v1210 = vmul.f32 %v1156, %v1174
        %v1211 = vmul.f32 %v1157, %v1173
        %v1212 = vmul.f32 %v1158, %v1174
        %v1213 = vmul.f32 %v1159, %v1173
        %v1214 = vmul.f32 %v1160, %v1174
        %v1215 = vmul.f32 %v1161, %v1173
        %v1216 = vmul.f32 %v1162, %v1174
        %v1217 = vmul.f32 %v1163, %v1173
        %v1218 = vmul.f32 %v1164, %v1174
        %v1219 = vmul.f32 %v1165, %v1173
        %v1220 = vmul.f32 %v1166, %v1174
        %v1221 = vmul.f32 %v1167, %v1173
        %v1222 = vmul.f32 %v1168, %v1174
        %v1223 = vmul.f32 %v1169, %v1173
        %v1224 = vmul.f32 %v1170, %v1174
        %v1225 = vld [vmem:[#allocation8] sm:$0x3]
        %v1227 = vperm.slane %v1225, 0
        %v1228 = vperm.slane %v1225, 1
        %v1231 = vadd.f32 %v1177, %v1227
        %v1232 = vadd.f32 %v1178, %v1228
        %v1233 = vadd.f32 %v1179, %v1227
        %v1234 = vadd.f32 %v1180, %v1228
        %v1235 = vadd.f32 %v1181, %v1227
        %v1236 = vadd.f32 %v1182, %v1228
        %v1237 = vadd.f32 %v1183, %v1227
        %v1238 = vadd.f32 %v1184, %v1228
        %v1239 = vadd.f32 %v1185, %v1227
        %v1240 = vadd.f32 %v1186, %v1228
        %v1241 = vadd.f32 %v1187, %v1227
        %v1242 = vadd.f32 %v1188, %v1228
        %v1243 = vadd.f32 %v1189, %v1227
        %v1244 = vadd.f32 %v1190, %v1228
        %v1245 = vadd.f32 %v1191, %v1227
        %v1246 = vadd.f32 %v1192, %v1228
        %v1247 = vadd.f32 %v1193, %v1227
        %v1248 = vadd.f32 %v1194, %v1228
        %v1249 = vadd.f32 %v1195, %v1227
        %v1250 = vadd.f32 %v1196, %v1228
        %v1251 = vadd.f32 %v1197, %v1227
        %v1252 = vadd.f32 %v1198, %v1228
        %v1253 = vadd.f32 %v1199, %v1227
        %v1254 = vadd.f32 %v1200, %v1228
        %v1255 = vadd.f32 %v1201, %v1227
        %v1256 = vadd.f32 %v1202, %v1228
        %v1257 = vadd.f32 %v1203, %v1227
        %v1258 = vadd.f32 %v1204, %v1228
        %v1259 = vadd.f32 %v1205, %v1227
        %v1260 = vadd.f32 %v1206, %v1228
        %v1261 = vadd.f32 %v1207, %v1227
        %v1262 = vadd.f32 %v1208, %v1228
        %v1263 = vadd.f32 %v1209, %v1227
        %v1264 = vadd.f32 %v1210, %v1228
        %v1265 = vadd.f32 %v1211, %v1227
        %v1266 = vadd.f32 %v1212, %v1228
        %v1267 = vadd.f32 %v1213, %v1227
        %v1268 = vadd.f32 %v1214, %v1228
        %v1269 = vadd.f32 %v1215, %v1227
        %v1270 = vadd.f32 %v1216, %v1228
        %v1271 = vadd.f32 %v1217, %v1227
        %v1272 = vadd.f32 %v1218, %v1228
        %v1273 = vadd.f32 %v1219, %v1227
        %v1274 = vadd.f32 %v1220, %v1228
        %v1275 = vadd.f32 %v1221, %v1227
        %v1276 = vadd.f32 %v1222, %v1228
        %v1277 = vadd.f32 %v1223, %v1227
        %v1278 = vadd.f32 %v1224, %v1228
        %v1279 = vpack.c.bf16 %v1233, %v1231
        %v1280 = vpack.c.bf16 %v1234, %v1232
        %v1281 = vpack.c.bf16 %v1237, %v1235
        %v1282 = vpack.c.bf16 %v1238, %v1236
        %v1283 = vpack.c.bf16 %v1241, %v1239
        %v1284 = vpack.c.bf16 %v1242, %v1240
        %v1285 = vpack.c.bf16 %v1245, %v1243
        %v1286 = vpack.c.bf16 %v1246, %v1244
        %v1287 = vpack.c.bf16 %v1249, %v1247
        %v1288 = vpack.c.bf16 %v1250, %v1248
        %v1289 = vpack.c.bf16 %v1253, %v1251
        %v1290 = vpack.c.bf16 %v1254, %v1252
        %v1291 = vpack.c.bf16 %v1257, %v1255
        %v1292 = vpack.c.bf16 %v1258, %v1256
        %v1293 = vpack.c.bf16 %v1261, %v1259
        %v1294 = vpack.c.bf16 %v1262, %v1260
        %v1295 = vpack.c.bf16 %v1265, %v1263
        %v1296 = vpack.c.bf16 %v1266, %v1264
        %v1297 = vpack.c.bf16 %v1269, %v1267
        %v1298 = vpack.c.bf16 %v1270, %v1268
        %v1299 = vpack.c.bf16 %v1273, %v1271
        %v1300 = vpack.c.bf16 %v1274, %v1272
        %v1301 = vpack.c.bf16 %v1277, %v1275
        %v1302 = vpack.c.bf16 %v1278, %v1276
        %v1303 = vld [vmem:[#allocation10] sm:$0xff]
        %v1304 = vld [vmem:[#allocation10 + $0x8] sm:$0xff]
        %v1305 = vld [vmem:[#allocation10 + $0x10] sm:$0xff]
        %v1306 = vld [vmem:[#allocation10 + $0x18] sm:$0xff]
        %v1307 = vld [vmem:[#allocation10 + $0x20] sm:$0xff]
        %v1308 = vld [vmem:[#allocation10 + $0x28] sm:$0xff]
        %v1309 = vld [vmem:[#allocation10 + $0x30] sm:$0xff]
        %v1310 = vld [vmem:[#allocation10 + $0x38] sm:$0xff]
        %v1311 = vld [vmem:[#allocation10 + $0x40] sm:$0xff]
        %v1312 = vld [vmem:[#allocation10 + $0x48] sm:$0xff]
        %v1313 = vld [vmem:[#allocation10 + $0x50] sm:$0xff]
        %v1314 = vld [vmem:[#allocation10 + $0x58] sm:$0xff]
        %v1315 = vld [vmem:[#allocation10 + $0x60] sm:$0xff]
        %v1316 = vld [vmem:[#allocation10 + $0x68] sm:$0xff]
        %v1317 = vld [vmem:[#allocation10 + $0x70] sm:$0xff]
        %v1318 = vld [vmem:[#allocation10 + $0x78] sm:$0xff]
        %v1319 = vld [vmem:[#allocation10 + $0x80] sm:$0xff]
        %v1320 = vld [vmem:[#allocation10 + $0x88] sm:$0xff]
        %v1321 = vld [vmem:[#allocation10 + $0x90] sm:$0xff]
        %v1322 = vld [vmem:[#allocation10 + $0x98] sm:$0xff]
        %v1323 = vld [vmem:[#allocation10 + $0xa0] sm:$0xff]
        %v1324 = vld [vmem:[#allocation10 + $0xa8] sm:$0xff]
        %v1325 = vld [vmem:[#allocation10 + $0xb0] sm:$0xff]
        %v1326 = vld [vmem:[#allocation10 + $0xb8] sm:$0xff]
        %v1327 = vld [vmem:[#allocation10 + $0xc0] sm:$0xff]
        %v1328 = vld [vmem:[#allocation10 + $0xc8] sm:$0xff]
        %v1329 = vld [vmem:[#allocation10 + $0xd0] sm:$0xff]
        %v1330 = vld [vmem:[#allocation10 + $0xd8] sm:$0xff]
        %v1331 = vld [vmem:[#allocation10 + $0xe0] sm:$0xff]
        %v1332 = vld [vmem:[#allocation10 + $0xe8] sm:$0xff]
        %v1333 = vld [vmem:[#allocation10 + $0xf0] sm:$0xff]
        %v1334 = vld [vmem:[#allocation10 + $0xf8] sm:$0xff]
        %v1335 = vld [vmem:[#allocation10 + $0x100] sm:$0xff]
        %v1336 = vld [vmem:[#allocation10 + $0x108] sm:$0xff]
        %v1337 = vld [vmem:[#allocation10 + $0x110] sm:$0xff]
        %v1338 = vld [vmem:[#allocation10 + $0x118] sm:$0xff]
        %v1339 = vld [vmem:[#allocation10 + $0x120] sm:$0xff]
        %v1340 = vld [vmem:[#allocation10 + $0x128] sm:$0xff]
        %v1341 = vld [vmem:[#allocation10 + $0x130] sm:$0xff]
        %v1342 = vld [vmem:[#allocation10 + $0x138] sm:$0xff]
        %v1343 = vld [vmem:[#allocation10 + $0x140] sm:$0xff]
        %v1344 = vld [vmem:[#allocation10 + $0x148] sm:$0xff]
        %v1345 = vld [vmem:[#allocation10 + $0x150] sm:$0xff]
        %v1346 = vld [vmem:[#allocation10 + $0x158] sm:$0xff]
        %v1347 = vld [vmem:[#allocation10 + $0x160] sm:$0xff]
        %v1348 = vld [vmem:[#allocation10 + $0x168] sm:$0xff]
        %v1349 = vld [vmem:[#allocation10 + $0x170] sm:$0xff]
        %v1350 = vld [vmem:[#allocation10 + $0x178] sm:$0xff]
        %v1351 = vld [vmem:[#allocation10 + $0x180] sm:$0xff]
        %v1352 = vld [vmem:[#allocation10 + $0x188] sm:$0xff]
        %v1353 = vld [vmem:[#allocation10 + $0x190] sm:$0xff]
        %v1354 = vld [vmem:[#allocation10 + $0x198] sm:$0xff]
        %v1355 = vld [vmem:[#allocation10 + $0x1a0] sm:$0xff]
        %v1356 = vld [vmem:[#allocation10 + $0x1a8] sm:$0xff]
        %v1357 = vld [vmem:[#allocation10 + $0x1b0] sm:$0xff]
        %v1358 = vld [vmem:[#allocation10 + $0x1b8] sm:$0xff]
        %v1359 = vld [vmem:[#allocation10 + $0x1c0] sm:$0xff]
        %v1360 = vld [vmem:[#allocation10 + $0x1c8] sm:$0xff]
        %v1361 = vld [vmem:[#allocation10 + $0x1d0] sm:$0xff]
        %v1362 = vld [vmem:[#allocation10 + $0x1d8] sm:$0xff]
        %v1363 = vld [vmem:[#allocation10 + $0x1e0] sm:$0xff]
        %v1364 = vld [vmem:[#allocation10 + $0x1e8] sm:$0xff]
        %v1365 = vld [vmem:[#allocation10 + $0x1f0] sm:$0xff]
        %v1366 = vld [vmem:[#allocation10 + $0x1f8] sm:$0xff]
        %v1367 = vld [vmem:[#allocation10 + $0x200] sm:$0xff]
        %v1368 = vld [vmem:[#allocation10 + $0x208] sm:$0xff]
        %v1369 = vld [vmem:[#allocation10 + $0x210] sm:$0xff]
        %v1370 = vld [vmem:[#allocation10 + $0x218] sm:$0xff]
        %v1371 = vld [vmem:[#allocation10 + $0x220] sm:$0xff]
        %v1372 = vld [vmem:[#allocation10 + $0x228] sm:$0xff]
        %v1373 = vld [vmem:[#allocation10 + $0x230] sm:$0xff]
        %v1374 = vld [vmem:[#allocation10 + $0x238] sm:$0xff]
        %v1375 = vld [vmem:[#allocation10 + $0x240] sm:$0xff]
        %v1376 = vld [vmem:[#allocation10 + $0x248] sm:$0xff]
        %v1377 = vld [vmem:[#allocation10 + $0x250] sm:$0xff]
        %v1378 = vld [vmem:[#allocation10 + $0x258] sm:$0xff]
        %v1379 = vld [vmem:[#allocation10 + $0x260] sm:$0xff]
        %v1380 = vld [vmem:[#allocation10 + $0x268] sm:$0xff]
        %v1381 = vld [vmem:[#allocation10 + $0x270] sm:$0xff]
        %v1382 = vld [vmem:[#allocation10 + $0x278] sm:$0xff]
        %v1383 = vld [vmem:[#allocation10 + $0x280] sm:$0xff]
        %v1384 = vld [vmem:[#allocation10 + $0x288] sm:$0xff]
        %v1385 = vld [vmem:[#allocation10 + $0x290] sm:$0xff]
        %v1386 = vld [vmem:[#allocation10 + $0x298] sm:$0xff]
        %v1387 = vld [vmem:[#allocation10 + $0x2a0] sm:$0xff]
        %v1388 = vld [vmem:[#allocation10 + $0x2a8] sm:$0xff]
        %v1389 = vld [vmem:[#allocation10 + $0x2b0] sm:$0xff]
        %v1390 = vld [vmem:[#allocation10 + $0x2b8] sm:$0xff]
        %v1391 = vld [vmem:[#allocation10 + $0x2c0] sm:$0xff]
        %v1392 = vld [vmem:[#allocation10 + $0x2c8] sm:$0xff]
        %v1393 = vld [vmem:[#allocation10 + $0x2d0] sm:$0xff]
        %v1394 = vld [vmem:[#allocation10 + $0x2d8] sm:$0xff]
        %v1395 = vld [vmem:[#allocation10 + $0x2e0] sm:$0xff]
        %v1396 = vld [vmem:[#allocation10 + $0x2e8] sm:$0xff]
        %v1397 = vld [vmem:[#allocation10 + $0x2f0] sm:$0xff]
        %v1398 = vld [vmem:[#allocation10 + $0x2f8] sm:$0xff]
        %v1399 = vld [vmem:[#allocation10 + $0x300] sm:$0xff]
        %v1400 = vld [vmem:[#allocation10 + $0x308] sm:$0xff]
        %v1401 = vld [vmem:[#allocation10 + $0x310] sm:$0xff]
        %v1402 = vld [vmem:[#allocation10 + $0x318] sm:$0xff]
        %v1403 = vld [vmem:[#allocation10 + $0x320] sm:$0xff]
        %v1404 = vld [vmem:[#allocation10 + $0x328] sm:$0xff]
        %v1405 = vld [vmem:[#allocation10 + $0x330] sm:$0xff]
        %v1406 = vld [vmem:[#allocation10 + $0x338] sm:$0xff]
        %v1407 = vld [vmem:[#allocation10 + $0x340] sm:$0xff]
        %v1408 = vld [vmem:[#allocation10 + $0x348] sm:$0xff]
        %v1409 = vld [vmem:[#allocation10 + $0x350] sm:$0xff]
        %v1410 = vld [vmem:[#allocation10 + $0x358] sm:$0xff]
        %v1411 = vld [vmem:[#allocation10 + $0x360] sm:$0xff]
        %v1412 = vld [vmem:[#allocation10 + $0x368] sm:$0xff]
        %v1413 = vld [vmem:[#allocation10 + $0x370] sm:$0xff]
        %v1414 = vld [vmem:[#allocation10 + $0x378] sm:$0xff]
        %v1415 = vld [vmem:[#allocation10 + $0x380] sm:$0xff]
        %v1416 = vld [vmem:[#allocation10 + $0x388] sm:$0xff]
        %v1417 = vld [vmem:[#allocation10 + $0x390] sm:$0xff]
        %v1418 = vld [vmem:[#allocation10 + $0x398] sm:$0xff]
        %v1419 = vld [vmem:[#allocation10 + $0x3a0] sm:$0xff]
        %v1420 = vld [vmem:[#allocation10 + $0x3a8] sm:$0xff]
        %v1421 = vld [vmem:[#allocation10 + $0x3b0] sm:$0xff]
        %v1422 = vld [vmem:[#allocation10 + $0x3b8] sm:$0xff]
        %v1423 = vld [vmem:[#allocation10 + $0x3c0] sm:$0xff]
        %v1424 = vld [vmem:[#allocation10 + $0x3c8] sm:$0xff]
        %v1425 = vld [vmem:[#allocation10 + $0x3d0] sm:$0xff]
        %v1426 = vld [vmem:[#allocation10 + $0x3d8] sm:$0xff]
        %v1427 = vld [vmem:[#allocation10 + $0x3e0] sm:$0xff]
        %v1428 = vld [vmem:[#allocation10 + $0x3e8] sm:$0xff]
        %v1429 = vld [vmem:[#allocation10 + $0x3f0] sm:$0xff]
        %v1430 = vld [vmem:[#allocation10 + $0x3f8] sm:$0xff]
        %v1431 = vld [vmem:[#allocation11] sm:$0xff]
        %v1433 = vperm.slane %v1431, 0
        %v1434 = vperm.slane %v1431, 1
        %v1435 = vperm.slane %v1431, 2
        %v1436 = vperm.slane %v1431, 3
        %v1437 = vperm.slane %v1431, 4
        %v1438 = vperm.slane %v1431, 5
        %v1439 = vperm.slane %v1431, 6
        %v1440 = vperm.slane %v1431, 7
        %v1577 = vunpack.c.l.b16 %v1303
        %v1578 = vunpack.c.h.b16 %v1303
        %v1579 = vunpack.c.l.b16 %v1304
        %v1580 = vunpack.c.h.b16 %v1304
        %v1581 = vunpack.c.l.b16 %v1305
        %v1582 = vunpack.c.h.b16 %v1305
        %v1583 = vunpack.c.l.b16 %v1306
        %v1584 = vunpack.c.h.b16 %v1306
        %v1585 = vunpack.c.l.b16 %v1307
        %v1586 = vunpack.c.h.b16 %v1307
        %v1587 = vunpack.c.l.b16 %v1308
        %v1588 = vunpack.c.h.b16 %v1308
        %v1589 = vunpack.c.l.b16 %v1309
        %v1590 = vunpack.c.h.b16 %v1309
        %v1591 = vunpack.c.l.b16 %v1310
        %v1592 = vunpack.c.h.b16 %v1310
        %v1593 = vunpack.c.l.b16 %v1311
        %v1594 = vunpack.c.h.b16 %v1311
        %v1595 = vunpack.c.l.b16 %v1312
        %v1596 = vunpack.c.h.b16 %v1312
        %v1597 = vunpack.c.l.b16 %v1313
        %v1598 = vunpack.c.h.b16 %v1313
        %v1599 = vunpack.c.l.b16 %v1314
        %v1600 = vunpack.c.h.b16 %v1314
        %v1601 = vunpack.c.l.b16 %v1315
        %v1602 = vunpack.c.h.b16 %v1315
        %v1603 = vunpack.c.l.b16 %v1316
        %v1604 = vunpack.c.h.b16 %v1316
        %v1605 = vunpack.c.l.b16 %v1317
        %v1606 = vunpack.c.h.b16 %v1317
        %v1607 = vunpack.c.l.b16 %v1318
        %v1608 = vunpack.c.h.b16 %v1318
        %v1609 = vunpack.c.l.b16 %v1319
        %v1610 = vunpack.c.h.b16 %v1319
        %v1611 = vunpack.c.l.b16 %v1320
        %v1612 = vunpack.c.h.b16 %v1320
        %v1613 = vunpack.c.l.b16 %v1321
        %v1614 = vunpack.c.h.b16 %v1321
        %v1615 = vunpack.c.l.b16 %v1322
        %v1616 = vunpack.c.h.b16 %v1322
        %v1617 = vunpack.c.l.b16 %v1323
        %v1618 = vunpack.c.h.b16 %v1323
        %v1619 = vunpack.c.l.b16 %v1324
        %v1620 = vunpack.c.h.b16 %v1324
        %v1621 = vunpack.c.l.b16 %v1325
        %v1622 = vunpack.c.h.b16 %v1325
        %v1623 = vunpack.c.l.b16 %v1326
        %v1624 = vunpack.c.h.b16 %v1326
        %v1625 = vunpack.c.l.b16 %v1327
        %v1626 = vunpack.c.h.b16 %v1327
        %v1627 = vunpack.c.l.b16 %v1328
        %v1628 = vunpack.c.h.b16 %v1328
        %v1629 = vunpack.c.l.b16 %v1329
        %v1630 = vunpack.c.h.b16 %v1329
        %v1631 = vunpack.c.l.b16 %v1330
        %v1632 = vunpack.c.h.b16 %v1330
        %v1633 = vunpack.c.l.b16 %v1331
        %v1634 = vunpack.c.h.b16 %v1331
        %v1635 = vunpack.c.l.b16 %v1332
        %v1636 = vunpack.c.h.b16 %v1332
        %v1637 = vunpack.c.l.b16 %v1333
        %v1638 = vunpack.c.h.b16 %v1333
        %v1639 = vunpack.c.l.b16 %v1334
        %v1640 = vunpack.c.h.b16 %v1334
        %v1641 = vunpack.c.l.b16 %v1335
        %v1642 = vunpack.c.h.b16 %v1335
        %v1643 = vunpack.c.l.b16 %v1336
        %v1644 = vunpack.c.h.b16 %v1336
        %v1645 = vunpack.c.l.b16 %v1337
        %v1646 = vunpack.c.h.b16 %v1337
        %v1647 = vunpack.c.l.b16 %v1338
        %v1648 = vunpack.c.h.b16 %v1338
        %v1649 = vunpack.c.l.b16 %v1339
        %v1650 = vunpack.c.h.b16 %v1339
        %v1651 = vunpack.c.l.b16 %v1340
        %v1652 = vunpack.c.h.b16 %v1340
        %v1653 = vunpack.c.l.b16 %v1341
        %v1654 = vunpack.c.h.b16 %v1341
        %v1655 = vunpack.c.l.b16 %v1342
        %v1656 = vunpack.c.h.b16 %v1342
        %v1657 = vunpack.c.l.b16 %v1343
        %v1658 = vunpack.c.h.b16 %v1343
        %v1659 = vunpack.c.l.b16 %v1344
        %v1660 = vunpack.c.h.b16 %v1344
        %v1661 = vunpack.c.l.b16 %v1345
        %v1662 = vunpack.c.h.b16 %v1345
        %v1663 = vunpack.c.l.b16 %v1346
        %v1664 = vunpack.c.h.b16 %v1346
        %v1665 = vunpack.c.l.b16 %v1347
        %v1666 = vunpack.c.h.b16 %v1347
        %v1667 = vunpack.c.l.b16 %v1348
        %v1668 = vunpack.c.h.b16 %v1348
        %v1669 = vunpack.c.l.b16 %v1349
        %v1670 = vunpack.c.h.b16 %v1349
        %v1671 = vunpack.c.l.b16 %v1350
        %v1672 = vunpack.c.h.b16 %v1350
        %v1673 = vunpack.c.l.b16 %v1351
        %v1674 = vunpack.c.h.b16 %v1351
        %v1675 = vunpack.c.l.b16 %v1352
        %v1676 = vunpack.c.h.b16 %v1352
        %v1677 = vunpack.c.l.b16 %v1353
        %v1678 = vunpack.c.h.b16 %v1353
        %v1679 = vunpack.c.l.b16 %v1354
        %v1680 = vunpack.c.h.b16 %v1354
        %v1681 = vunpack.c.l.b16 %v1355
        %v1682 = vunpack.c.h.b16 %v1355
        %v1683 = vunpack.c.l.b16 %v1356
        %v1684 = vunpack.c.h.b16 %v1356
        %v1685 = vunpack.c.l.b16 %v1357
        %v1686 = vunpack.c.h.b16 %v1357
        %v1687 = vunpack.c.l.b16 %v1358
        %v1688 = vunpack.c.h.b16 %v1358
        %v1689 = vunpack.c.l.b16 %v1359
        %v1690 = vunpack.c.h.b16 %v1359
        %v1691 = vunpack.c.l.b16 %v1360
        %v1692 = vunpack.c.h.b16 %v1360
        %v1693 = vunpack.c.l.b16 %v1361
        %v1694 = vunpack.c.h.b16 %v1361
        %v1695 = vunpack.c.l.b16 %v1362
        %v1696 = vunpack.c.h.b16 %v1362
        %v1697 = vunpack.c.l.b16 %v1363
        %v1698 = vunpack.c.h.b16 %v1363
        %v1699 = vunpack.c.l.b16 %v1364
        %v1700 = vunpack.c.h.b16 %v1364
        %v1701 = vunpack.c.l.b16 %v1365
        %v1702 = vunpack.c.h.b16 %v1365
        %v1703 = vunpack.c.l.b16 %v1366
        %v1704 = vunpack.c.h.b16 %v1366
        %v1705 = vunpack.c.l.b16 %v1367
        %v1706 = vunpack.c.h.b16 %v1367
        %v1707 = vunpack.c.l.b16 %v1368
        %v1708 = vunpack.c.h.b16 %v1368
        %v1709 = vunpack.c.l.b16 %v1369
        %v1710 = vunpack.c.h.b16 %v1369
        %v1711 = vunpack.c.l.b16 %v1370
        %v1712 = vunpack.c.h.b16 %v1370
        %v1713 = vunpack.c.l.b16 %v1371
        %v1714 = vunpack.c.h.b16 %v1371
        %v1715 = vunpack.c.l.b16 %v1372
        %v1716 = vunpack.c.h.b16 %v1372
        %v1717 = vunpack.c.l.b16 %v1373
        %v1718 = vunpack.c.h.b16 %v1373
        %v1719 = vunpack.c.l.b16 %v1374
        %v1720 = vunpack.c.h.b16 %v1374
        %v1721 = vunpack.c.l.b16 %v1375
        %v1722 = vunpack.c.h.b16 %v1375
        %v1723 = vunpack.c.l.b16 %v1376
        %v1724 = vunpack.c.h.b16 %v1376
        %v1725 = vunpack.c.l.b16 %v1377
        %v1726 = vunpack.c.h.b16 %v1377
        %v1727 = vunpack.c.l.b16 %v1378
        %v1728 = vunpack.c.h.b16 %v1378
        %v1729 = vunpack.c.l.b16 %v1379
        %v1730 = vunpack.c.h.b16 %v1379
        %v1731 = vunpack.c.l.b16 %v1380
        %v1732 = vunpack.c.h.b16 %v1380
        %v1733 = vunpack.c.l.b16 %v1381
        %v1734 = vunpack.c.h.b16 %v1381
        %v1735 = vunpack.c.l.b16 %v1382
        %v1736 = vunpack.c.h.b16 %v1382
        %v1737 = vunpack.c.l.b16 %v1383
        %v1738 = vunpack.c.h.b16 %v1383
        %v1739 = vunpack.c.l.b16 %v1384
        %v1740 = vunpack.c.h.b16 %v1384
        %v1741 = vunpack.c.l.b16 %v1385
        %v1742 = vunpack.c.h.b16 %v1385
        %v1743 = vunpack.c.l.b16 %v1386
        %v1744 = vunpack.c.h.b16 %v1386
        %v1745 = vunpack.c.l.b16 %v1387
        %v1746 = vunpack.c.h.b16 %v1387
        %v1747 = vunpack.c.l.b16 %v1388
        %v1748 = vunpack.c.h.b16 %v1388
        %v1749 = vunpack.c.l.b16 %v1389
        %v1750 = vunpack.c.h.b16 %v1389
        %v1751 = vunpack.c.l.b16 %v1390
        %v1752 = vunpack.c.h.b16 %v1390
        %v1753 = vunpack.c.l.b16 %v1391
        %v1754 = vunpack.c.h.b16 %v1391
        %v1755 = vunpack.c.l.b16 %v1392
        %v1756 = vunpack.c.h.b16 %v1392
        %v1757 = vunpack.c.l.b16 %v1393
        %v1758 = vunpack.c.h.b16 %v1393
        %v1759 = vunpack.c.l.b16 %v1394
        %v1760 = vunpack.c.h.b16 %v1394
        %v1761 = vunpack.c.l.b16 %v1395
        %v1762 = vunpack.c.h.b16 %v1395
        %v1763 = vunpack.c.l.b16 %v1396
        %v1764 = vunpack.c.h.b16 %v1396
        %v1765 = vunpack.c.l.b16 %v1397
        %v1766 = vunpack.c.h.b16 %v1397
        %v1767 = vunpack.c.l.b16 %v1398
        %v1768 = vunpack.c.h.b16 %v1398
        %v1769 = vunpack.c.l.b16 %v1399
        %v1770 = vunpack.c.h.b16 %v1399
        %v1771 = vunpack.c.l.b16 %v1400
        %v1772 = vunpack.c.h.b16 %v1400
        %v1773 = vunpack.c.l.b16 %v1401
        %v1774 = vunpack.c.h.b16 %v1401
        %v1775 = vunpack.c.l.b16 %v1402
        %v1776 = vunpack.c.h.b16 %v1402
        %v1777 = vunpack.c.l.b16 %v1403
        %v1778 = vunpack.c.h.b16 %v1403
        %v1779 = vunpack.c.l.b16 %v1404
        %v1780 = vunpack.c.h.b16 %v1404
        %v1781 = vunpack.c.l.b16 %v1405
        %v1782 = vunpack.c.h.b16 %v1405
        %v1783 = vunpack.c.l.b16 %v1406
        %v1784 = vunpack.c.h.b16 %v1406
        %v1785 = vunpack.c.l.b16 %v1407
        %v1786 = vunpack.c.h.b16 %v1407
        %v1787 = vunpack.c.l.b16 %v1408
        %v1788 = vunpack.c.h.b16 %v1408
        %v1789 = vunpack.c.l.b16 %v1409
        %v1790 = vunpack.c.h.b16 %v1409
        %v1791 = vunpack.c.l.b16 %v1410
        %v1792 = vunpack.c.h.b16 %v1410
        %v1793 = vunpack.c.l.b16 %v1411
        %v1794 = vunpack.c.h.b16 %v1411
        %v1795 = vunpack.c.l.b16 %v1412
        %v1796 = vunpack.c.h.b16 %v1412
        %v1797 = vunpack.c.l.b16 %v1413
        %v1798 = vunpack.c.h.b16 %v1413
        %v1799 = vunpack.c.l.b16 %v1414
        %v1800 = vunpack.c.h.b16 %v1414
        %v1801 = vunpack.c.l.b16 %v1415
        %v1802 = vunpack.c.h.b16 %v1415
        %v1803 = vunpack.c.l.b16 %v1416
        %v1804 = vunpack.c.h.b16 %v1416
        %v1805 = vunpack.c.l.b16 %v1417
        %v1806 = vunpack.c.h.b16 %v1417
        %v1807 = vunpack.c.l.b16 %v1418
        %v1808 = vunpack.c.h.b16 %v1418
        %v1809 = vunpack.c.l.b16 %v1419
        %v1810 = vunpack.c.h.b16 %v1419
        %v1811 = vunpack.c.l.b16 %v1420
        %v1812 = vunpack.c.h.b16 %v1420
        %v1813 = vunpack.c.l.b16 %v1421
        %v1814 = vunpack.c.h.b16 %v1421
        %v1815 = vunpack.c.l.b16 %v1422
        %v1816 = vunpack.c.h.b16 %v1422
        %v1817 = vunpack.c.l.b16 %v1423
        %v1818 = vunpack.c.h.b16 %v1423
        %v1819 = vunpack.c.l.b16 %v1424
        %v1820 = vunpack.c.h.b16 %v1424
        %v1821 = vunpack.c.l.b16 %v1425
        %v1822 = vunpack.c.h.b16 %v1425
        %v1823 = vunpack.c.l.b16 %v1426
        %v1824 = vunpack.c.h.b16 %v1426
        %v1825 = vunpack.c.l.b16 %v1427
        %v1826 = vunpack.c.h.b16 %v1427
        %v1827 = vunpack.c.l.b16 %v1428
        %v1828 = vunpack.c.h.b16 %v1428
        %v1829 = vunpack.c.l.b16 %v1429
        %v1830 = vunpack.c.h.b16 %v1429
        %v1831 = vunpack.c.l.b16 %v1430
        %v1832 = vunpack.c.h.b16 %v1430
        %v1833 = vpack.c.b16 %v1585, %v1577
        %v1834 = vpack.c.b16 %v1586, %v1578
        %v1835 = vpack.c.b16 %v1587, %v1579
        %v1836 = vpack.c.b16 %v1588, %v1580
        %v1837 = vpack.c.b16 %v1589, %v1581
        %v1838 = vpack.c.b16 %v1590, %v1582
        %v1839 = vpack.c.b16 %v1591, %v1583
        %v1840 = vpack.c.b16 %v1592, %v1584
        %v1841 = vpack.c.b16 %v1601, %v1593
        %v1842 = vpack.c.b16 %v1602, %v1594
        %v1843 = vpack.c.b16 %v1603, %v1595
        %v1844 = vpack.c.b16 %v1604, %v1596
        %v1845 = vpack.c.b16 %v1605, %v1597
        %v1846 = vpack.c.b16 %v1606, %v1598
        %v1847 = vpack.c.b16 %v1607, %v1599
        %v1848 = vpack.c.b16 %v1608, %v1600
        %v1849 = vpack.c.b16 %v1617, %v1609
        %v1850 = vpack.c.b16 %v1618, %v1610
        %v1851 = vpack.c.b16 %v1619, %v1611
        %v1852 = vpack.c.b16 %v1620, %v1612
        %v1853 = vpack.c.b16 %v1621, %v1613
        %v1854 = vpack.c.b16 %v1622, %v1614
        %v1855 = vpack.c.b16 %v1623, %v1615
        %v1856 = vpack.c.b16 %v1624, %v1616
        %v1857 = vpack.c.b16 %v1633, %v1625
        %v1858 = vpack.c.b16 %v1634, %v1626
        %v1859 = vpack.c.b16 %v1635, %v1627
        %v1860 = vpack.c.b16 %v1636, %v1628
        %v1861 = vpack.c.b16 %v1637, %v1629
        %v1862 = vpack.c.b16 %v1638, %v1630
        %v1863 = vpack.c.b16 %v1639, %v1631
        %v1864 = vpack.c.b16 %v1640, %v1632
        %v1865 = vpack.c.b16 %v1649, %v1641
        %v1866 = vpack.c.b16 %v1650, %v1642
        %v1867 = vpack.c.b16 %v1651, %v1643
        %v1868 = vpack.c.b16 %v1652, %v1644
        %v1869 = vpack.c.b16 %v1653, %v1645
        %v1870 = vpack.c.b16 %v1654, %v1646
        %v1871 = vpack.c.b16 %v1655, %v1647
        %v1872 = vpack.c.b16 %v1656, %v1648
        %v1873 = vpack.c.b16 %v1665, %v1657
        %v1874 = vpack.c.b16 %v1666, %v1658
        %v1875 = vpack.c.b16 %v1667, %v1659
        %v1876 = vpack.c.b16 %v1668, %v1660
        %v1877 = vpack.c.b16 %v1669, %v1661
        %v1878 = vpack.c.b16 %v1670, %v1662
        %v1879 = vpack.c.b16 %v1671, %v1663
        %v1880 = vpack.c.b16 %v1672, %v1664
        %v1881 = vpack.c.b16 %v1681, %v1673
        %v1882 = vpack.c.b16 %v1682, %v1674
        %v1883 = vpack.c.b16 %v1683, %v1675
        %v1884 = vpack.c.b16 %v1684, %v1676
        %v1885 = vpack.c.b16 %v1685, %v1677
        %v1886 = vpack.c.b16 %v1686, %v1678
        %v1887 = vpack.c.b16 %v1687, %v1679
        %v1888 = vpack.c.b16 %v1688, %v1680
        %v1889 = vpack.c.b16 %v1697, %v1689
        %v1890 = vpack.c.b16 %v1698, %v1690
        %v1891 = vpack.c.b16 %v1699, %v1691
        %v1892 = vpack.c.b16 %v1700, %v1692
        %v1893 = vpack.c.b16 %v1701, %v1693
        %v1894 = vpack.c.b16 %v1702, %v1694
        %v1895 = vpack.c.b16 %v1703, %v1695
        %v1896 = vpack.c.b16 %v1704, %v1696
        %v1897 = vpack.c.b16 %v1713, %v1705
        %v1898 = vpack.c.b16 %v1714, %v1706
        %v1899 = vpack.c.b16 %v1715, %v1707
        %v1900 = vpack.c.b16 %v1716, %v1708
        %v1901 = vpack.c.b16 %v1717, %v1709
        %v1902 = vpack.c.b16 %v1718, %v1710
        %v1903 = vpack.c.b16 %v1719, %v1711
        %v1904 = vpack.c.b16 %v1720, %v1712
        %v1905 = vpack.c.b16 %v1729, %v1721
        %v1906 = vpack.c.b16 %v1730, %v1722
        %v1907 = vpack.c.b16 %v1731, %v1723
        %v1908 = vpack.c.b16 %v1732, %v1724
        %v1909 = vpack.c.b16 %v1733, %v1725
        %v1910 = vpack.c.b16 %v1734, %v1726
        %v1911 = vpack.c.b16 %v1735, %v1727
        %v1912 = vpack.c.b16 %v1736, %v1728
        %v1913 = vpack.c.b16 %v1745, %v1737
        %v1914 = vpack.c.b16 %v1746, %v1738
        %v1915 = vpack.c.b16 %v1747, %v1739
        %v1916 = vpack.c.b16 %v1748, %v1740
        %v1917 = vpack.c.b16 %v1749, %v1741
        %v1918 = vpack.c.b16 %v1750, %v1742
        %v1919 = vpack.c.b16 %v1751, %v1743
        %v1920 = vpack.c.b16 %v1752, %v1744
        %v1921 = vpack.c.b16 %v1761, %v1753
        %v1922 = vpack.c.b16 %v1762, %v1754
        %v1923 = vpack.c.b16 %v1763, %v1755
        %v1924 = vpack.c.b16 %v1764, %v1756
        %v1925 = vpack.c.b16 %v1765, %v1757
        %v1926 = vpack.c.b16 %v1766, %v1758
        %v1927 = vpack.c.b16 %v1767, %v1759
        %v1928 = vpack.c.b16 %v1768, %v1760
        %v1929 = vpack.c.b16 %v1777, %v1769
        %v1930 = vpack.c.b16 %v1778, %v1770
        %v1931 = vpack.c.b16 %v1779, %v1771
        %v1932 = vpack.c.b16 %v1780, %v1772
        %v1933 = vpack.c.b16 %v1781, %v1773
        %v1934 = vpack.c.b16 %v1782, %v1774
        %v1935 = vpack.c.b16 %v1783, %v1775
        %v1936 = vpack.c.b16 %v1784, %v1776
        %v1937 = vpack.c.b16 %v1793, %v1785
        %v1938 = vpack.c.b16 %v1794, %v1786
        %v1939 = vpack.c.b16 %v1795, %v1787
        %v1940 = vpack.c.b16 %v1796, %v1788
        %v1941 = vpack.c.b16 %v1797, %v1789
        %v1942 = vpack.c.b16 %v1798, %v1790
        %v1943 = vpack.c.b16 %v1799, %v1791
        %v1944 = vpack.c.b16 %v1800, %v1792
        %v1945 = vpack.c.b16 %v1809, %v1801
        %v1946 = vpack.c.b16 %v1810, %v1802
        %v1947 = vpack.c.b16 %v1811, %v1803
        %v1948 = vpack.c.b16 %v1812, %v1804
        %v1949 = vpack.c.b16 %v1813, %v1805
        %v1950 = vpack.c.b16 %v1814, %v1806
        %v1951 = vpack.c.b16 %v1815, %v1807
        %v1952 = vpack.c.b16 %v1816, %v1808
        %v1953 = vpack.c.b16 %v1825, %v1817
        %v1954 = vpack.c.b16 %v1826, %v1818
        %v1955 = vpack.c.b16 %v1827, %v1819
        %v1956 = vpack.c.b16 %v1828, %v1820
        %v1957 = vpack.c.b16 %v1829, %v1821
        %v1958 = vpack.c.b16 %v1830, %v1822
        %v1959 = vpack.c.b16 %v1831, %v1823
        %v1960 = vpack.c.b16 %v1832, %v1824
        %2089 = vmatpush.bf16.msra.mxu0 %v1889
        %2090 = vmatpush.bf16.msra.mxu0 %v1881
        %2091 = vmatpush.bf16.msra.mxu0 %v1873
        %2092 = vmatpush.bf16.msra.mxu0 %v1865
        %2093 = vmatpush.bf16.msra.mxu0 %v1857
        %2094 = vmatpush.bf16.msra.mxu0 %v1849
        %2095 = vmatpush.bf16.msra.mxu0 %v1841
        %2096 = vmatpush.bf16.msra.mxu0 %v1833
        %2097 = vmatmul.bf16.gmra.mxu0 %v1279
        %v2098 = vpop.f32.mrf.mxu0
        %v2099 = vadd.f32 %v1433, %v2098
        %v2100 = vpop.f32.mrf.mxu0
        %v2101 = vadd.f32 %v1433, %v2100
        %2102 = vmatmul.bf16.gmra.mxu0 %v1281
        %v2103 = vpop.f32.mrf.mxu0
        %v2104 = vadd.f32 %v1433, %v2103
        %v2105 = vpop.f32.mrf.mxu0
        %v2106 = vadd.f32 %v1433, %v2105
        %2107 = vmatmul.bf16.gmra.mxu0 %v1283
        %v2108 = vpop.f32.mrf.mxu0
        %v2109 = vadd.f32 %v1433, %v2108
        %v2110 = vpop.f32.mrf.mxu0
        %v2111 = vadd.f32 %v1433, %v2110
        %2112 = vmatmul.bf16.gmra.mxu0 %v1285
        %v2113 = vpop.f32.mrf.mxu0
        %v2114 = vadd.f32 %v1433, %v2113
        %v2115 = vpop.f32.mrf.mxu0
        %v2116 = vadd.f32 %v1433, %v2115
        %2117 = vmatmul.bf16.gmra.mxu0 %v1287
        %v2118 = vpop.f32.mrf.mxu0
        %v2119 = vadd.f32 %v1433, %v2118
        %v2120 = vpop.f32.mrf.mxu0
        %v2121 = vadd.f32 %v1433, %v2120
        %2122 = vmatmul.bf16.gmra.mxu0 %v1289
        %v2123 = vpop.f32.mrf.mxu0
        %v2124 = vadd.f32 %v1433, %v2123
        %v2125 = vpop.f32.mrf.mxu0
        %v2126 = vadd.f32 %v1433, %v2125
        %2127 = vmatmul.bf16.gmra.mxu0 %v1291
        %v2128 = vpop.f32.mrf.mxu0
        %v2129 = vadd.f32 %v1433, %v2128
        %v2130 = vpop.f32.mrf.mxu0
        %v2131 = vadd.f32 %v1433, %v2130
        %2132 = vmatmul.bf16.gmra.mxu0 %v1293
        %v2133 = vpop.f32.mrf.mxu0
        %v2134 = vadd.f32 %v1433, %v2133
        %v2135 = vpop.f32.mrf.mxu0
        %v2136 = vadd.f32 %v1433, %v2135
        %2137 = vmatmul.bf16.gmra.mxu0 %v1295
        %v2138 = vpop.f32.mrf.mxu0
        %v2139 = vadd.f32 %v1433, %v2138
        %v2140 = vpop.f32.mrf.mxu0
        %v2141 = vadd.f32 %v1433, %v2140
        %2142 = vmatmul.bf16.gmra.mxu0 %v1297
        %v2143 = vpop.f32.mrf.mxu0
        %v2144 = vadd.f32 %v1433, %v2143
        %v2145 = vpop.f32.mrf.mxu0
        %v2146 = vadd.f32 %v1433, %v2145
        %2147 = vmatmul.bf16.gmra.mxu0 %v1299
        %v2148 = vpop.f32.mrf.mxu0
        %v2149 = vadd.f32 %v1433, %v2148
        %v2150 = vpop.f32.mrf.mxu0
        %v2151 = vadd.f32 %v1433, %v2150
        %2152 = vmatmul.bf16.gmra.mxu0 %v1301
        %v2153 = vpop.f32.mrf.mxu0
        %v2154 = vadd.f32 %v1433, %v2153
        %v2155 = vpop.f32.mrf.mxu0
        %v2156 = vadd.f32 %v1433, %v2155
        %2157 = vdwg.mxu0
        %2158 = vmatpush.bf16.msra.mxu0 %v1953
        %2159 = vmatpush.bf16.msra.mxu0 %v1945
        %2160 = vmatpush.bf16.msra.mxu0 %v1937
        %2161 = vmatpush.bf16.msra.mxu0 %v1929
        %2162 = vmatpush.bf16.msra.mxu0 %v1921
        %2163 = vmatpush.bf16.msra.mxu0 %v1913
        %2164 = vmatpush.bf16.msra.mxu0 %v1905
        %2165 = vmatpush.bf16.msra.mxu0 %v1897
        %2166 = vmatmul.bf16.gmra.mxu0 %v1280
        %v2167 = vpop.f32.mrf.mxu0
        %v2168 = vadd.f32 %v2099, %v2167
        %v2169 = vpop.f32.mrf.mxu0
        %v2170 = vadd.f32 %v2101, %v2169
        %2171 = vmatmul.bf16.gmra.mxu0 %v1282
        %v2172 = vpop.f32.mrf.mxu0
        %v2173 = vadd.f32 %v2104, %v2172
        %v2174 = vpop.f32.mrf.mxu0
        %v2175 = vadd.f32 %v2106, %v2174
        %2176 = vmatmul.bf16.gmra.mxu0 %v1284
        %v2177 = vpop.f32.mrf.mxu0
        %v2178 = vadd.f32 %v2109, %v2177
        %v2179 = vpop.f32.mrf.mxu0
        %v2180 = vadd.f32 %v2111, %v2179
        %2181 = vmatmul.bf16.gmra.mxu0 %v1286
        %v2182 = vpop.f32.mrf.mxu0
        %v2183 = vadd.f32 %v2114, %v2182
        %v2184 = vpop.f32.mrf.mxu0
        %v2185 = vadd.f32 %v2116, %v2184
        %2186 = vmatmul.bf16.gmra.mxu0 %v1288
        %v2187 = vpop.f32.mrf.mxu0
        %v2188 = vadd.f32 %v2119, %v2187
        %v2189 = vpop.f32.mrf.mxu0
        %v2190 = vadd.f32 %v2121, %v2189
        %2191 = vmatmul.bf16.gmra.mxu0 %v1290
        %v2192 = vpop.f32.mrf.mxu0
        %v2193 = vadd.f32 %v2124, %v2192
        %v2194 = vpop.f32.mrf.mxu0
        %v2195 = vadd.f32 %v2126, %v2194
        %2196 = vmatmul.bf16.gmra.mxu0 %v1292
        %v2197 = vpop.f32.mrf.mxu0
        %v2198 = vadd.f32 %v2129, %v2197
        %v2199 = vpop.f32.mrf.mxu0
        %v2200 = vadd.f32 %v2131, %v2199
        %2201 = vmatmul.bf16.gmra.mxu0 %v1294
        %v2202 = vpop.f32.mrf.mxu0
        %v2203 = vadd.f32 %v2134, %v2202
        %v2204 = vpop.f32.mrf.mxu0
        %v2205 = vadd.f32 %v2136, %v2204
        %2206 = vmatmul.bf16.gmra.mxu0 %v1296
        %v2207 = vpop.f32.mrf.mxu0
        %v2208 = vadd.f32 %v2139, %v2207
        %v2209 = vpop.f32.mrf.mxu0
        %v2210 = vadd.f32 %v2141, %v2209
        %2211 = vmatmul.bf16.gmra.mxu0 %v1298
        %v2212 = vpop.f32.mrf.mxu0
        %v2213 = vadd.f32 %v2144, %v2212
        %v2214 = vpop.f32.mrf.mxu0
        %v2215 = vadd.f32 %v2146, %v2214
        %2216 = vmatmul.bf16.gmra.mxu0 %v1300
        %v2217 = vpop.f32.mrf.mxu0
        %v2218 = vadd.f32 %v2149, %v2217
        %v2219 = vpop.f32.mrf.mxu0
        %v2220 = vadd.f32 %v2151, %v2219
        %2221 = vmatmul.bf16.gmra.mxu0 %v1302
        %v2222 = vpop.f32.mrf.mxu0
        %v2223 = vadd.f32 %v2154, %v2222
        %v2224 = vpop.f32.mrf.mxu0
        %v2225 = vadd.f32 %v2156, %v2224
        %2226 = vdwg.mxu0
        %2227 = vmatpush.bf16.msra.mxu0 %v1890
        %2228 = vmatpush.bf16.msra.mxu0 %v1882
        %2229 = vmatpush.bf16.msra.mxu0 %v1874
        %2230 = vmatpush.bf16.msra.mxu0 %v1866
        %2231 = vmatpush.bf16.msra.mxu0 %v1858
        %2232 = vmatpush.bf16.msra.mxu0 %v1850
        %2233 = vmatpush.bf16.msra.mxu0 %v1842
        %2234 = vmatpush.bf16.msra.mxu0 %v1834
        %2235 = vmatmul.bf16.gmra.mxu0 %v1279
        %v2236 = vpop.f32.mrf.mxu0
        %v2237 = vadd.f32 %v1434, %v2236
        %v2238 = vpop.f32.mrf.mxu0
        %v2239 = vadd.f32 %v1434, %v2238
        %2240 = vmatmul.bf16.gmra.mxu0 %v1281
        %v2241 = vpop.f32.mrf.mxu0
        %v2242 = vadd.f32 %v1434, %v2241
        %v2243 = vpop.f32.mrf.mxu0
        %v2244 = vadd.f32 %v1434, %v2243
        %2245 = vmatmul.bf16.gmra.mxu0 %v1283
        %v2246 = vpop.f32.mrf.mxu0
        %v2247 = vadd.f32 %v1434, %v2246
        %v2248 = vpop.f32.mrf.mxu0
        %v2249 = vadd.f32 %v1434, %v2248
        %2250 = vmatmul.bf16.gmra.mxu0 %v1285
        %v2251 = vpop.f32.mrf.mxu0
        %v2252 = vadd.f32 %v1434, %v2251
        %v2253 = vpop.f32.mrf.mxu0
        %v2254 = vadd.f32 %v1434, %v2253
        %2255 = vmatmul.bf16.gmra.mxu0 %v1287
        %v2256 = vpop.f32.mrf.mxu0
        %v2257 = vadd.f32 %v1434, %v2256
        %v2258 = vpop.f32.mrf.mxu0
        %v2259 = vadd.f32 %v1434, %v2258
        %2260 = vmatmul.bf16.gmra.mxu0 %v1289
        %v2261 = vpop.f32.mrf.mxu0
        %v2262 = vadd.f32 %v1434, %v2261
        %v2263 = vpop.f32.mrf.mxu0
        %v2264 = vadd.f32 %v1434, %v2263
        %2265 = vmatmul.bf16.gmra.mxu0 %v1291
        %v2266 = vpop.f32.mrf.mxu0
        %v2267 = vadd.f32 %v1434, %v2266
        %v2268 = vpop.f32.mrf.mxu0
        %v2269 = vadd.f32 %v1434, %v2268
        %2270 = vmatmul.bf16.gmra.mxu0 %v1293
        %v2271 = vpop.f32.mrf.mxu0
        %v2272 = vadd.f32 %v1434, %v2271
        %v2273 = vpop.f32.mrf.mxu0
        %v2274 = vadd.f32 %v1434, %v2273
        %2275 = vmatmul.bf16.gmra.mxu0 %v1295
        %v2276 = vpop.f32.mrf.mxu0
        %v2277 = vadd.f32 %v1434, %v2276
        %v2278 = vpop.f32.mrf.mxu0
        %v2279 = vadd.f32 %v1434, %v2278
        %2280 = vmatmul.bf16.gmra.mxu0 %v1297
        %v2281 = vpop.f32.mrf.mxu0
        %v2282 = vadd.f32 %v1434, %v2281
        %v2283 = vpop.f32.mrf.mxu0
        %v2284 = vadd.f32 %v1434, %v2283
        %2285 = vmatmul.bf16.gmra.mxu0 %v1299
        %v2286 = vpop.f32.mrf.mxu0
        %v2287 = vadd.f32 %v1434, %v2286
        %v2288 = vpop.f32.mrf.mxu0
        %v2289 = vadd.f32 %v1434, %v2288
        %2290 = vmatmul.bf16.gmra.mxu0 %v1301
        %v2291 = vpop.f32.mrf.mxu0
        %v2292 = vadd.f32 %v1434, %v2291
        %v2293 = vpop.f32.mrf.mxu0
        %v2294 = vadd.f32 %v1434, %v2293
        %2295 = vdwg.mxu0
        %2296 = vmatpush.bf16.msra.mxu0 %v1954
        %2297 = vmatpush.bf16.msra.mxu0 %v1946
        %2298 = vmatpush.bf16.msra.mxu0 %v1938
        %2299 = vmatpush.bf16.msra.mxu0 %v1930
        %2300 = vmatpush.bf16.msra.mxu0 %v1922
        %2301 = vmatpush.bf16.msra.mxu0 %v1914
        %2302 = vmatpush.bf16.msra.mxu0 %v1906
        %2303 = vmatpush.bf16.msra.mxu0 %v1898
        %2304 = vmatmul.bf16.gmra.mxu0 %v1280
        %v2305 = vpop.f32.mrf.mxu0
        %v2306 = vadd.f32 %v2237, %v2305
        %v2307 = vpop.f32.mrf.mxu0
        %v2308 = vadd.f32 %v2239, %v2307
        %2309 = vmatmul.bf16.gmra.mxu0 %v1282
        %v2310 = vpop.f32.mrf.mxu0
        %v2311 = vadd.f32 %v2242, %v2310
        %v2312 = vpop.f32.mrf.mxu0
        %v2313 = vadd.f32 %v2244, %v2312
        %2314 = vmatmul.bf16.gmra.mxu0 %v1284
        %v2315 = vpop.f32.mrf.mxu0
        %v2316 = vadd.f32 %v2247, %v2315
        %v2317 = vpop.f32.mrf.mxu0
        %v2318 = vadd.f32 %v2249, %v2317
        %2319 = vmatmul.bf16.gmra.mxu0 %v1286
        %v2320 = vpop.f32.mrf.mxu0
        %v2321 = vadd.f32 %v2252, %v2320
        %v2322 = vpop.f32.mrf.mxu0
        %v2323 = vadd.f32 %v2254, %v2322
        %2324 = vmatmul.bf16.gmra.mxu0 %v1288
        %v2325 = vpop.f32.mrf.mxu0
        %v2326 = vadd.f32 %v2257, %v2325
        %v2327 = vpop.f32.mrf.mxu0
        %v2328 = vadd.f32 %v2259, %v2327
        %2329 = vmatmul.bf16.gmra.mxu0 %v1290
        %v2330 = vpop.f32.mrf.mxu0
        %v2331 = vadd.f32 %v2262, %v2330
        %v2332 = vpop.f32.mrf.mxu0
        %v2333 = vadd.f32 %v2264, %v2332
        %2334 = vmatmul.bf16.gmra.mxu0 %v1292
        %v2335 = vpop.f32.mrf.mxu0
        %v2336 = vadd.f32 %v2267, %v2335
        %v2337 = vpop.f32.mrf.mxu0
        %v2338 = vadd.f32 %v2269, %v2337
        %2339 = vmatmul.bf16.gmra.mxu0 %v1294
        %v2340 = vpop.f32.mrf.mxu0
        %v2341 = vadd.f32 %v2272, %v2340
        %v2342 = vpop.f32.mrf.mxu0
        %v2343 = vadd.f32 %v2274, %v2342
        %2344 = vmatmul.bf16.gmra.mxu0 %v1296
        %v2345 = vpop.f32.mrf.mxu0
        %v2346 = vadd.f32 %v2277, %v2345
        %v2347 = vpop.f32.mrf.mxu0
        %v2348 = vadd.f32 %v2279, %v2347
        %2349 = vmatmul.bf16.gmra.mxu0 %v1298
        %v2350 = vpop.f32.mrf.mxu0
        %v2351 = vadd.f32 %v2282, %v2350
        %v2352 = vpop.f32.mrf.mxu0
        %v2353 = vadd.f32 %v2284, %v2352
        %2354 = vmatmul.bf16.gmra.mxu0 %v1300
        %v2355 = vpop.f32.mrf.mxu0
        %v2356 = vadd.f32 %v2287, %v2355
        %v2357 = vpop.f32.mrf.mxu0
        %v2358 = vadd.f32 %v2289, %v2357
        %2359 = vmatmul.bf16.gmra.mxu0 %v1302
        %v2360 = vpop.f32.mrf.mxu0
        %v2361 = vadd.f32 %v2292, %v2360
        %v2362 = vpop.f32.mrf.mxu0
        %v2363 = vadd.f32 %v2294, %v2362
        %2364 = vdwg.mxu0
        %2365 = vmatpush.bf16.msra.mxu0 %v1891
        %2366 = vmatpush.bf16.msra.mxu0 %v1883
        %2367 = vmatpush.bf16.msra.mxu0 %v1875
        %2368 = vmatpush.bf16.msra.mxu0 %v1867
        %2369 = vmatpush.bf16.msra.mxu0 %v1859
        %2370 = vmatpush.bf16.msra.mxu0 %v1851
        %2371 = vmatpush.bf16.msra.mxu0 %v1843
        %2372 = vmatpush.bf16.msra.mxu0 %v1835
        %2373 = vmatmul.bf16.gmra.mxu0 %v1279
        %v2374 = vpop.f32.mrf.mxu0
        %v2375 = vadd.f32 %v1435, %v2374
        %v2376 = vpop.f32.mrf.mxu0
        %v2377 = vadd.f32 %v1435, %v2376
        %2378 = vmatmul.bf16.gmra.mxu0 %v1281
        %v2379 = vpop.f32.mrf.mxu0
        %v2380 = vadd.f32 %v1435, %v2379
        %v2381 = vpop.f32.mrf.mxu0
        %v2382 = vadd.f32 %v1435, %v2381
        %2383 = vmatmul.bf16.gmra.mxu0 %v1283
        %v2384 = vpop.f32.mrf.mxu0
        %v2385 = vadd.f32 %v1435, %v2384
        %v2386 = vpop.f32.mrf.mxu0
        %v2387 = vadd.f32 %v1435, %v2386
        %2388 = vmatmul.bf16.gmra.mxu0 %v1285
        %v2389 = vpop.f32.mrf.mxu0
        %v2390 = vadd.f32 %v1435, %v2389
        %v2391 = vpop.f32.mrf.mxu0
        %v2392 = vadd.f32 %v1435, %v2391
        %2393 = vmatmul.bf16.gmra.mxu0 %v1287
        %v2394 = vpop.f32.mrf.mxu0
        %v2395 = vadd.f32 %v1435, %v2394
        %v2396 = vpop.f32.mrf.mxu0
        %v2397 = vadd.f32 %v1435, %v2396
        %2398 = vmatmul.bf16.gmra.mxu0 %v1289
        %v2399 = vpop.f32.mrf.mxu0
        %v2400 = vadd.f32 %v1435, %v2399
        %v2401 = vpop.f32.mrf.mxu0
        %v2402 = vadd.f32 %v1435, %v2401
        %2403 = vmatmul.bf16.gmra.mxu0 %v1291
        %v2404 = vpop.f32.mrf.mxu0
        %v2405 = vadd.f32 %v1435, %v2404
        %v2406 = vpop.f32.mrf.mxu0
        %v2407 = vadd.f32 %v1435, %v2406
        %2408 = vmatmul.bf16.gmra.mxu0 %v1293
        %v2409 = vpop.f32.mrf.mxu0
        %v2410 = vadd.f32 %v1435, %v2409
        %v2411 = vpop.f32.mrf.mxu0
        %v2412 = vadd.f32 %v1435, %v2411
        %2413 = vmatmul.bf16.gmra.mxu0 %v1295
        %v2414 = vpop.f32.mrf.mxu0
        %v2415 = vadd.f32 %v1435, %v2414
        %v2416 = vpop.f32.mrf.mxu0
        %v2417 = vadd.f32 %v1435, %v2416
        %2418 = vmatmul.bf16.gmra.mxu0 %v1297
        %v2419 = vpop.f32.mrf.mxu0
        %v2420 = vadd.f32 %v1435, %v2419
        %v2421 = vpop.f32.mrf.mxu0
        %v2422 = vadd.f32 %v1435, %v2421
        %2423 = vmatmul.bf16.gmra.mxu0 %v1299
        %v2424 = vpop.f32.mrf.mxu0
        %v2425 = vadd.f32 %v1435, %v2424
        %v2426 = vpop.f32.mrf.mxu0
        %v2427 = vadd.f32 %v1435, %v2426
        %2428 = vmatmul.bf16.gmra.mxu0 %v1301
        %v2429 = vpop.f32.mrf.mxu0
        %v2430 = vadd.f32 %v1435, %v2429
        %v2431 = vpop.f32.mrf.mxu0
        %v2432 = vadd.f32 %v1435, %v2431
        %2433 = vdwg.mxu0
        %2434 = vmatpush.bf16.msra.mxu0 %v1955
        %2435 = vmatpush.bf16.msra.mxu0 %v1947
        %2436 = vmatpush.bf16.msra.mxu0 %v1939
        %2437 = vmatpush.bf16.msra.mxu0 %v1931
        %2438 = vmatpush.bf16.msra.mxu0 %v1923
        %2439 = vmatpush.bf16.msra.mxu0 %v1915
        %2440 = vmatpush.bf16.msra.mxu0 %v1907
        %2441 = vmatpush.bf16.msra.mxu0 %v1899
        %2442 = vmatmul.bf16.gmra.mxu0 %v1280
        %v2443 = vpop.f32.mrf.mxu0
        %v2444 = vadd.f32 %v2375, %v2443
        %v2445 = vpop.f32.mrf.mxu0
        %v2446 = vadd.f32 %v2377, %v2445
        %2447 = vmatmul.bf16.gmra.mxu0 %v1282
        %v2448 = vpop.f32.mrf.mxu0
        %v2449 = vadd.f32 %v2380, %v2448
        %v2450 = vpop.f32.mrf.mxu0
        %v2451 = vadd.f32 %v2382, %v2450
        %2452 = vmatmul.bf16.gmra.mxu0 %v1284
        %v2453 = vpop.f32.mrf.mxu0
        %v2454 = vadd.f32 %v2385, %v2453
        %v2455 = vpop.f32.mrf.mxu0
        %v2456 = vadd.f32 %v2387, %v2455
        %2457 = vmatmul.bf16.gmra.mxu0 %v1286
        %v2458 = vpop.f32.mrf.mxu0
        %v2459 = vadd.f32 %v2390, %v2458
        %v2460 = vpop.f32.mrf.mxu0
        %v2461 = vadd.f32 %v2392, %v2460
        %2462 = vmatmul.bf16.gmra.mxu0 %v1288
        %v2463 = vpop.f32.mrf.mxu0
        %v2464 = vadd.f32 %v2395, %v2463
        %v2465 = vpop.f32.mrf.mxu0
        %v2466 = vadd.f32 %v2397, %v2465
        %2467 = vmatmul.bf16.gmra.mxu0 %v1290
        %v2468 = vpop.f32.mrf.mxu0
        %v2469 = vadd.f32 %v2400, %v2468
        %v2470 = vpop.f32.mrf.mxu0
        %v2471 = vadd.f32 %v2402, %v2470
        %2472 = vmatmul.bf16.gmra.mxu0 %v1292
        %v2473 = vpop.f32.mrf.mxu0
        %v2474 = vadd.f32 %v2405, %v2473
        %v2475 = vpop.f32.mrf.mxu0
        %v2476 = vadd.f32 %v2407, %v2475
        %2477 = vmatmul.bf16.gmra.mxu0 %v1294
        %v2478 = vpop.f32.mrf.mxu0
        %v2479 = vadd.f32 %v2410, %v2478
        %v2480 = vpop.f32.mrf.mxu0
        %v2481 = vadd.f32 %v2412, %v2480
        %2482 = vmatmul.bf16.gmra.mxu0 %v1296
        %v2483 = vpop.f32.mrf.mxu0
        %v2484 = vadd.f32 %v2415, %v2483
        %v2485 = vpop.f32.mrf.mxu0
        %v2486 = vadd.f32 %v2417, %v2485
        %2487 = vmatmul.bf16.gmra.mxu0 %v1298
        %v2488 = vpop.f32.mrf.mxu0
        %v2489 = vadd.f32 %v2420, %v2488
        %v2490 = vpop.f32.mrf.mxu0
        %v2491 = vadd.f32 %v2422, %v2490
        %2492 = vmatmul.bf16.gmra.mxu0 %v1300
        %v2493 = vpop.f32.mrf.mxu0
        %v2494 = vadd.f32 %v2425, %v2493
        %v2495 = vpop.f32.mrf.mxu0
        %v2496 = vadd.f32 %v2427, %v2495
        %2497 = vmatmul.bf16.gmra.mxu0 %v1302
        %v2498 = vpop.f32.mrf.mxu0
        %v2499 = vadd.f32 %v2430, %v2498
        %v2500 = vpop.f32.mrf.mxu0
        %v2501 = vadd.f32 %v2432, %v2500
        %2502 = vdwg.mxu0
        %2503 = vmatpush.bf16.msra.mxu0 %v1892
        %2504 = vmatpush.bf16.msra.mxu0 %v1884
        %2505 = vmatpush.bf16.msra.mxu0 %v1876
        %2506 = vmatpush.bf16.msra.mxu0 %v1868
        %2507 = vmatpush.bf16.msra.mxu0 %v1860
        %2508 = vmatpush.bf16.msra.mxu0 %v1852
        %2509 = vmatpush.bf16.msra.mxu0 %v1844
        %2510 = vmatpush.bf16.msra.mxu0 %v1836
        %2511 = vmatmul.bf16.gmra.mxu0 %v1279
        %v2512 = vpop.f32.mrf.mxu0
        %v2513 = vadd.f32 %v1436, %v2512
        %v2514 = vpop.f32.mrf.mxu0
        %v2515 = vadd.f32 %v1436, %v2514
        %2516 = vmatmul.bf16.gmra.mxu0 %v1281
        %v2517 = vpop.f32.mrf.mxu0
        %v2518 = vadd.f32 %v1436, %v2517
        %v2519 = vpop.f32.mrf.mxu0
        %v2520 = vadd.f32 %v1436, %v2519
        %2521 = vmatmul.bf16.gmra.mxu0 %v1283
        %v2522 = vpop.f32.mrf.mxu0
        %v2523 = vadd.f32 %v1436, %v2522
        %v2524 = vpop.f32.mrf.mxu0
        %v2525 = vadd.f32 %v1436, %v2524
        %2526 = vmatmul.bf16.gmra.mxu0 %v1285
        %v2527 = vpop.f32.mrf.mxu0
        %v2528 = vadd.f32 %v1436, %v2527
        %v2529 = vpop.f32.mrf.mxu0
        %v2530 = vadd.f32 %v1436, %v2529
        %2531 = vmatmul.bf16.gmra.mxu0 %v1287
        %v2532 = vpop.f32.mrf.mxu0
        %v2533 = vadd.f32 %v1436, %v2532
        %v2534 = vpop.f32.mrf.mxu0
        %v2535 = vadd.f32 %v1436, %v2534
        %2536 = vmatmul.bf16.gmra.mxu0 %v1289
        %v2537 = vpop.f32.mrf.mxu0
        %v2538 = vadd.f32 %v1436, %v2537
        %v2539 = vpop.f32.mrf.mxu0
        %v2540 = vadd.f32 %v1436, %v2539
        %2541 = vmatmul.bf16.gmra.mxu0 %v1291
        %v2542 = vpop.f32.mrf.mxu0
        %v2543 = vadd.f32 %v1436, %v2542
        %v2544 = vpop.f32.mrf.mxu0
        %v2545 = vadd.f32 %v1436, %v2544
        %2546 = vmatmul.bf16.gmra.mxu0 %v1293
        %v2547 = vpop.f32.mrf.mxu0
        %v2548 = vadd.f32 %v1436, %v2547
        %v2549 = vpop.f32.mrf.mxu0
        %v2550 = vadd.f32 %v1436, %v2549
        %2551 = vmatmul.bf16.gmra.mxu0 %v1295
        %v2552 = vpop.f32.mrf.mxu0
        %v2553 = vadd.f32 %v1436, %v2552
        %v2554 = vpop.f32.mrf.mxu0
        %v2555 = vadd.f32 %v1436, %v2554
        %2556 = vmatmul.bf16.gmra.mxu0 %v1297
        %v2557 = vpop.f32.mrf.mxu0
        %v2558 = vadd.f32 %v1436, %v2557
        %v2559 = vpop.f32.mrf.mxu0
        %v2560 = vadd.f32 %v1436, %v2559
        %2561 = vmatmul.bf16.gmra.mxu0 %v1299
        %v2562 = vpop.f32.mrf.mxu0
        %v2563 = vadd.f32 %v1436, %v2562
        %v2564 = vpop.f32.mrf.mxu0
        %v2565 = vadd.f32 %v1436, %v2564
        %2566 = vmatmul.bf16.gmra.mxu0 %v1301
        %v2567 = vpop.f32.mrf.mxu0
        %v2568 = vadd.f32 %v1436, %v2567
        %v2569 = vpop.f32.mrf.mxu0
        %v2570 = vadd.f32 %v1436, %v2569
        %2571 = vdwg.mxu0
        %2572 = vmatpush.bf16.msra.mxu0 %v1956
        %2573 = vmatpush.bf16.msra.mxu0 %v1948
        %2574 = vmatpush.bf16.msra.mxu0 %v1940
        %2575 = vmatpush.bf16.msra.mxu0 %v1932
        %2576 = vmatpush.bf16.msra.mxu0 %v1924
        %2577 = vmatpush.bf16.msra.mxu0 %v1916
        %2578 = vmatpush.bf16.msra.mxu0 %v1908
        %2579 = vmatpush.bf16.msra.mxu0 %v1900
        %2580 = vmatmul.bf16.gmra.mxu0 %v1280
        %v2581 = vpop.f32.mrf.mxu0
        %v2582 = vadd.f32 %v2513, %v2581
        %v2583 = vpop.f32.mrf.mxu0
        %v2584 = vadd.f32 %v2515, %v2583
        %2585 = vmatmul.bf16.gmra.mxu0 %v1282
        %v2586 = vpop.f32.mrf.mxu0
        %v2587 = vadd.f32 %v2518, %v2586
        %v2588 = vpop.f32.mrf.mxu0
        %v2589 = vadd.f32 %v2520, %v2588
        %2590 = vmatmul.bf16.gmra.mxu0 %v1284
        %v2591 = vpop.f32.mrf.mxu0
        %v2592 = vadd.f32 %v2523, %v2591
        %v2593 = vpop.f32.mrf.mxu0
        %v2594 = vadd.f32 %v2525, %v2593
        %2595 = vmatmul.bf16.gmra.mxu0 %v1286
        %v2596 = vpop.f32.mrf.mxu0
        %v2597 = vadd.f32 %v2528, %v2596
        %v2598 = vpop.f32.mrf.mxu0
        %v2599 = vadd.f32 %v2530, %v2598
        %2600 = vmatmul.bf16.gmra.mxu0 %v1288
        %v2601 = vpop.f32.mrf.mxu0
        %v2602 = vadd.f32 %v2533, %v2601
        %v2603 = vpop.f32.mrf.mxu0
        %v2604 = vadd.f32 %v2535, %v2603
        %2605 = vmatmul.bf16.gmra.mxu0 %v1290
        %v2606 = vpop.f32.mrf.mxu0
        %v2607 = vadd.f32 %v2538, %v2606
        %v2608 = vpop.f32.mrf.mxu0
        %v2609 = vadd.f32 %v2540, %v2608
        %2610 = vmatmul.bf16.gmra.mxu0 %v1292
        %v2611 = vpop.f32.mrf.mxu0
        %v2612 = vadd.f32 %v2543, %v2611
        %v2613 = vpop.f32.mrf.mxu0
        %v2614 = vadd.f32 %v2545, %v2613
        %2615 = vmatmul.bf16.gmra.mxu0 %v1294
        %v2616 = vpop.f32.mrf.mxu0
        %v2617 = vadd.f32 %v2548, %v2616
        %v2618 = vpop.f32.mrf.mxu0
        %v2619 = vadd.f32 %v2550, %v2618
        %2620 = vmatmul.bf16.gmra.mxu0 %v1296
        %v2621 = vpop.f32.mrf.mxu0
        %v2622 = vadd.f32 %v2553, %v2621
        %v2623 = vpop.f32.mrf.mxu0
        %v2624 = vadd.f32 %v2555, %v2623
        %2625 = vmatmul.bf16.gmra.mxu0 %v1298
        %v2626 = vpop.f32.mrf.mxu0
        %v2627 = vadd.f32 %v2558, %v2626
        %v2628 = vpop.f32.mrf.mxu0
        %v2629 = vadd.f32 %v2560, %v2628
        %2630 = vmatmul.bf16.gmra.mxu0 %v1300
        %v2631 = vpop.f32.mrf.mxu0
        %v2632 = vadd.f32 %v2563, %v2631
        %v2633 = vpop.f32.mrf.mxu0
        %v2634 = vadd.f32 %v2565, %v2633
        %2635 = vmatmul.bf16.gmra.mxu0 %v1302
        %v2636 = vpop.f32.mrf.mxu0
        %v2637 = vadd.f32 %v2568, %v2636
        %v2638 = vpop.f32.mrf.mxu0
        %v2639 = vadd.f32 %v2570, %v2638
        %2640 = vdwg.mxu0
        %2641 = vmatpush.bf16.msra.mxu0 %v1893
        %2642 = vmatpush.bf16.msra.mxu0 %v1885
        %2643 = vmatpush.bf16.msra.mxu0 %v1877
        %2644 = vmatpush.bf16.msra.mxu0 %v1869
        %2645 = vmatpush.bf16.msra.mxu0 %v1861
        %2646 = vmatpush.bf16.msra.mxu0 %v1853
        %2647 = vmatpush.bf16.msra.mxu0 %v1845
        %2648 = vmatpush.bf16.msra.mxu0 %v1837
        %2649 = vmatmul.bf16.gmra.mxu0 %v1279
        %v2650 = vpop.f32.mrf.mxu0
        %v2651 = vadd.f32 %v1437, %v2650
        %v2652 = vpop.f32.mrf.mxu0
        %v2653 = vadd.f32 %v1437, %v2652
        %2654 = vmatmul.bf16.gmra.mxu0 %v1281
        %v2655 = vpop.f32.mrf.mxu0
        %v2656 = vadd.f32 %v1437, %v2655
        %v2657 = vpop.f32.mrf.mxu0
        %v2658 = vadd.f32 %v1437, %v2657
        %2659 = vmatmul.bf16.gmra.mxu0 %v1283
        %v2660 = vpop.f32.mrf.mxu0
        %v2661 = vadd.f32 %v1437, %v2660
        %v2662 = vpop.f32.mrf.mxu0
        %v2663 = vadd.f32 %v1437, %v2662
        %2664 = vmatmul.bf16.gmra.mxu0 %v1285
        %v2665 = vpop.f32.mrf.mxu0
        %v2666 = vadd.f32 %v1437, %v2665
        %v2667 = vpop.f32.mrf.mxu0
        %v2668 = vadd.f32 %v1437, %v2667
        %2669 = vmatmul.bf16.gmra.mxu0 %v1287
        %v2670 = vpop.f32.mrf.mxu0
        %v2671 = vadd.f32 %v1437, %v2670
        %v2672 = vpop.f32.mrf.mxu0
        %v2673 = vadd.f32 %v1437, %v2672
        %2674 = vmatmul.bf16.gmra.mxu0 %v1289
        %v2675 = vpop.f32.mrf.mxu0
        %v2676 = vadd.f32 %v1437, %v2675
        %v2677 = vpop.f32.mrf.mxu0
        %v2678 = vadd.f32 %v1437, %v2677
        %2679 = vmatmul.bf16.gmra.mxu0 %v1291
        %v2680 = vpop.f32.mrf.mxu0
        %v2681 = vadd.f32 %v1437, %v2680
        %v2682 = vpop.f32.mrf.mxu0
        %v2683 = vadd.f32 %v1437, %v2682
        %2684 = vmatmul.bf16.gmra.mxu0 %v1293
        %v2685 = vpop.f32.mrf.mxu0
        %v2686 = vadd.f32 %v1437, %v2685
        %v2687 = vpop.f32.mrf.mxu0
        %v2688 = vadd.f32 %v1437, %v2687
        %2689 = vmatmul.bf16.gmra.mxu0 %v1295
        %v2690 = vpop.f32.mrf.mxu0
        %v2691 = vadd.f32 %v1437, %v2690
        %v2692 = vpop.f32.mrf.mxu0
        %v2693 = vadd.f32 %v1437, %v2692
        %2694 = vmatmul.bf16.gmra.mxu0 %v1297
        %v2695 = vpop.f32.mrf.mxu0
        %v2696 = vadd.f32 %v1437, %v2695
        %v2697 = vpop.f32.mrf.mxu0
        %v2698 = vadd.f32 %v1437, %v2697
        %2699 = vmatmul.bf16.gmra.mxu0 %v1299
        %v2700 = vpop.f32.mrf.mxu0
        %v2701 = vadd.f32 %v1437, %v2700
        %v2702 = vpop.f32.mrf.mxu0
        %v2703 = vadd.f32 %v1437, %v2702
        %2704 = vmatmul.bf16.gmra.mxu0 %v1301
        %v2705 = vpop.f32.mrf.mxu0
        %v2706 = vadd.f32 %v1437, %v2705
        %v2707 = vpop.f32.mrf.mxu0
        %v2708 = vadd.f32 %v1437, %v2707
        %2709 = vdwg.mxu0
        %2710 = vmatpush.bf16.msra.mxu0 %v1957
        %2711 = vmatpush.bf16.msra.mxu0 %v1949
        %2712 = vmatpush.bf16.msra.mxu0 %v1941
        %2713 = vmatpush.bf16.msra.mxu0 %v1933
        %2714 = vmatpush.bf16.msra.mxu0 %v1925
        %2715 = vmatpush.bf16.msra.mxu0 %v1917
        %2716 = vmatpush.bf16.msra.mxu0 %v1909
        %2717 = vmatpush.bf16.msra.mxu0 %v1901
        %2718 = vmatmul.bf16.gmra.mxu0 %v1280
        %v2719 = vpop.f32.mrf.mxu0
        %v2720 = vadd.f32 %v2651, %v2719
        %v2721 = vpop.f32.mrf.mxu0
        %v2722 = vadd.f32 %v2653, %v2721
        %2723 = vmatmul.bf16.gmra.mxu0 %v1282
        %v2724 = vpop.f32.mrf.mxu0
        %v2725 = vadd.f32 %v2656, %v2724
        %v2726 = vpop.f32.mrf.mxu0
        %v2727 = vadd.f32 %v2658, %v2726
        %2728 = vmatmul.bf16.gmra.mxu0 %v1284
        %v2729 = vpop.f32.mrf.mxu0
        %v2730 = vadd.f32 %v2661, %v2729
        %v2731 = vpop.f32.mrf.mxu0
        %v2732 = vadd.f32 %v2663, %v2731
        %2733 = vmatmul.bf16.gmra.mxu0 %v1286
        %v2734 = vpop.f32.mrf.mxu0
        %v2735 = vadd.f32 %v2666, %v2734
        %v2736 = vpop.f32.mrf.mxu0
        %v2737 = vadd.f32 %v2668, %v2736
        %2738 = vmatmul.bf16.gmra.mxu0 %v1288
        %v2739 = vpop.f32.mrf.mxu0
        %v2740 = vadd.f32 %v2671, %v2739
        %v2741 = vpop.f32.mrf.mxu0
        %v2742 = vadd.f32 %v2673, %v2741
        %2743 = vmatmul.bf16.gmra.mxu0 %v1290
        %v2744 = vpop.f32.mrf.mxu0
        %v2745 = vadd.f32 %v2676, %v2744
        %v2746 = vpop.f32.mrf.mxu0
        %v2747 = vadd.f32 %v2678, %v2746
        %2748 = vmatmul.bf16.gmra.mxu0 %v1292
        %v2749 = vpop.f32.mrf.mxu0
        %v2750 = vadd.f32 %v2681, %v2749
        %v2751 = vpop.f32.mrf.mxu0
        %v2752 = vadd.f32 %v2683, %v2751
        %2753 = vmatmul.bf16.gmra.mxu0 %v1294
        %v2754 = vpop.f32.mrf.mxu0
        %v2755 = vadd.f32 %v2686, %v2754
        %v2756 = vpop.f32.mrf.mxu0
        %v2757 = vadd.f32 %v2688, %v2756
        %2758 = vmatmul.bf16.gmra.mxu0 %v1296
        %v2759 = vpop.f32.mrf.mxu0
        %v2760 = vadd.f32 %v2691, %v2759
        %v2761 = vpop.f32.mrf.mxu0
        %v2762 = vadd.f32 %v2693, %v2761
        %2763 = vmatmul.bf16.gmra.mxu0 %v1298
        %v2764 = vpop.f32.mrf.mxu0
        %v2765 = vadd.f32 %v2696, %v2764
        %v2766 = vpop.f32.mrf.mxu0
        %v2767 = vadd.f32 %v2698, %v2766
        %2768 = vmatmul.bf16.gmra.mxu0 %v1300
        %v2769 = vpop.f32.mrf.mxu0
        %v2770 = vadd.f32 %v2701, %v2769
        %v2771 = vpop.f32.mrf.mxu0
        %v2772 = vadd.f32 %v2703, %v2771
        %2773 = vmatmul.bf16.gmra.mxu0 %v1302
        %v2774 = vpop.f32.mrf.mxu0
        %v2775 = vadd.f32 %v2706, %v2774
        %v2776 = vpop.f32.mrf.mxu0
        %v2777 = vadd.f32 %v2708, %v2776
        %2778 = vdwg.mxu0
        %2779 = vmatpush.bf16.msra.mxu0 %v1894
        %2780 = vmatpush.bf16.msra.mxu0 %v1886
        %2781 = vmatpush.bf16.msra.mxu0 %v1878
        %2782 = vmatpush.bf16.msra.mxu0 %v1870
        %2783 = vmatpush.bf16.msra.mxu0 %v1862
        %2784 = vmatpush.bf16.msra.mxu0 %v1854
        %2785 = vmatpush.bf16.msra.mxu0 %v1846
        %2786 = vmatpush.bf16.msra.mxu0 %v1838
        %2787 = vmatmul.bf16.gmra.mxu0 %v1279
        %v2788 = vpop.f32.mrf.mxu0
        %v2789 = vadd.f32 %v1438, %v2788
        %v2790 = vpop.f32.mrf.mxu0
        %v2791 = vadd.f32 %v1438, %v2790
        %2792 = vmatmul.bf16.gmra.mxu0 %v1281
        %v2793 = vpop.f32.mrf.mxu0
        %v2794 = vadd.f32 %v1438, %v2793
        %v2795 = vpop.f32.mrf.mxu0
        %v2796 = vadd.f32 %v1438, %v2795
        %2797 = vmatmul.bf16.gmra.mxu0 %v1283
        %v2798 = vpop.f32.mrf.mxu0
        %v2799 = vadd.f32 %v1438, %v2798
        %v2800 = vpop.f32.mrf.mxu0
        %v2801 = vadd.f32 %v1438, %v2800
        %2802 = vmatmul.bf16.gmra.mxu0 %v1285
        %v2803 = vpop.f32.mrf.mxu0
        %v2804 = vadd.f32 %v1438, %v2803
        %v2805 = vpop.f32.mrf.mxu0
        %v2806 = vadd.f32 %v1438, %v2805
        %2807 = vmatmul.bf16.gmra.mxu0 %v1287
        %v2808 = vpop.f32.mrf.mxu0
        %v2809 = vadd.f32 %v1438, %v2808
        %v2810 = vpop.f32.mrf.mxu0
        %v2811 = vadd.f32 %v1438, %v2810
        %2812 = vmatmul.bf16.gmra.mxu0 %v1289
        %v2813 = vpop.f32.mrf.mxu0
        %v2814 = vadd.f32 %v1438, %v2813
        %v2815 = vpop.f32.mrf.mxu0
        %v2816 = vadd.f32 %v1438, %v2815
        %2817 = vmatmul.bf16.gmra.mxu0 %v1291
        %v2818 = vpop.f32.mrf.mxu0
        %v2819 = vadd.f32 %v1438, %v2818
        %v2820 = vpop.f32.mrf.mxu0
        %v2821 = vadd.f32 %v1438, %v2820
        %2822 = vmatmul.bf16.gmra.mxu0 %v1293
        %v2823 = vpop.f32.mrf.mxu0
        %v2824 = vadd.f32 %v1438, %v2823
        %v2825 = vpop.f32.mrf.mxu0
        %v2826 = vadd.f32 %v1438, %v2825
        %2827 = vmatmul.bf16.gmra.mxu0 %v1295
        %v2828 = vpop.f32.mrf.mxu0
        %v2829 = vadd.f32 %v1438, %v2828
        %v2830 = vpop.f32.mrf.mxu0
        %v2831 = vadd.f32 %v1438, %v2830
        %2832 = vmatmul.bf16.gmra.mxu0 %v1297
        %v2833 = vpop.f32.mrf.mxu0
        %v2834 = vadd.f32 %v1438, %v2833
        %v2835 = vpop.f32.mrf.mxu0
        %v2836 = vadd.f32 %v1438, %v2835
        %2837 = vmatmul.bf16.gmra.mxu0 %v1299
        %v2838 = vpop.f32.mrf.mxu0
        %v2839 = vadd.f32 %v1438, %v2838
        %v2840 = vpop.f32.mrf.mxu0
        %v2841 = vadd.f32 %v1438, %v2840
        %2842 = vmatmul.bf16.gmra.mxu0 %v1301
        %v2843 = vpop.f32.mrf.mxu0
        %v2844 = vadd.f32 %v1438, %v2843
        %v2845 = vpop.f32.mrf.mxu0
        %v2846 = vadd.f32 %v1438, %v2845
        %2847 = vdwg.mxu0
        %2848 = vmatpush.bf16.msra.mxu0 %v1958
        %2849 = vmatpush.bf16.msra.mxu0 %v1950
        %2850 = vmatpush.bf16.msra.mxu0 %v1942
        %2851 = vmatpush.bf16.msra.mxu0 %v1934
        %2852 = vmatpush.bf16.msra.mxu0 %v1926
        %2853 = vmatpush.bf16.msra.mxu0 %v1918
        %2854 = vmatpush.bf16.msra.mxu0 %v1910
        %2855 = vmatpush.bf16.msra.mxu0 %v1902
        %2856 = vmatmul.bf16.gmra.mxu0 %v1280
        %v2857 = vpop.f32.mrf.mxu0
        %v2858 = vadd.f32 %v2789, %v2857
        %v2859 = vpop.f32.mrf.mxu0
        %v2860 = vadd.f32 %v2791, %v2859
        %2861 = vmatmul.bf16.gmra.mxu0 %v1282
        %v2862 = vpop.f32.mrf.mxu0
        %v2863 = vadd.f32 %v2794, %v2862
        %v2864 = vpop.f32.mrf.mxu0
        %v2865 = vadd.f32 %v2796, %v2864
        %2866 = vmatmul.bf16.gmra.mxu0 %v1284
        %v2867 = vpop.f32.mrf.mxu0
        %v2868 = vadd.f32 %v2799, %v2867
        %v2869 = vpop.f32.mrf.mxu0
        %v2870 = vadd.f32 %v2801, %v2869
        %2871 = vmatmul.bf16.gmra.mxu0 %v1286
        %v2872 = vpop.f32.mrf.mxu0
        %v2873 = vadd.f32 %v2804, %v2872
        %v2874 = vpop.f32.mrf.mxu0
        %v2875 = vadd.f32 %v2806, %v2874
        %2876 = vmatmul.bf16.gmra.mxu0 %v1288
        %v2877 = vpop.f32.mrf.mxu0
        %v2878 = vadd.f32 %v2809, %v2877
        %v2879 = vpop.f32.mrf.mxu0
        %v2880 = vadd.f32 %v2811, %v2879
        %2881 = vmatmul.bf16.gmra.mxu0 %v1290
        %v2882 = vpop.f32.mrf.mxu0
        %v2883 = vadd.f32 %v2814, %v2882
        %v2884 = vpop.f32.mrf.mxu0
        %v2885 = vadd.f32 %v2816, %v2884
        %2886 = vmatmul.bf16.gmra.mxu0 %v1292
        %v2887 = vpop.f32.mrf.mxu0
        %v2888 = vadd.f32 %v2819, %v2887
        %v2889 = vpop.f32.mrf.mxu0
        %v2890 = vadd.f32 %v2821, %v2889
        %2891 = vmatmul.bf16.gmra.mxu0 %v1294
        %v2892 = vpop.f32.mrf.mxu0
        %v2893 = vadd.f32 %v2824, %v2892
        %v2894 = vpop.f32.mrf.mxu0
        %v2895 = vadd.f32 %v2826, %v2894
        %2896 = vmatmul.bf16.gmra.mxu0 %v1296
        %v2897 = vpop.f32.mrf.mxu0
        %v2898 = vadd.f32 %v2829, %v2897
        %v2899 = vpop.f32.mrf.mxu0
        %v2900 = vadd.f32 %v2831, %v2899
        %2901 = vmatmul.bf16.gmra.mxu0 %v1298
        %v2902 = vpop.f32.mrf.mxu0
        %v2903 = vadd.f32 %v2834, %v2902
        %v2904 = vpop.f32.mrf.mxu0
        %v2905 = vadd.f32 %v2836, %v2904
        %2906 = vmatmul.bf16.gmra.mxu0 %v1300
        %v2907 = vpop.f32.mrf.mxu0
        %v2908 = vadd.f32 %v2839, %v2907
        %v2909 = vpop.f32.mrf.mxu0
        %v2910 = vadd.f32 %v2841, %v2909
        %2911 = vmatmul.bf16.gmra.mxu0 %v1302
        %v2912 = vpop.f32.mrf.mxu0
        %v2913 = vadd.f32 %v2844, %v2912
        %v2914 = vpop.f32.mrf.mxu0
        %v2915 = vadd.f32 %v2846, %v2914
        %2916 = vdwg.mxu0
        %2917 = vmatpush.bf16.msra.mxu0 %v1895
        %2918 = vmatpush.bf16.msra.mxu0 %v1887
        %2919 = vmatpush.bf16.msra.mxu0 %v1879
        %2920 = vmatpush.bf16.msra.mxu0 %v1871
        %2921 = vmatpush.bf16.msra.mxu0 %v1863
        %2922 = vmatpush.bf16.msra.mxu0 %v1855
        %2923 = vmatpush.bf16.msra.mxu0 %v1847
        %2924 = vmatpush.bf16.msra.mxu0 %v1839
        %2925 = vmatmul.bf16.gmra.mxu0 %v1279
        %v2926 = vpop.f32.mrf.mxu0
        %v2927 = vadd.f32 %v1439, %v2926
        %v2928 = vpop.f32.mrf.mxu0
        %v2929 = vadd.f32 %v1439, %v2928
        %2930 = vmatmul.bf16.gmra.mxu0 %v1281
        %v2931 = vpop.f32.mrf.mxu0
        %v2932 = vadd.f32 %v1439, %v2931
        %v2933 = vpop.f32.mrf.mxu0
        %v2934 = vadd.f32 %v1439, %v2933
        %2935 = vmatmul.bf16.gmra.mxu0 %v1283
        %v2936 = vpop.f32.mrf.mxu0
        %v2937 = vadd.f32 %v1439, %v2936
        %v2938 = vpop.f32.mrf.mxu0
        %v2939 = vadd.f32 %v1439, %v2938
        %2940 = vmatmul.bf16.gmra.mxu0 %v1285
        %v2941 = vpop.f32.mrf.mxu0
        %v2942 = vadd.f32 %v1439, %v2941
        %v2943 = vpop.f32.mrf.mxu0
        %v2944 = vadd.f32 %v1439, %v2943
        %2945 = vmatmul.bf16.gmra.mxu0 %v1287
        %v2946 = vpop.f32.mrf.mxu0
        %v2947 = vadd.f32 %v1439, %v2946
        %v2948 = vpop.f32.mrf.mxu0
        %v2949 = vadd.f32 %v1439, %v2948
        %2950 = vmatmul.bf16.gmra.mxu0 %v1289
        %v2951 = vpop.f32.mrf.mxu0
        %v2952 = vadd.f32 %v1439, %v2951
        %v2953 = vpop.f32.mrf.mxu0
        %v2954 = vadd.f32 %v1439, %v2953
        %2955 = vmatmul.bf16.gmra.mxu0 %v1291
        %v2956 = vpop.f32.mrf.mxu0
        %v2957 = vadd.f32 %v1439, %v2956
        %v2958 = vpop.f32.mrf.mxu0
        %v2959 = vadd.f32 %v1439, %v2958
        %2960 = vmatmul.bf16.gmra.mxu0 %v1293
        %v2961 = vpop.f32.mrf.mxu0
        %v2962 = vadd.f32 %v1439, %v2961
        %v2963 = vpop.f32.mrf.mxu0
        %v2964 = vadd.f32 %v1439, %v2963
        %2965 = vmatmul.bf16.gmra.mxu0 %v1295
        %v2966 = vpop.f32.mrf.mxu0
        %v2967 = vadd.f32 %v1439, %v2966
        %v2968 = vpop.f32.mrf.mxu0
        %v2969 = vadd.f32 %v1439, %v2968
        %2970 = vmatmul.bf16.gmra.mxu0 %v1297
        %v2971 = vpop.f32.mrf.mxu0
        %v2972 = vadd.f32 %v1439, %v2971
        %v2973 = vpop.f32.mrf.mxu0
        %v2974 = vadd.f32 %v1439, %v2973
        %2975 = vmatmul.bf16.gmra.mxu0 %v1299
        %v2976 = vpop.f32.mrf.mxu0
        %v2977 = vadd.f32 %v1439, %v2976
        %v2978 = vpop.f32.mrf.mxu0
        %v2979 = vadd.f32 %v1439, %v2978
        %2980 = vmatmul.bf16.gmra.mxu0 %v1301
        %v2981 = vpop.f32.mrf.mxu0
        %v2982 = vadd.f32 %v1439, %v2981
        %v2983 = vpop.f32.mrf.mxu0
        %v2984 = vadd.f32 %v1439, %v2983
        %2985 = vdwg.mxu0
        %2986 = vmatpush.bf16.msra.mxu0 %v1959
        %2987 = vmatpush.bf16.msra.mxu0 %v1951
        %2988 = vmatpush.bf16.msra.mxu0 %v1943
        %2989 = vmatpush.bf16.msra.mxu0 %v1935
        %2990 = vmatpush.bf16.msra.mxu0 %v1927
        %2991 = vmatpush.bf16.msra.mxu0 %v1919
        %2992 = vmatpush.bf16.msra.mxu0 %v1911
        %2993 = vmatpush.bf16.msra.mxu0 %v1903
        %2994 = vmatmul.bf16.gmra.mxu0 %v1280
        %v2995 = vpop.f32.mrf.mxu0
        %v2996 = vadd.f32 %v2927, %v2995
        %v2997 = vpop.f32.mrf.mxu0
        %v2998 = vadd.f32 %v2929, %v2997
        %2999 = vmatmul.bf16.gmra.mxu0 %v1282
        %v3000 = vpop.f32.mrf.mxu0
        %v3001 = vadd.f32 %v2932, %v3000
        %v3002 = vpop.f32.mrf.mxu0
        %v3003 = vadd.f32 %v2934, %v3002
        %3004 = vmatmul.bf16.gmra.mxu0 %v1284
        %v3005 = vpop.f32.mrf.mxu0
        %v3006 = vadd.f32 %v2937, %v3005
        %v3007 = vpop.f32.mrf.mxu0
        %v3008 = vadd.f32 %v2939, %v3007
        %3009 = vmatmul.bf16.gmra.mxu0 %v1286
        %v3010 = vpop.f32.mrf.mxu0
        %v3011 = vadd.f32 %v2942, %v3010
        %v3012 = vpop.f32.mrf.mxu0
        %v3013 = vadd.f32 %v2944, %v3012
        %3014 = vmatmul.bf16.gmra.mxu0 %v1288
        %v3015 = vpop.f32.mrf.mxu0
        %v3016 = vadd.f32 %v2947, %v3015
        %v3017 = vpop.f32.mrf.mxu0
        %v3018 = vadd.f32 %v2949, %v3017
        %3019 = vmatmul.bf16.gmra.mxu0 %v1290
        %v3020 = vpop.f32.mrf.mxu0
        %v3021 = vadd.f32 %v2952, %v3020
        %v3022 = vpop.f32.mrf.mxu0
        %v3023 = vadd.f32 %v2954, %v3022
        %3024 = vmatmul.bf16.gmra.mxu0 %v1292
        %v3025 = vpop.f32.mrf.mxu0
        %v3026 = vadd.f32 %v2957, %v3025
        %v3027 = vpop.f32.mrf.mxu0
        %v3028 = vadd.f32 %v2959, %v3027
        %3029 = vmatmul.bf16.gmra.mxu0 %v1294
        %v3030 = vpop.f32.mrf.mxu0
        %v3031 = vadd.f32 %v2962, %v3030
        %v3032 = vpop.f32.mrf.mxu0
        %v3033 = vadd.f32 %v2964, %v3032
        %3034 = vmatmul.bf16.gmra.mxu0 %v1296
        %v3035 = vpop.f32.mrf.mxu0
        %v3036 = vadd.f32 %v2967, %v3035
        %v3037 = vpop.f32.mrf.mxu0
        %v3038 = vadd.f32 %v2969, %v3037
        %3039 = vmatmul.bf16.gmra.mxu0 %v1298
        %v3040 = vpop.f32.mrf.mxu0
        %v3041 = vadd.f32 %v2972, %v3040
        %v3042 = vpop.f32.mrf.mxu0
        %v3043 = vadd.f32 %v2974, %v3042
        %3044 = vmatmul.bf16.gmra.mxu0 %v1300
        %v3045 = vpop.f32.mrf.mxu0
        %v3046 = vadd.f32 %v2977, %v3045
        %v3047 = vpop.f32.mrf.mxu0
        %v3048 = vadd.f32 %v2979, %v3047
        %3049 = vmatmul.bf16.gmra.mxu0 %v1302
        %v3050 = vpop.f32.mrf.mxu0
        %v3051 = vadd.f32 %v2982, %v3050
        %v3052 = vpop.f32.mrf.mxu0
        %v3053 = vadd.f32 %v2984, %v3052
        %3054 = vdwg.mxu0
        %3055 = vmatpush.bf16.msra.mxu0 %v1896
        %3056 = vmatpush.bf16.msra.mxu0 %v1888
        %3057 = vmatpush.bf16.msra.mxu0 %v1880
        %3058 = vmatpush.bf16.msra.mxu0 %v1872
        %3059 = vmatpush.bf16.msra.mxu0 %v1864
        %3060 = vmatpush.bf16.msra.mxu0 %v1856
        %3061 = vmatpush.bf16.msra.mxu0 %v1848
        %3062 = vmatpush.bf16.msra.mxu0 %v1840
        %3063 = vmatmul.bf16.gmra.mxu0 %v1279
        %v3064 = vpop.f32.mrf.mxu0
        %v3065 = vadd.f32 %v1440, %v3064
        %v3066 = vpop.f32.mrf.mxu0
        %v3067 = vadd.f32 %v1440, %v3066
        %3068 = vmatmul.bf16.gmra.mxu0 %v1281
        %v3069 = vpop.f32.mrf.mxu0
        %v3070 = vadd.f32 %v1440, %v3069
        %v3071 = vpop.f32.mrf.mxu0
        %v3072 = vadd.f32 %v1440, %v3071
        %3073 = vmatmul.bf16.gmra.mxu0 %v1283
        %v3074 = vpop.f32.mrf.mxu0
        %v3075 = vadd.f32 %v1440, %v3074
        %v3076 = vpop.f32.mrf.mxu0
        %v3077 = vadd.f32 %v1440, %v3076
        %3078 = vmatmul.bf16.gmra.mxu0 %v1285
        %v3079 = vpop.f32.mrf.mxu0
        %v3080 = vadd.f32 %v1440, %v3079
        %v3081 = vpop.f32.mrf.mxu0
        %v3082 = vadd.f32 %v1440, %v3081
        %3083 = vmatmul.bf16.gmra.mxu0 %v1287
        %v3084 = vpop.f32.mrf.mxu0
        %v3085 = vadd.f32 %v1440, %v3084
        %v3086 = vpop.f32.mrf.mxu0
        %v3087 = vadd.f32 %v1440, %v3086
        %3088 = vmatmul.bf16.gmra.mxu0 %v1289
        %v3089 = vpop.f32.mrf.mxu0
        %v3090 = vadd.f32 %v1440, %v3089
        %v3091 = vpop.f32.mrf.mxu0
        %v3092 = vadd.f32 %v1440, %v3091
        %3093 = vmatmul.bf16.gmra.mxu0 %v1291
        %v3094 = vpop.f32.mrf.mxu0
        %v3095 = vadd.f32 %v1440, %v3094
        %v3096 = vpop.f32.mrf.mxu0
        %v3097 = vadd.f32 %v1440, %v3096
        %3098 = vmatmul.bf16.gmra.mxu0 %v1293
        %v3099 = vpop.f32.mrf.mxu0
        %v3100 = vadd.f32 %v1440, %v3099
        %v3101 = vpop.f32.mrf.mxu0
        %v3102 = vadd.f32 %v1440, %v3101
        %3103 = vmatmul.bf16.gmra.mxu0 %v1295
        %v3104 = vpop.f32.mrf.mxu0
        %v3105 = vadd.f32 %v1440, %v3104
        %v3106 = vpop.f32.mrf.mxu0
        %v3107 = vadd.f32 %v1440, %v3106
        %3108 = vmatmul.bf16.gmra.mxu0 %v1297
        %v3109 = vpop.f32.mrf.mxu0
        %v3110 = vadd.f32 %v1440, %v3109
        %v3111 = vpop.f32.mrf.mxu0
        %v3112 = vadd.f32 %v1440, %v3111
        %3113 = vmatmul.bf16.gmra.mxu0 %v1299
        %v3114 = vpop.f32.mrf.mxu0
        %v3115 = vadd.f32 %v1440, %v3114
        %v3116 = vpop.f32.mrf.mxu0
        %v3117 = vadd.f32 %v1440, %v3116
        %3118 = vmatmul.bf16.gmra.mxu0 %v1301
        %v3119 = vpop.f32.mrf.mxu0
        %v3120 = vadd.f32 %v1440, %v3119
        %v3121 = vpop.f32.mrf.mxu0
        %v3122 = vadd.f32 %v1440, %v3121
        %3123 = vdwg.mxu0
        %3124 = vmatpush.bf16.msra.mxu0 %v1960
        %3125 = vmatpush.bf16.msra.mxu0 %v1952
        %3126 = vmatpush.bf16.msra.mxu0 %v1944
        %3127 = vmatpush.bf16.msra.mxu0 %v1936
        %3128 = vmatpush.bf16.msra.mxu0 %v1928
        %3129 = vmatpush.bf16.msra.mxu0 %v1920
        %3130 = vmatpush.bf16.msra.mxu0 %v1912
        %3131 = vmatpush.bf16.msra.mxu0 %v1904
        %3132 = vmatmul.bf16.gmra.mxu0 %v1280
        %v3133 = vpop.f32.mrf.mxu0
        %v3134 = vadd.f32 %v3065, %v3133
        %v3135 = vpop.f32.mrf.mxu0
        %v3136 = vadd.f32 %v3067, %v3135
        %3137 = vmatmul.bf16.gmra.mxu0 %v1282
        %v3138 = vpop.f32.mrf.mxu0
        %v3139 = vadd.f32 %v3070, %v3138
        %v3140 = vpop.f32.mrf.mxu0
        %v3141 = vadd.f32 %v3072, %v3140
        %3142 = vmatmul.bf16.gmra.mxu0 %v1284
        %v3143 = vpop.f32.mrf.mxu0
        %v3144 = vadd.f32 %v3075, %v3143
        %v3145 = vpop.f32.mrf.mxu0
        %v3146 = vadd.f32 %v3077, %v3145
        %3147 = vmatmul.bf16.gmra.mxu0 %v1286
        %v3148 = vpop.f32.mrf.mxu0
        %v3149 = vadd.f32 %v3080, %v3148
        %v3150 = vpop.f32.mrf.mxu0
        %v3151 = vadd.f32 %v3082, %v3150
        %3152 = vmatmul.bf16.gmra.mxu0 %v1288
        %v3153 = vpop.f32.mrf.mxu0
        %v3154 = vadd.f32 %v3085, %v3153
        %v3155 = vpop.f32.mrf.mxu0
        %v3156 = vadd.f32 %v3087, %v3155
        %3157 = vmatmul.bf16.gmra.mxu0 %v1290
        %v3158 = vpop.f32.mrf.mxu0
        %v3159 = vadd.f32 %v3090, %v3158
        %v3160 = vpop.f32.mrf.mxu0
        %v3161 = vadd.f32 %v3092, %v3160
        %3162 = vmatmul.bf16.gmra.mxu0 %v1292
        %v3163 = vpop.f32.mrf.mxu0
        %v3164 = vadd.f32 %v3095, %v3163
        %v3165 = vpop.f32.mrf.mxu0
        %v3166 = vadd.f32 %v3097, %v3165
        %3167 = vmatmul.bf16.gmra.mxu0 %v1294
        %v3168 = vpop.f32.mrf.mxu0
        %v3169 = vadd.f32 %v3100, %v3168
        %v3170 = vpop.f32.mrf.mxu0
        %v3171 = vadd.f32 %v3102, %v3170
        %3172 = vmatmul.bf16.gmra.mxu0 %v1296
        %v3173 = vpop.f32.mrf.mxu0
        %v3174 = vadd.f32 %v3105, %v3173
        %v3175 = vpop.f32.mrf.mxu0
        %v3176 = vadd.f32 %v3107, %v3175
        %3177 = vmatmul.bf16.gmra.mxu0 %v1298
        %v3178 = vpop.f32.mrf.mxu0
        %v3179 = vadd.f32 %v3110, %v3178
        %v3180 = vpop.f32.mrf.mxu0
        %v3181 = vadd.f32 %v3112, %v3180
        %3182 = vmatmul.bf16.gmra.mxu0 %v1300
        %v3183 = vpop.f32.mrf.mxu0
        %v3184 = vadd.f32 %v3115, %v3183
        %v3185 = vpop.f32.mrf.mxu0
        %v3186 = vadd.f32 %v3117, %v3185
        %3187 = vmatmul.bf16.gmra.mxu0 %v1302
        %v3188 = vpop.f32.mrf.mxu0
        %v3189 = vadd.f32 %v3120, %v3188
        %v3190 = vpop.f32.mrf.mxu0
        %v3191 = vadd.f32 %v3122, %v3190
        %3192 = vdwg.mxu0
        %3193 = vst [vmem:[%s375] sm:$0xff] %v2168
        %3194 = vst [vmem:[%s375 + $0x8] sm:$0xff] %v2306
        %3195 = vst [vmem:[%s375 + $0x10] sm:$0xff] %v2444
        %3196 = vst [vmem:[%s375 + $0x18] sm:$0xff] %v2582
        %3197 = vst [vmem:[%s375 + $0x20] sm:$0xff] %v2720
        %3198 = vst [vmem:[%s375 + $0x28] sm:$0xff] %v2858
        %3199 = vst [vmem:[%s375 + $0x30] sm:$0xff] %v2996
        %3200 = vst [vmem:[%s375 + $0x38] sm:$0xff] %v3134
        %3201 = vst [vmem:[%s375 + $0x40] sm:$0xff] %v2170
        %3202 = vst [vmem:[%s375 + $0x48] sm:$0xff] %v2308
        %3203 = vst [vmem:[%s375 + $0x50] sm:$0xff] %v2446
        %3204 = vst [vmem:[%s375 + $0x58] sm:$0xff] %v2584
        %3205 = vst [vmem:[%s375 + $0x60] sm:$0xff] %v2722
        %3206 = vst [vmem:[%s375 + $0x68] sm:$0xff] %v2860
        %3207 = vst [vmem:[%s375 + $0x70] sm:$0xff] %v2998
        %3208 = vst [vmem:[%s375 + $0x78] sm:$0xff] %v3136
        %3209 = vst [vmem:[%s375 + $0x80] sm:$0xff] %v2173
        %3210 = vst [vmem:[%s375 + $0x88] sm:$0xff] %v2311
        %3211 = vst [vmem:[%s375 + $0x90] sm:$0xff] %v2449
        %3212 = vst [vmem:[%s375 + $0x98] sm:$0xff] %v2587
        %3213 = vst [vmem:[%s375 + $0xa0] sm:$0xff] %v2725
        %3214 = vst [vmem:[%s375 + $0xa8] sm:$0xff] %v2863
        %3215 = vst [vmem:[%s375 + $0xb0] sm:$0xff] %v3001
        %3216 = vst [vmem:[%s375 + $0xb8] sm:$0xff] %v3139
        %3217 = vst [vmem:[%s375 + $0xc0] sm:$0xff] %v2175
        %3218 = vst [vmem:[%s375 + $0xc8] sm:$0xff] %v2313
        %3219 = vst [vmem:[%s375 + $0xd0] sm:$0xff] %v2451
        %3220 = vst [vmem:[%s375 + $0xd8] sm:$0xff] %v2589
        %3221 = vst [vmem:[%s375 + $0xe0] sm:$0xff] %v2727
        %3222 = vst [vmem:[%s375 + $0xe8] sm:$0xff] %v2865
        %3223 = vst [vmem:[%s375 + $0xf0] sm:$0xff] %v3003
        %3224 = vst [vmem:[%s375 + $0xf8] sm:$0xff] %v3141
        %3225 = vst [vmem:[%s375 + $0x100] sm:$0xff] %v2178
        %3226 = vst [vmem:[%s375 + $0x108] sm:$0xff] %v2316
        %3227 = vst [vmem:[%s375 + $0x110] sm:$0xff] %v2454
        %3228 = vst [vmem:[%s375 + $0x118] sm:$0xff] %v2592
        %3229 = vst [vmem:[%s375 + $0x120] sm:$0xff] %v2730
        %3230 = vst [vmem:[%s375 + $0x128] sm:$0xff] %v2868
        %3231 = vst [vmem:[%s375 + $0x130] sm:$0xff] %v3006
        %3232 = vst [vmem:[%s375 + $0x138] sm:$0xff] %v3144
        %3233 = vst [vmem:[%s375 + $0x140] sm:$0xff] %v2180
        %3234 = vst [vmem:[%s375 + $0x148] sm:$0xff] %v2318
        %3235 = vst [vmem:[%s375 + $0x150] sm:$0xff] %v2456
        %3236 = vst [vmem:[%s375 + $0x158] sm:$0xff] %v2594
        %3237 = vst [vmem:[%s375 + $0x160] sm:$0xff] %v2732
        %3238 = vst [vmem:[%s375 + $0x168] sm:$0xff] %v2870
        %3239 = vst [vmem:[%s375 + $0x170] sm:$0xff] %v3008
        %3240 = vst [vmem:[%s375 + $0x178] sm:$0xff] %v3146
        %3241 = vst [vmem:[%s375 + $0x180] sm:$0xff] %v2183
        %3242 = vst [vmem:[%s375 + $0x188] sm:$0xff] %v2321
        %3243 = vst [vmem:[%s375 + $0x190] sm:$0xff] %v2459
        %3244 = vst [vmem:[%s375 + $0x198] sm:$0xff] %v2597
        %3245 = vst [vmem:[%s375 + $0x1a0] sm:$0xff] %v2735
        %3246 = vst [vmem:[%s375 + $0x1a8] sm:$0xff] %v2873
        %3247 = vst [vmem:[%s375 + $0x1b0] sm:$0xff] %v3011
        %3248 = vst [vmem:[%s375 + $0x1b8] sm:$0xff] %v3149
        %3249 = vst [vmem:[%s375 + $0x1c0] sm:$0xff] %v2185
        %3250 = vst [vmem:[%s375 + $0x1c8] sm:$0xff] %v2323
        %3251 = vst [vmem:[%s375 + $0x1d0] sm:$0xff] %v2461
        %3252 = vst [vmem:[%s375 + $0x1d8] sm:$0xff] %v2599
        %3253 = vst [vmem:[%s375 + $0x1e0] sm:$0xff] %v2737
        %3254 = vst [vmem:[%s375 + $0x1e8] sm:$0xff] %v2875
        %3255 = vst [vmem:[%s375 + $0x1f0] sm:$0xff] %v3013
        %3256 = vst [vmem:[%s375 + $0x1f8] sm:$0xff] %v3151
        %3257 = vst [vmem:[%s375 + $0x200] sm:$0xff] %v2188
        %3258 = vst [vmem:[%s375 + $0x208] sm:$0xff] %v2326
        %3259 = vst [vmem:[%s375 + $0x210] sm:$0xff] %v2464
        %3260 = vst [vmem:[%s375 + $0x218] sm:$0xff] %v2602
        %3261 = vst [vmem:[%s375 + $0x220] sm:$0xff] %v2740
        %3262 = vst [vmem:[%s375 + $0x228] sm:$0xff] %v2878
        %3263 = vst [vmem:[%s375 + $0x230] sm:$0xff] %v3016
        %3264 = vst [vmem:[%s375 + $0x238] sm:$0xff] %v3154
        %3265 = vst [vmem:[%s375 + $0x240] sm:$0xff] %v2190
        %3266 = vst [vmem:[%s375 + $0x248] sm:$0xff] %v2328
        %3267 = vst [vmem:[%s375 + $0x250] sm:$0xff] %v2466
        %3268 = vst [vmem:[%s375 + $0x258] sm:$0xff] %v2604
        %3269 = vst [vmem:[%s375 + $0x260] sm:$0xff] %v2742
        %3270 = vst [vmem:[%s375 + $0x268] sm:$0xff] %v2880
        %3271 = vst [vmem:[%s375 + $0x270] sm:$0xff] %v3018
        %3272 = vst [vmem:[%s375 + $0x278] sm:$0xff] %v3156
        %3273 = vst [vmem:[%s375 + $0x280] sm:$0xff] %v2193
        %3274 = vst [vmem:[%s375 + $0x288] sm:$0xff] %v2331
        %3275 = vst [vmem:[%s375 + $0x290] sm:$0xff] %v2469
        %3276 = vst [vmem:[%s375 + $0x298] sm:$0xff] %v2607
        %3277 = vst [vmem:[%s375 + $0x2a0] sm:$0xff] %v2745
        %3278 = vst [vmem:[%s375 + $0x2a8] sm:$0xff] %v2883
        %3279 = vst [vmem:[%s375 + $0x2b0] sm:$0xff] %v3021
        %3280 = vst [vmem:[%s375 + $0x2b8] sm:$0xff] %v3159
        %3281 = vst [vmem:[%s375 + $0x2c0] sm:$0xff] %v2195
        %3282 = vst [vmem:[%s375 + $0x2c8] sm:$0xff] %v2333
        %3283 = vst [vmem:[%s375 + $0x2d0] sm:$0xff] %v2471
        %3284 = vst [vmem:[%s375 + $0x2d8] sm:$0xff] %v2609
        %3285 = vst [vmem:[%s375 + $0x2e0] sm:$0xff] %v2747
        %3286 = vst [vmem:[%s375 + $0x2e8] sm:$0xff] %v2885
        %3287 = vst [vmem:[%s375 + $0x2f0] sm:$0xff] %v3023
        %3288 = vst [vmem:[%s375 + $0x2f8] sm:$0xff] %v3161
        %3289 = vst [vmem:[%s375 + $0x300] sm:$0xff] %v2198
        %3290 = vst [vmem:[%s375 + $0x308] sm:$0xff] %v2336
        %3291 = vst [vmem:[%s375 + $0x310] sm:$0xff] %v2474
        %3292 = vst [vmem:[%s375 + $0x318] sm:$0xff] %v2612
        %3293 = vst [vmem:[%s375 + $0x320] sm:$0xff] %v2750
        %3294 = vst [vmem:[%s375 + $0x328] sm:$0xff] %v2888
        %3295 = vst [vmem:[%s375 + $0x330] sm:$0xff] %v3026
        %3296 = vst [vmem:[%s375 + $0x338] sm:$0xff] %v3164
        %3297 = vst [vmem:[%s375 + $0x340] sm:$0xff] %v2200
        %3298 = vst [vmem:[%s375 + $0x348] sm:$0xff] %v2338
        %3299 = vst [vmem:[%s375 + $0x350] sm:$0xff] %v2476
        %3300 = vst [vmem:[%s375 + $0x358] sm:$0xff] %v2614
        %3301 = vst [vmem:[%s375 + $0x360] sm:$0xff] %v2752
        %3302 = vst [vmem:[%s375 + $0x368] sm:$0xff] %v2890
        %3303 = vst [vmem:[%s375 + $0x370] sm:$0xff] %v3028
        %3304 = vst [vmem:[%s375 + $0x378] sm:$0xff] %v3166
        %3305 = vst [vmem:[%s375 + $0x380] sm:$0xff] %v2203
        %3306 = vst [vmem:[%s375 + $0x388] sm:$0xff] %v2341
        %3307 = vst [vmem:[%s375 + $0x390] sm:$0xff] %v2479
        %3308 = vst [vmem:[%s375 + $0x398] sm:$0xff] %v2617
        %3309 = vst [vmem:[%s375 + $0x3a0] sm:$0xff] %v2755
        %3310 = vst [vmem:[%s375 + $0x3a8] sm:$0xff] %v2893
        %3311 = vst [vmem:[%s375 + $0x3b0] sm:$0xff] %v3031
        %3312 = vst [vmem:[%s375 + $0x3b8] sm:$0xff] %v3169
        %3313 = vst [vmem:[%s375 + $0x3c0] sm:$0xff] %v2205
        %3314 = vst [vmem:[%s375 + $0x3c8] sm:$0xff] %v2343
        %3315 = vst [vmem:[%s375 + $0x3d0] sm:$0xff] %v2481
        %3316 = vst [vmem:[%s375 + $0x3d8] sm:$0xff] %v2619
        %3317 = vst [vmem:[%s375 + $0x3e0] sm:$0xff] %v2757
        %3318 = vst [vmem:[%s375 + $0x3e8] sm:$0xff] %v2895
        %3319 = vst [vmem:[%s375 + $0x3f0] sm:$0xff] %v3033
        %3320 = vst [vmem:[%s375 + $0x3f8] sm:$0xff] %v3171
        %3321 = vst [vmem:[%s375 + $0x400] sm:$0xff] %v2208
        %3322 = vst [vmem:[%s375 + $0x408] sm:$0xff] %v2346
        %3323 = vst [vmem:[%s375 + $0x410] sm:$0xff] %v2484
        %3324 = vst [vmem:[%s375 + $0x418] sm:$0xff] %v2622
        %3325 = vst [vmem:[%s375 + $0x420] sm:$0xff] %v2760
        %3326 = vst [vmem:[%s375 + $0x428] sm:$0xff] %v2898
        %3327 = vst [vmem:[%s375 + $0x430] sm:$0xff] %v3036
        %3328 = vst [vmem:[%s375 + $0x438] sm:$0xff] %v3174
        %3329 = vst [vmem:[%s375 + $0x440] sm:$0xff] %v2210
        %3330 = vst [vmem:[%s375 + $0x448] sm:$0xff] %v2348
        %3331 = vst [vmem:[%s375 + $0x450] sm:$0xff] %v2486
        %3332 = vst [vmem:[%s375 + $0x458] sm:$0xff] %v2624
        %3333 = vst [vmem:[%s375 + $0x460] sm:$0xff] %v2762
        %3334 = vst [vmem:[%s375 + $0x468] sm:$0xff] %v2900
        %3335 = vst [vmem:[%s375 + $0x470] sm:$0xff] %v3038
        %3336 = vst [vmem:[%s375 + $0x478] sm:$0xff] %v3176
        %3337 = vst [vmem:[%s375 + $0x480] sm:$0xff] %v2213
        %3338 = vst [vmem:[%s375 + $0x488] sm:$0xff] %v2351
        %3339 = vst [vmem:[%s375 + $0x490] sm:$0xff] %v2489
        %3340 = vst [vmem:[%s375 + $0x498] sm:$0xff] %v2627
        %3341 = vst [vmem:[%s375 + $0x4a0] sm:$0xff] %v2765
        %3342 = vst [vmem:[%s375 + $0x4a8] sm:$0xff] %v2903
        %3343 = vst [vmem:[%s375 + $0x4b0] sm:$0xff] %v3041
        %3344 = vst [vmem:[%s375 + $0x4b8] sm:$0xff] %v3179
        %3345 = vst [vmem:[%s375 + $0x4c0] sm:$0xff] %v2215
        %3346 = vst [vmem:[%s375 + $0x4c8] sm:$0xff] %v2353
        %3347 = vst [vmem:[%s375 + $0x4d0] sm:$0xff] %v2491
        %3348 = vst [vmem:[%s375 + $0x4d8] sm:$0xff] %v2629
        %3349 = vst [vmem:[%s375 + $0x4e0] sm:$0xff] %v2767
        %3350 = vst [vmem:[%s375 + $0x4e8] sm:$0xff] %v2905
        %3351 = vst [vmem:[%s375 + $0x4f0] sm:$0xff] %v3043
        %3352 = vst [vmem:[%s375 + $0x4f8] sm:$0xff] %v3181
        %3353 = vst [vmem:[%s375 + $0x500] sm:$0xff] %v2218
        %3354 = vst [vmem:[%s375 + $0x508] sm:$0xff] %v2356
        %3355 = vst [vmem:[%s375 + $0x510] sm:$0xff] %v2494
        %3356 = vst [vmem:[%s375 + $0x518] sm:$0xff] %v2632
        %3357 = vst [vmem:[%s375 + $0x520] sm:$0xff] %v2770
        %3358 = vst [vmem:[%s375 + $0x528] sm:$0xff] %v2908
        %3359 = vst [vmem:[%s375 + $0x530] sm:$0xff] %v3046
        %3360 = vst [vmem:[%s375 + $0x538] sm:$0xff] %v3184
        %3361 = vst [vmem:[%s375 + $0x540] sm:$0xff] %v2220
        %3362 = vst [vmem:[%s375 + $0x548] sm:$0xff] %v2358
        %3363 = vst [vmem:[%s375 + $0x550] sm:$0xff] %v2496
        %3364 = vst [vmem:[%s375 + $0x558] sm:$0xff] %v2634
        %3365 = vst [vmem:[%s375 + $0x560] sm:$0xff] %v2772
        %3366 = vst [vmem:[%s375 + $0x568] sm:$0xff] %v2910
        %3367 = vst [vmem:[%s375 + $0x570] sm:$0xff] %v3048
        %3368 = vst [vmem:[%s375 + $0x578] sm:$0xff] %v3186
        %3369 = vst [vmem:[%s375 + $0x580] sm:$0xff] %v2223
        %3370 = vst [vmem:[%s375 + $0x588] sm:$0xff] %v2361
        %3371 = vst [vmem:[%s375 + $0x590] sm:$0xff] %v2499
        %3372 = vst [vmem:[%s375 + $0x598] sm:$0xff] %v2637
        %3373 = vst [vmem:[%s375 + $0x5a0] sm:$0xff] %v2775
        %3374 = vst [vmem:[%s375 + $0x5a8] sm:$0xff] %v2913
        %3375 = vst [vmem:[%s375 + $0x5b0] sm:$0xff] %v3051
        %3376 = vst [vmem:[%s375 + $0x5b8] sm:$0xff] %v3189
        %3377 = vst [vmem:[%s375 + $0x5c0] sm:$0xff] %v2225
        %3378 = vst [vmem:[%s375 + $0x5c8] sm:$0xff] %v2363
        %3379 = vst [vmem:[%s375 + $0x5d0] sm:$0xff] %v2501
        %3380 = vst [vmem:[%s375 + $0x5d8] sm:$0xff] %v2639
        %3381 = vst [vmem:[%s375 + $0x5e0] sm:$0xff] %v2777
        %3382 = vst [vmem:[%s375 + $0x5e8] sm:$0xff] %v2915
        %3383 = vst [vmem:[%s375 + $0x5f0] sm:$0xff] %v3053
        %3384 = vst [vmem:[%s375 + $0x5f8] sm:$0xff] %v3191
        %s3385 = sand.u32 %s172, 1
        %s3386 = scalar_lea.sflag [#allocation4], %s3385
        %s3387 = sand.u32 %s172, 1
        %s3388 = smul.addr %s3387, 1536
        %s3389 = scalar_lea.vmem [#allocation13], %s3388
        // Predicated region
        $region69: #{tpu_custom_call.1} parent=43 // pred_check
          %p3390 = pneg %p182
        $region70: #{tpu_custom_call.1} parent=43 // pred_check_branch
          %3392 = sbr.rel (%p3390) target = $region72
        $region71: #{tpu_custom_call.1} parent=43 // pred_region
          %s3393 = smul.u32 24, %s28
          %3395 = vsyncadd %s3386, 0
          %s3396 = smul.addr %s3393, 8
          %s3397 = smul.addr %s3396, 8
          %s3398 = scalar_lea.hbm %s6, %s3397
          %s3399 = sshll.u32 %s3389, 4
          %s3400 = int_to_ptr.vmem [resolvable:$true] %s3399
          %s3401 = sshll.u32 %s3398, 4
          %s3402 = int_to_ptr.hbm [resolvable:$true] %s3401
          %3407 = dma.vmem_to_hbm [thread:$0]  %s3400, 24576, %s3402, %s3386, 1024, 1024, 64
        $region72: #{tpu_custom_call.1} parent=43 // pred_fallthru
          _
      $region44: #{tpu_custom_call.1} parent=5 // pred_fallthru
        _
      %p3408 = scmp.le.s32.totalorder 2, %s23
      // Predicated region
      $region73: #{tpu_custom_call.1} parent=5 // pred_check
        %p3409 = pneg %p3408
      $region74: #{tpu_custom_call.1} parent=5 // pred_check_branch
        %3411 = sbr.rel (%p3409) target = $region76
      $region75: #{tpu_custom_call.1} parent=5 // pred_region
        %s3412 = ssub.s32 %s23, 2
        // Predicated region
        $region77: #{tpu_custom_call.1} parent=75 // pred_check
          %p3413 = pneg %p188
        $region78: #{tpu_custom_call.1} parent=75 // pred_check_branch
          %3415 = sbr.rel (%p3413) target = $region80
        $region79: #{tpu_custom_call.1} parent=75 // pred_region
          %s3416 = sand.u32 %s173, 1
          %s3417 = scalar_lea.sflag [#allocation4], %s3416
          %s3418 = sand.u32 %s173, 1
          %s3419 = smul.addr %s3418, 1536
          %s3420 = scalar_lea.vmem [#allocation13], %s3419
          %3422 = dma.done %s3417, 24576
        $region80: #{tpu_custom_call.1} parent=75 // pred_fallthru
          _
      $region76: #{tpu_custom_call.1} parent=5 // pred_fallthru
        _
    $region6: #{tpu_custom_call.1} parent=1 // loop_footer
      %s27 = sadd.s32 1, %s23
    $region7: #{tpu_custom_call.1} parent=1 // loop_footer_branch
      %22 = sbr.rel target = $region3
    $region8: #{tpu_custom_call.1} parent=1 // loop_exit
      _
    %3423 = vsyncpa [#allocation3], 1
    %s3424 = scalar_lea.sflag [#allocation3], 1
    %3425 = vsyncpa %s3424, 1
    %3426 = vsyncpa [#allocation6], 1
    %s3427 = scalar_lea.sflag [#allocation6], 1
    %3428 = vsyncpa %s3427, 1
    %3429 = vsyncpa [#allocation9], 1
    %3430 = vsyncpa [#allocation12], 1
    %3431 = vsyncpa [#allocation4], 1
    %s3432 = scalar_lea.sflag [#allocation4], 1
    %3433 = vsyncpa %s3432, 1

</llo_original>
